<compile_context>
chip_gen: v6e
topology: v6e:2x2x1
jax: 0.10.0
libtpu: 0.0.40
codegen_flags: <defaults>
</compile_context>

<pallas_src>
import functools
import numpy as np

import jax
import jax.numpy as jnp
from jax.experimental import pallas as pl
from jax.experimental.pallas import tpu as pltpu


# ----------------------------------------------------------------------------
# Tiling helpers
# ----------------------------------------------------------------------------
def _pick_tile(dim, cap, quantum):
    """Largest divisor of `dim` that is a multiple of `quantum` and <= cap.

    Falls back to the full dimension, which is always a legal block ("equal to
    the full array dim" satisfies the (8, 128) BlockSpec rule)."""
    if dim <= cap:
        return dim
    start = cap - (cap % quantum)
    for cand in range(start, 0, -quantum):
        if dim % cand == 0:
            return cand
    return dim


def _pad_to_multiple(n, m):
    return ((n + m - 1) // m) * m


# ----------------------------------------------------------------------------
# Pallas kernel 1: fused  y = relu_opt( (x @ W) * scale + shift )   (1x1 convs)
# ----------------------------------------------------------------------------
def _matmul_affine_kernel(x_ref, w_ref, s_ref, b_ref, o_ref, acc_ref, *, relu):
    k = pl.program_id(2)

    @pl.when(k == 0)
    def _init():
        acc_ref[...] = jnp.zeros_like(acc_ref)

    acc_ref[...] += jnp.dot(x_ref[...], w_ref[...],
                            preferred_element_type=jnp.float32)

    @pl.when(k == pl.num_programs(2) - 1)
    def _finalize():
        y = acc_ref[...] * s_ref[...] + b_ref[...]
        if relu:
            y = jnp.maximum(y, 0.0)
        o_ref[...] = y.astype(o_ref.dtype)


def matmul_affine(x, w, scale, shift, relu):
    """x:(P,Cin) f32, w:(Cin,Cout), scale/shift:(Cout,) -> (P,Cout) f32.

    bf16 MXU inputs with f32 accumulation; Cout zero-padded to a multiple of
    128 so output blocks are lane-dense (no masked partial stores)."""
    P, Cin = x.shape
    Cout = w.shape[1]

    Cout_p = _pad_to_multiple(Cout, 128)
    if Cout_p != Cout:
        w = jnp.pad(w, ((0, 0), (0, Cout_p - Cout)))
        scale = jnp.pad(scale, (0, Cout_p - Cout), constant_values=1.0)
        shift = jnp.pad(shift, (0, Cout_p - Cout))

    # Collapse the grid for the many tiny layers; cap tiles so double-buffered
    # bf16 blocks stay well inside VMEM on every TPU generation (incl. v7x).
    tp = _pick_tile(P, 1024, 8)          # rows (full dim if no aligned divisor)
    tk = _pick_tile(Cin, 2048, 128)      # contraction
    tn = _pick_tile(Cout_p, 512, 128)    # output channels (lane-dense)
    grid = (P // tp, Cout_p // tn, Cin // tk)

    scale2 = scale.reshape(1, Cout_p).astype(jnp.float32)
    shift2 = shift.reshape(1, Cout_p).astype(jnp.float32)

    flops = 2 * P * Cin * Cout_p
    bytes_accessed = P * Cin * 2 + Cin * Cout_p * 2 + P * Cout_p * 4

    kernel = functools.partial(_matmul_affine_kernel, relu=relu)
    out = pl.pallas_call(
        kernel,
        out_shape=jax.ShapeDtypeStruct((P, Cout_p), jnp.float32),
        grid_spec=pltpu.PrefetchScalarGridSpec(
            num_scalar_prefetch=0,
            grid=grid,
            in_specs=[
                pl.BlockSpec((tp, tk), lambda i, j, k: (i, k)),
                pl.BlockSpec((tk, tn), lambda i, j, k: (k, j)),
                pl.BlockSpec((1, tn), lambda i, j, k: (0, j)),
                pl.BlockSpec((1, tn), lambda i, j, k: (0, j)),
            ],
            out_specs=pl.BlockSpec((tp, tn), lambda i, j, k: (i, j)),
            scratch_shapes=[pltpu.VMEM((tp, tn), jnp.float32)],
        ),
        compiler_params=pltpu.CompilerParams(
            dimension_semantics=("parallel", "parallel", "arbitrary"),
            vmem_limit_bytes=32 * 1024 * 1024),
        cost_estimate=pl.CostEstimate(flops=flops, transcendentals=0,
                                      bytes_accessed=bytes_accessed),
    )(x.astype(jnp.bfloat16), w.astype(jnp.bfloat16), scale2, shift2)

    if Cout_p != Cout:
        out = out[:, :Cout]
    return out


def conv1x1(x_nhwc, w_io, scale, shift, relu):
    """1x1 conv (+ folded BN affine + optional ReLU) via the Pallas matmul."""
    N, H, W, Cin = x_nhwc.shape
    Cout = w_io.shape[1]
    y = matmul_affine(x_nhwc.reshape(N * H * W, Cin), w_io, scale, shift, relu)
    return y.reshape(N, H, W, Cout)


# ----------------------------------------------------------------------------
# Pallas kernel 2: 3x3 conv (cls_seg head), halo-resident, no im2col
# ----------------------------------------------------------------------------
def _conv3x3_kernel(x_ref, w_ref, b_ref, o_ref):
    """3x3 conv (spatial padding already applied) for one batch element.

    x_ref: (1, H+2, W+2, C)  f32   (whole halo-padded image resident in VMEM)
    w_ref: (3, 3, C, Co)     bf16
    b_ref: (1, Co)           f32
    o_ref: (1, H, W, Co)     f32
    """
    H, W, Co = o_ref.shape[1], o_ref.shape[2], o_ref.shape[3]
    C = x_ref.shape[-1]
    bias = b_ref[...]                                         # (1, Co)
    RC = 16 if H % 16 == 0 else (8 if H % 8 == 0 else H)      # output row chunk
    for r0 in range(0, H, RC):
        acc = jnp.zeros((RC * W, Co), jnp.float32)
        for dy in range(3):
            for dx in range(3):
                patch = x_ref[0, r0 + dy:r0 + dy + RC, dx:dx + W, :]
                patch = patch.reshape(RC * W, C).astype(jnp.bfloat16)
                acc = acc + jnp.dot(patch, w_ref[dy, dx],
                                    preferred_element_type=jnp.float32)
        o_ref[0, r0:r0 + RC, :, :] = (acc + bias).reshape(RC, W, Co)


def conv3x3(x_nhwc, w_hwio, bias):
    """3x3 conv, padding=1, stride 1, via a dedicated halo-resident kernel."""
    N, H, W, C = x_nhwc.shape
    Co = w_hwio.shape[-1]
    Co_p = _pad_to_multiple(Co, 128)         # lane-dense output stores
    if Co_p != Co:
        w_hwio = jnp.pad(w_hwio, ((0, 0), (0, 0), (0, 0), (0, Co_p - Co)))
        bias = jnp.pad(bias, (0, Co_p - Co))

    xp = jnp.pad(x_nhwc, ((0, 0), (1, 1), (1, 1), (0, 0))).astype(jnp.float32)
    wb = w_hwio.astype(jnp.bfloat16)
    b2 = bias.reshape(1, Co_p).astype(jnp.float32)

    flops = 2 * N * H * W * 9 * C * Co_p
    bytes_accessed = (N * (H + 2) * (W + 2) * C * 4
                      + 9 * C * Co_p * 2 + N * H * W * Co_p * 4)

    out = pl.pallas_call(
        _conv3x3_kernel,
        out_shape=jax.ShapeDtypeStruct((N, H, W, Co_p), jnp.float32),
        grid_spec=pltpu.PrefetchScalarGridSpec(
            num_scalar_prefetch=0,
            grid=(N,),
            in_specs=[
                pl.BlockSpec((1, H + 2, W + 2, C), lambda n: (n, 0, 0, 0)),
                pl.BlockSpec((3, 3, C, Co_p), lambda n: (0, 0, 0, 0)),
                pl.BlockSpec((1, Co_p), lambda n: (0, 0)),
            ],
            out_specs=pl.BlockSpec((1, H, W, Co_p), lambda n: (n, 0, 0, 0)),
        ),
        compiler_params=pltpu.CompilerParams(
            dimension_semantics=("parallel",),
            vmem_limit_bytes=48 * 1024 * 1024),
        cost_estimate=pl.CostEstimate(flops=flops, transcendentals=0,
                                      bytes_accessed=bytes_accessed),
    )(xp, wb, b2)

    if Co_p != Co:
        out = out[..., :Co]
    return out


# ----------------------------------------------------------------------------
# Tiny glue ops (negligible FLOPs vs the conv matmuls)
# ----------------------------------------------------------------------------
def _interp_matrix(out_size, in_size):
    """Bilinear align_corners=True interpolation matrix (out_size, in_size)."""
    if out_size == 1:
        coords = np.zeros((1,), np.float64)
    else:
        coords = np.arange(out_size, dtype=np.float64) * (in_size - 1) / (out_size - 1)
    lo = np.clip(np.floor(coords).astype(np.int64), 0, in_size - 1)
    hi = np.minimum(lo + 1, in_size - 1)
    w_hi = coords - lo
    m = np.zeros((out_size, in_size), np.float32)
    m[np.arange(out_size), lo] += (1.0 - w_hi).astype(np.float32)
    m[np.arange(out_size), hi] += w_hi.astype(np.float32)
    return jnp.asarray(m)


def bilinear_resize(x_nhwc, out_h, out_w):
    N, H, W, C = x_nhwc.shape
    if (H, W) == (out_h, out_w):
        return x_nhwc
    mh = _interp_matrix(out_h, H)
    mw = _interp_matrix(out_w, W)
    return jnp.einsum('oh,pw,nhwc->nopc', mh, mw, x_nhwc)


def adaptive_max_pool(x_nhwc, out_size):
    """nn.AdaptiveMaxPool2d semantics: start=floor(i*in/out), end=ceil((i+1)*in/out)."""
    N, H, W, C = x_nhwc.shape

    def bounds(size_in, size_out):
        return [(int(np.floor(i * size_in / size_out)),
                 int(np.ceil((i + 1) * size_in / size_out)))
                for i in range(size_out)]

    hb, wb = bounds(H, out_size), bounds(W, out_size)
    rows = []
    for (h0, h1) in hb:
        cols = [jnp.max(x_nhwc[:, h0:h1, w0:w1, :], axis=(1, 2)) for (w0, w1) in wb]
        rows.append(jnp.stack(cols, axis=1))
    return jnp.stack(rows, axis=1)  # (N, out, out, C)


# ----------------------------------------------------------------------------
# Parameters (deterministic synthetic init; BN folded into scale/shift)
# ----------------------------------------------------------------------------
def _make_conv_bn_relu(key, cin, cout):
    kw, kb, kg, kbe = jax.random.split(key, 4)
    w = jax.random.normal(kw, (cin, cout), jnp.float32) * 0.02
    b = jax.random.normal(kb, (cout,), jnp.float32) * 0.01
    gamma = 1.0 + 0.01 * jax.random.normal(kg, (cout,), jnp.float32)
    beta = 0.01 * jax.random.normal(kbe, (cout,), jnp.float32)
    mean = jnp.zeros((cout,), jnp.float32)
    var = jnp.ones((cout,), jnp.float32)
    s = gamma / jnp.sqrt(var + 1e-5)
    shift = b * s + beta - mean * s
    return {'w': w, 'scale': s, 'shift': shift}


def init_params(key, num_classes):
    keys = list(jax.random.split(key, 16))
    p = {}
    # PPM branch 1x1 convs (bias, no BN): Conv2d(2048, 512, 1)
    for idx, ps in enumerate((1, 2, 3, 6)):
        kw, kb = jax.random.split(keys[idx])
        p[f'ppm{ps}_w'] = jax.random.normal(kw, (2048, 512), jnp.float32) * 0.02
        p[f'ppm{ps}_b'] = jax.random.normal(kb, (512,), jnp.float32) * 0.01
    p['ppm_final'] = _make_conv_bn_relu(keys[4], 2048 + 4 * 512, 4 * 512)   # 4096 -> 2048
    p['fuse1'] = _make_conv_bn_relu(keys[5], 1024, 1024)
    p['fuse1_'] = _make_conv_bn_relu(keys[6], 1024 + 2048, 1024)            # 3072 -> 1024
    p['fuse2'] = _make_conv_bn_relu(keys[7], 512, 512)
    p['fuse2_'] = _make_conv_bn_relu(keys[8], 1024 + 512, 512)              # 1536 -> 512
    p['fuse3'] = _make_conv_bn_relu(keys[9], 256, 256)
    p['fuse3_'] = _make_conv_bn_relu(keys[10], 512 + 256, 256)              # 768 -> 256
    p['fuse_all'] = _make_conv_bn_relu(keys[11], 2 * 2048 - 256, 512)       # 3840 -> 512
    # cls_seg: Conv2d(512, num_classes, 3, padding=1) -> HWIO weight
    kw, kb = jax.random.split(keys[12])
    p['cls_w'] = jax.random.normal(kw, (3, 3, 512, num_classes), jnp.float32) * 0.02
    p['cls_b'] = jax.random.normal(kb, (num_classes,), jnp.float32) * 0.01
    return p


# ----------------------------------------------------------------------------
# Model forward (mirrors the PyTorch module)
# ----------------------------------------------------------------------------
def _cbr(x, pr, relu=True):
    return conv1x1(x, pr['w'], pr['scale'], pr['shift'], relu)


def ppmhead(x, params):
    N, H, W, C = x.shape
    outs = []
    for ps in (1, 2, 3, 6):
        pooled = adaptive_max_pool(x, ps)
        y = conv1x1(pooled, params[f'ppm{ps}_w'],
                    jnp.ones((512,), jnp.float32), params[f'ppm{ps}_b'], relu=False)
        outs.append(bilinear_resize(y, H, W))
    outs.append(x)
    cat = jnp.concatenate(outs, axis=-1)                    # (N,H,W,4096)
    return _cbr(cat, params['ppm_final'], relu=True)        # (N,H,W,2048)


def fpnhead(feats, params):
    f1, f2, f3, f4 = feats  # strides 4, 8, 16, 32 (NHWC)
    x1 = ppmhead(f4, params)
    x = bilinear_resize(x1, x1.shape[1] * 2, x1.shape[2] * 2)
    x = jnp.concatenate([x, _cbr(f3, params['fuse1'])], axis=-1)
    x2 = _cbr(x, params['fuse1_'])
    x = bilinear_resize(x2, x2.shape[1] * 2, x2.shape[2] * 2)
    x = jnp.concatenate([x, _cbr(f2, params['fuse2'])], axis=-1)
    x3 = _cbr(x, params['fuse2_'])
    x = bilinear_resize(x3, x3.shape[1] * 2, x3.shape[2] * 2)
    x = jnp.concatenate([x, _cbr(f1, params['fuse3'])], axis=-1)
    x4 = _cbr(x, params['fuse3_'])
    h, w = x4.shape[1], x4.shape[2]
    x1u = bilinear_resize(x1, h, w)
    x2u = bilinear_resize(x2, h, w)
    x3u = bilinear_resize(x3, h, w)
    cat = jnp.concatenate([x1u, x2u, x3u, x4], axis=-1)     # (N,h,w,3840)
    return _cbr(cat, params['fuse_all'])                    # (N,h,w,512)


def upernet_forward(feats, params):
    x = fpnhead(feats, params)                                        # (N, H/4, W/4, 512)
    x = bilinear_resize(x, x.shape[1] * 4, x.shape[2] * 4)            # (N, H, W, 512)
    x = conv3x3(x, params['cls_w'], params['cls_b'])                  # (N, H, W, num_classes)
    return jnp.transpose(x, (0, 3, 1, 2))                             # NCHW like PyTorch


# ----------------------------------------------------------------------------
if __name__ == "__main__":
    num_classes = 31
    key = jax.random.PRNGKey(0)
    k_params, k1, k2, k3, k4 = jax.random.split(key, 5)

    params = init_params(k_params, num_classes)

    # Synthetic ResNet50-style feature pyramid for a 2x3x64x64 image (NHWC here).
    feats = (
        jax.random.normal(k1, (2, 16, 16, 256), jnp.float32),   # stride 4
        jax.random.normal(k2, (2, 8, 8, 512), jnp.float32),     # stride 8
        jax.random.normal(k3, (2, 4, 4, 1024), jnp.float32),    # stride 16
        jax.random.normal(k4, (2, 2, 2, 2048), jnp.float32),    # stride 32
    )

    out = upernet_forward(feats, params)
    out = jax.block_until_ready(out)
    assert out.shape == (2, num_classes, 64, 64), out.shape
    assert bool(jnp.all(jnp.isfinite(out)))
    print("KERNEL_OK")
</pallas_src>

<mosaic_0001>
module attributes {stable_mosaic.version = 11 : i64} {
  func.func @_matmul_affine_kernel(%arg0: i32, %arg1: i32, %arg2: i32, %arg3: memref<2x2048xbf16, #tpu.memory_space<vmem>>, %arg4: memref<2048x512xbf16, #tpu.memory_space<vmem>>, %arg5: memref<1x512xf32, #tpu.memory_space<vmem>>, %arg6: memref<1x512xf32, #tpu.memory_space<vmem>>, %arg7: memref<2x512xf32, #tpu.memory_space<vmem>>, %arg8: memref<2x512xf32, #tpu.memory_space<vmem>>) attributes {dimension_semantics = [#tpu.dimension_semantics<parallel>, #tpu.dimension_semantics<parallel>, #tpu.dimension_semantics<arbitrary>], iteration_bounds = array<i64: 1, 1, 1>, scalar_prefetch = 0 : i64, scratch_operands = 1 : i64, tpu.core_type = #tpu.core_type<tc>, window_params = [{transform_indices = @transform_0, window_bounds = array<i64: 2, 2048>}, {transform_indices = @transform_1, window_bounds = array<i64: 2048, 512>}, {transform_indices = @transform_2, window_bounds = array<i64: 1, 512>}, {transform_indices = @transform_3, window_bounds = array<i64: 1, 512>}, {transform_indices = @transform_4, window_bounds = array<i64: 2, 512>}]} {
    %c0_i32 = arith.constant 0 : i32
    %0 = arith.cmpi eq, %arg2, %c0_i32 : i32
    %1 = arith.extui %0 : i1 to i32
    %c0_i32_0 = arith.constant 0 : i32
    %2 = arith.cmpi ne, %1, %c0_i32_0 : i32
    scf.if %2 {
      %cst_10 = arith.constant 0.000000e+00 : f32
      %12 = vector.broadcast %cst_10 : f32 to vector<2x512xf32>
      %c0_11 = arith.constant 0 : index
      %c0_12 = arith.constant 0 : index
      %13 = vector.load %arg8[%c0_11, %c0_12] : memref<2x512xf32, #tpu.memory_space<vmem>>, vector<2x512xf32>
      tpu.vector_store %arg8[%c0_11, %c0_12], %12 {strides = array<i32>} : memref<2x512xf32, #tpu.memory_space<vmem>>, vector<2x512xf32>,
    } else {
    }
    %c0 = arith.constant 0 : index
    %c0_1 = arith.constant 0 : index
    %3 = vector.load %arg8[%c0, %c0_1] : memref<2x512xf32, #tpu.memory_space<vmem>>, vector<2x512xf32>
    %c0_2 = arith.constant 0 : index
    %c0_3 = arith.constant 0 : index
    %4 = vector.load %arg3[%c0_2, %c0_3] : memref<2x2048xbf16, #tpu.memory_space<vmem>>, vector<2x2048xbf16>
    %c0_4 = arith.constant 0 : index
    %c0_5 = arith.constant 0 : index
    %5 = vector.load %arg4[%c0_4, %c0_5] : memref<2048x512xbf16, #tpu.memory_space<vmem>>, vector<2048x512xbf16>
    %cst = arith.constant dense<0.000000e+00> : vector<2x512xf32>
    %6 = tpu.matmul %4, %5, %cst {dimension_numbers = #tpu.dot_dimension_numbers<[1], [0], [0], [1], [0, 0, 1, 1], [], []>} : vector<2x2048xbf16>, vector<2048x512xbf16>, vector<2x512xf32> -> vector<2x512xf32>
    %7 = arith.addf %3, %6 : vector<2x512xf32>
    %c0_6 = arith.constant 0 : index
    %c0_7 = arith.constant 0 : index
    %8 = vector.load %arg8[%c0_6, %c0_7] : memref<2x512xf32, #tpu.memory_space<vmem>>, vector<2x512xf32>
    tpu.vector_store %arg8[%c0_6, %c0_7], %7 {strides = array<i32>} : memref<2x512xf32, #tpu.memory_space<vmem>>, vector<2x512xf32>,
    %c0_i32_8 = arith.constant 0 : i32
    %9 = arith.cmpi eq, %arg2, %c0_i32_8 : i32
    %10 = arith.extui %9 : i1 to i32
    %c0_i32_9 = arith.constant 0 : i32
    %11 = arith.cmpi ne, %10, %c0_i32_9 : i32
    scf.if %11 {
      %c0_10 = arith.constant 0 : index
      %c0_11 = arith.constant 0 : index
      %12 = vector.load %arg8[%c0_10, %c0_11] : memref<2x512xf32, #tpu.memory_space<vmem>>, vector<2x512xf32>
      %c0_12 = arith.constant 0 : index
      %c0_13 = arith.constant 0 : index
      %13 = vector.load %arg5[%c0_12, %c0_13] : memref<1x512xf32, #tpu.memory_space<vmem>>, vector<1x512xf32>
      %14 = vector.broadcast %13 : vector<1x512xf32> to vector<2x512xf32>
      %15 = arith.mulf %12, %14 : vector<2x512xf32>
      %c0_14 = arith.constant 0 : index
      %c0_15 = arith.constant 0 : index
      %16 = vector.load %arg6[%c0_14, %c0_15] : memref<1x512xf32, #tpu.memory_space<vmem>>, vector<1x512xf32>
      %17 = vector.broadcast %16 : vector<1x512xf32> to vector<2x512xf32>
      %18 = arith.addf %15, %17 : vector<2x512xf32>
      %c0_16 = arith.constant 0 : index
      %c0_17 = arith.constant 0 : index
      %19 = vector.load %arg7[%c0_16, %c0_17] : memref<2x512xf32, #tpu.memory_space<vmem>>, vector<2x512xf32>
      tpu.vector_store %arg7[%c0_16, %c0_17], %18 {strides = array<i32>} : memref<2x512xf32, #tpu.memory_space<vmem>>, vector<2x512xf32>,
    } else {
    }
    return
  }
  func.func @transform_0(%arg0: i32, %arg1: i32, %arg2: i32) -> (i32, i32) {
    %c0_i32 = arith.constant 0 : i32
    return %arg0, %arg2 : i32, i32
  }
  func.func @transform_1(%arg0: i32, %arg1: i32, %arg2: i32) -> (i32, i32) {
    %c0_i32 = arith.constant 0 : i32
    return %arg2, %arg1 : i32, i32
  }
  func.func @transform_2(%arg0: i32, %arg1: i32, %arg2: i32) -> (i32, i32) {
    %c0_i32 = arith.constant 0 : i32
    %c0_i32_0 = arith.constant 0 : i32
    return %c0_i32, %arg1 : i32, i32
  }
  func.func @transform_3(%arg0: i32, %arg1: i32, %arg2: i32) -> (i32, i32) {
    %c0_i32 = arith.constant 0 : i32
    %c0_i32_0 = arith.constant 0 : i32
    return %c0_i32, %arg1 : i32, i32
  }
  func.func @transform_4(%arg0: i32, %arg1: i32, %arg2: i32) -> (i32, i32) {
    %c0_i32 = arith.constant 0 : i32
    return %arg0, %arg1 : i32, i32
  }
}

</mosaic_0001>

<llo_original>
// kernel: tpu_custom_call.1
$region0: #{tpu_custom_call.1}
  #allocation0 [shape = 'u32[]', space=smem, size = 0x4, offset = 0x4, fixed_abs, tag = 'smem constant byte address 0x4 - core index']
  #allocation1 [shape = 'u32[144,128]{1,0:T(1,128)}', space=vmem, size = 0x12000, scoped, tag = 'internal scratch']
  #allocation2 [shape = 'f32[2,512]{1,0:T(2,128)}', space=vmem, size = 0x1000, scoped, tag = 'scratch operand']
  %s0 = inlined_call_operand.hbm [shape: bf16[2,2048], index: 0, kind: input, shape index: {}]
  %s1 = inlined_call_operand.hbm [shape: bf16[2048,512], index: 1, kind: input, shape index: {}]
  %s2 = inlined_call_operand.hbm [shape: f32[1,512], index: 2, kind: input, shape index: {}]
  %s3 = inlined_call_operand.hbm [shape: f32[1,512], index: 3, kind: input, shape index: {}]
  %s4 = inlined_call_operand.hbm [shape: f32[2,512], index: 4, kind: output, shape index: {}]
  %s5 = sld [smem:[#allocation0]]
  $region50: #{tpu_custom_call.1} parent=0
    _
  %s7 = ssub.s32 1, %s5
  %s8 = scalar_select 0, %s7, %s5
  $region1: #{tpu_custom_call.1} parent=0
    #allocation3 [shape = 'u8[8192]{0}', space=vmem, size = 0x2000, scoped, tag = 'input window, operand 0, single buffered']
    #allocation4 [shape = 's32[1]{0}', space=sflag, size = 0x4, scoped, tag = 'scoped memory for tpu_custom_call.1']
    #allocation5 [shape = 's32[1]{0}', space=sflag, size = 0x4, scoped, tag = 'scoped memory for tpu_custom_call.1']
    #allocation6 [shape = 'u8[2097152]{0}', space=vmem, size = 0x200000, scoped, tag = 'input window, operand 1, single buffered']
    #allocation7 [shape = 's32[1]{0}', space=sflag, size = 0x4, scoped, tag = 'scoped memory for tpu_custom_call.1']
    #allocation8 [shape = 'u8[2048]{0}', space=vmem, size = 0x800, scoped, tag = 'input window, operand 2, single buffered']
    #allocation9 [shape = 'u8[2048]{0}', space=vmem, size = 0x800, scoped, tag = 'input window, operand 3, single buffered']
    #allocation10 [shape = 's32[1]{0}', space=sflag, size = 0x4, scoped, tag = 'scoped memory for tpu_custom_call.1']
    #allocation11 [shape = 'u8[4096]{0}', space=vmem, size = 0x1000, scoped, tag = 'output window, operand 0, single buffered']
    %9 = vsyncpa [#allocation4], 0
    %10 = vsyncpa [#allocation7], 0
    %11 = vsyncpa [#allocation10], 0
    %12 = vsyncpa [#allocation5], 0
    // Predicated region
    $region2: #{tpu_custom_call.1} parent=1 // pred_check
      _
    $region3: #{tpu_custom_call.1} parent=1 // pred_check_branch
      %14 = sbr.rel (0) target = $region5
    $region4: #{tpu_custom_call.1} parent=1 // pred_region
      %s16 = ssub.s32 256, 256
      %17 = vsyncadd [#allocation4], %s16
      %s19 = sshll.u32 [#allocation3], 4
      %s20 = int_to_ptr.vmem [resolvable:$true] %s19
      %22 = dma.hbm_to_vmem [thread:$0]  %s0, 256, %s20, [#allocation4]
    $region5: #{tpu_custom_call.1} parent=1 // pred_fallthru
      _
    // Predicated region
    $region6: #{tpu_custom_call.1} parent=1 // pred_check
      _
    $region7: #{tpu_custom_call.1} parent=1 // pred_check_branch
      %24 = sbr.rel (0) target = $region9
    $region8: #{tpu_custom_call.1} parent=1 // pred_region
      %s26 = ssub.s32 65536, 65536
      %27 = vsyncadd [#allocation7], %s26
      %s28 = sshll.u32 [#allocation6], 4
      %s29 = int_to_ptr.vmem [resolvable:$true] %s28
      %34 = dma.hbm_to_vmem [thread:$0]  %s1, 65536, %s29, [#allocation7], 256, 256, 16
    $region9: #{tpu_custom_call.1} parent=1 // pred_fallthru
      _
    // Predicated region
    $region10: #{tpu_custom_call.1} parent=1 // pred_check
      _
    $region11: #{tpu_custom_call.1} parent=1 // pred_check_branch
      %36 = sbr.rel (0) target = $region13
    $region12: #{tpu_custom_call.1} parent=1 // pred_region
      %s38 = ssub.s32 64, 64
      %39 = vsyncadd [#allocation7], %s38
      %s41 = sshll.u32 [#allocation8], 4
      %s42 = int_to_ptr.vmem [resolvable:$true] %s41
      %44 = dma.hbm_to_vmem [thread:$0]  %s2, 64, %s42, [#allocation7]
    $region13: #{tpu_custom_call.1} parent=1 // pred_fallthru
      _
    // Predicated region
    $region14: #{tpu_custom_call.1} parent=1 // pred_check
      _
    $region15: #{tpu_custom_call.1} parent=1 // pred_check_branch
      %46 = sbr.rel (0) target = $region17
    $region16: #{tpu_custom_call.1} parent=1 // pred_region
      %s48 = ssub.s32 64, 64
      %49 = vsyncadd [#allocation10], %s48
      %s51 = sshll.u32 [#allocation9], 4
      %s52 = int_to_ptr.vmem [resolvable:$true] %s51
      %54 = dma.hbm_to_vmem [thread:$0]  %s3, 64, %s52, [#allocation10]
    $region17: #{tpu_custom_call.1} parent=1 // pred_fallthru
      _
    // Predicated region
    $region18: #{tpu_custom_call.1} parent=1 // pred_check
      _
    $region19: #{tpu_custom_call.1} parent=1 // pred_check_branch
      %56 = sbr.rel (0) target = $region21
    $region20: #{tpu_custom_call.1} parent=1 // pred_region
      %57 = dma.done [#allocation4], 256
    $region21: #{tpu_custom_call.1} parent=1 // pred_fallthru
      _
    // Predicated region
    $region22: #{tpu_custom_call.1} parent=1 // pred_check
      _
    $region23: #{tpu_custom_call.1} parent=1 // pred_check_branch
      %59 = sbr.rel (0) target = $region25
    $region24: #{tpu_custom_call.1} parent=1 // pred_region
      %60 = dma.done [#allocation7], 65536
    $region25: #{tpu_custom_call.1} parent=1 // pred_fallthru
      _
    // Predicated region
    $region26: #{tpu_custom_call.1} parent=1 // pred_check
      _
    $region27: #{tpu_custom_call.1} parent=1 // pred_check_branch
      %62 = sbr.rel (0) target = $region29
    $region28: #{tpu_custom_call.1} parent=1 // pred_region
      %63 = dma.done [#allocation7], 64
    $region29: #{tpu_custom_call.1} parent=1 // pred_fallthru
      _
    // Predicated region
    $region30: #{tpu_custom_call.1} parent=1 // pred_check
      _
    $region31: #{tpu_custom_call.1} parent=1 // pred_check_branch
      %65 = sbr.rel (0) target = $region33
    $region32: #{tpu_custom_call.1} parent=1 // pred_region
      %66 = dma.done [#allocation10], 64
    $region33: #{tpu_custom_call.1} parent=1 // pred_fallthru
      _
    %p67 = scmp.eq.s32.totalorder 0, 0
    // Predicated region
    $region34: #{tpu_custom_call.1} parent=1 // pred_check
      %p68 = pneg %p67
    $region35: #{tpu_custom_call.1} parent=1 // pred_check_branch
      %70 = sbr.rel (%p68) target = $region37
    $region36: #{tpu_custom_call.1} parent=1 // pred_region
      %71 = vst [vmem:[#allocation2] sm:$0xff] 0.0
    $region37: #{tpu_custom_call.1} parent=1 // pred_fallthru
      _
    %v72 = vld [vmem:[#allocation2] sm:$0xff]
    %v73 = vld [vmem:[#allocation3] sm:$0xff]
    %v74 = vld [vmem:[#allocation3 + $0x8] sm:$0xff]
    %v75 = vld [vmem:[#allocation6] sm:$0xff]
    %v76 = vld [vmem:[#allocation6 + $0x8] sm:$0xff]
    %v77 = vld [vmem:[#allocation6 + $0x10] sm:$0xff]
    %v78 = vld [vmem:[#allocation6 + $0x18] sm:$0xff]
    %v79 = vld [vmem:[#allocation6 + $0x20] sm:$0xff]
    %v80 = vld [vmem:[#allocation6 + $0x28] sm:$0xff]
    %v81 = vld [vmem:[#allocation6 + $0x30] sm:$0xff]
    %v82 = vld [vmem:[#allocation6 + $0x38] sm:$0xff]
    %v83 = vld [vmem:[#allocation6 + $0x40] sm:$0xff]
    %v84 = vld [vmem:[#allocation6 + $0x48] sm:$0xff]
    %v85 = vld [vmem:[#allocation6 + $0x50] sm:$0xff]
    %v86 = vld [vmem:[#allocation6 + $0x58] sm:$0xff]
    %v87 = vld [vmem:[#allocation6 + $0x60] sm:$0xff]
    %v88 = vld [vmem:[#allocation6 + $0x68] sm:$0xff]
    %v89 = vld [vmem:[#allocation6 + $0x70] sm:$0xff]
    %v90 = vld [vmem:[#allocation6 + $0x78] sm:$0xff]
    %v91 = vld [vmem:[#allocation6 + $0x80] sm:$0xff]
    %v92 = vld [vmem:[#allocation6 + $0x88] sm:$0xff]
    %v93 = vld [vmem:[#allocation6 + $0x90] sm:$0xff]
    %v94 = vld [vmem:[#allocation6 + $0x98] sm:$0xff]
    %v95 = vld [vmem:[#allocation6 + $0xa0] sm:$0xff]
    %v96 = vld [vmem:[#allocation6 + $0xa8] sm:$0xff]
    %v97 = vld [vmem:[#allocation6 + $0xb0] sm:$0xff]
    %v98 = vld [vmem:[#allocation6 + $0xb8] sm:$0xff]
    %v99 = vld [vmem:[#allocation6 + $0xc0] sm:$0xff]
    %v100 = vld [vmem:[#allocation6 + $0xc8] sm:$0xff]
    %v101 = vld [vmem:[#allocation6 + $0xd0] sm:$0xff]
    %v102 = vld [vmem:[#allocation6 + $0xd8] sm:$0xff]
    %v103 = vld [vmem:[#allocation6 + $0xe0] sm:$0xff]
    %v104 = vld [vmem:[#allocation6 + $0xe8] sm:$0xff]
    %v105 = vld [vmem:[#allocation6 + $0xf0] sm:$0xff]
    %v106 = vld [vmem:[#allocation6 + $0xf8] sm:$0xff]
    %v107 = vld [vmem:[#allocation6 + $0x100] sm:$0xff]
    %v108 = vld [vmem:[#allocation6 + $0x108] sm:$0xff]
    %v109 = vld [vmem:[#allocation6 + $0x110] sm:$0xff]
    %v110 = vld [vmem:[#allocation6 + $0x118] sm:$0xff]
    %v111 = vld [vmem:[#allocation6 + $0x120] sm:$0xff]
    %v112 = vld [vmem:[#allocation6 + $0x128] sm:$0xff]
    %v113 = vld [vmem:[#allocation6 + $0x130] sm:$0xff]
    %v114 = vld [vmem:[#allocation6 + $0x138] sm:$0xff]
    %v115 = vld [vmem:[#allocation6 + $0x140] sm:$0xff]
    %v116 = vld [vmem:[#allocation6 + $0x148] sm:$0xff]
    %v117 = vld [vmem:[#allocation6 + $0x150] sm:$0xff]
    %v118 = vld [vmem:[#allocation6 + $0x158] sm:$0xff]
    %v119 = vld [vmem:[#allocation6 + $0x160] sm:$0xff]
    %v120 = vld [vmem:[#allocation6 + $0x168] sm:$0xff]
    %v121 = vld [vmem:[#allocation6 + $0x170] sm:$0xff]
    %v122 = vld [vmem:[#allocation6 + $0x178] sm:$0xff]
    %v123 = vld [vmem:[#allocation6 + $0x180] sm:$0xff]
    %v124 = vld [vmem:[#allocation6 + $0x188] sm:$0xff]
    %v125 = vld [vmem:[#allocation6 + $0x190] sm:$0xff]
    %v126 = vld [vmem:[#allocation6 + $0x198] sm:$0xff]
    %v127 = vld [vmem:[#allocation6 + $0x1a0] sm:$0xff]
    %v128 = vld [vmem:[#allocation6 + $0x1a8] sm:$0xff]
    %v129 = vld [vmem:[#allocation6 + $0x1b0] sm:$0xff]
    %v130 = vld [vmem:[#allocation6 + $0x1b8] sm:$0xff]
    %v131 = vld [vmem:[#allocation6 + $0x1c0] sm:$0xff]
    %v132 = vld [vmem:[#allocation6 + $0x1c8] sm:$0xff]
    %v133 = vld [vmem:[#allocation6 + $0x1d0] sm:$0xff]
    %v134 = vld [vmem:[#allocation6 + $0x1d8] sm:$0xff]
    %v135 = vld [vmem:[#allocation6 + $0x1e0] sm:$0xff]
    %v136 = vld [vmem:[#allocation6 + $0x1e8] sm:$0xff]
    %v137 = vld [vmem:[#allocation6 + $0x1f0] sm:$0xff]
    %v138 = vld [vmem:[#allocation6 + $0x1f8] sm:$0xff]
    %v139 = vld [vmem:[#allocation6 + $0x200] sm:$0xff]
    %v140 = vld [vmem:[#allocation6 + $0x208] sm:$0xff]
    %v141 = vld [vmem:[#allocation6 + $0x210] sm:$0xff]
    %v142 = vld [vmem:[#allocation6 + $0x218] sm:$0xff]
    %v143 = vld [vmem:[#allocation6 + $0x220] sm:$0xff]
    %v144 = vld [vmem:[#allocation6 + $0x228] sm:$0xff]
    %v145 = vld [vmem:[#allocation6 + $0x230] sm:$0xff]
    %v146 = vld [vmem:[#allocation6 + $0x238] sm:$0xff]
    %v147 = vld [vmem:[#allocation6 + $0x240] sm:$0xff]
    %v148 = vld [vmem:[#allocation6 + $0x248] sm:$0xff]
    %v149 = vld [vmem:[#allocation6 + $0x250] sm:$0xff]
    %v150 = vld [vmem:[#allocation6 + $0x258] sm:$0xff]
    %v151 = vld [vmem:[#allocation6 + $0x260] sm:$0xff]
    %v152 = vld [vmem:[#allocation6 + $0x268] sm:$0xff]
    %v153 = vld [vmem:[#allocation6 + $0x270] sm:$0xff]
    %v154 = vld [vmem:[#allocation6 + $0x278] sm:$0xff]
    %v155 = vld [vmem:[#allocation6 + $0x280] sm:$0xff]
    %v156 = vld [vmem:[#allocation6 + $0x288] sm:$0xff]
    %v157 = vld [vmem:[#allocation6 + $0x290] sm:$0xff]
    %v158 = vld [vmem:[#allocation6 + $0x298] sm:$0xff]
    %v159 = vld [vmem:[#allocation6 + $0x2a0] sm:$0xff]
    %v160 = vld [vmem:[#allocation6 + $0x2a8] sm:$0xff]
    %v161 = vld [vmem:[#allocation6 + $0x2b0] sm:$0xff]
    %v162 = vld [vmem:[#allocation6 + $0x2b8] sm:$0xff]
    %v163 = vld [vmem:[#allocation6 + $0x2c0] sm:$0xff]
    %v164 = vld [vmem:[#allocation6 + $0x2c8] sm:$0xff]
    %v165 = vld [vmem:[#allocation6 + $0x2d0] sm:$0xff]
    %v166 = vld [vmem:[#allocation6 + $0x2d8] sm:$0xff]
    %v167 = vld [vmem:[#allocation6 + $0x2e0] sm:$0xff]
    %v168 = vld [vmem:[#allocation6 + $0x2e8] sm:$0xff]
    %v169 = vld [vmem:[#allocation6 + $0x2f0] sm:$0xff]
    %v170 = vld [vmem:[#allocation6 + $0x2f8] sm:$0xff]
    %v171 = vld [vmem:[#allocation6 + $0x300] sm:$0xff]
    %v172 = vld [vmem:[#allocation6 + $0x308] sm:$0xff]
    %v173 = vld [vmem:[#allocation6 + $0x310] sm:$0xff]
    %v174 = vld [vmem:[#allocation6 + $0x318] sm:$0xff]
    %v175 = vld [vmem:[#allocation6 + $0x320] sm:$0xff]
    %v176 = vld [vmem:[#allocation6 + $0x328] sm:$0xff]
    %v177 = vld [vmem:[#allocation6 + $0x330] sm:$0xff]
    %v178 = vld [vmem:[#allocation6 + $0x338] sm:$0xff]
    %v179 = vld [vmem:[#allocation6 + $0x340] sm:$0xff]
    %v180 = vld [vmem:[#allocation6 + $0x348] sm:$0xff]
    %v181 = vld [vmem:[#allocation6 + $0x350] sm:$0xff]
    %v182 = vld [vmem:[#allocation6 + $0x358] sm:$0xff]
    %v183 = vld [vmem:[#allocation6 + $0x360] sm:$0xff]
    %v184 = vld [vmem:[#allocation6 + $0x368] sm:$0xff]
    %v185 = vld [vmem:[#allocation6 + $0x370] sm:$0xff]
    %v186 = vld [vmem:[#allocation6 + $0x378] sm:$0xff]
    %v187 = vld [vmem:[#allocation6 + $0x380] sm:$0xff]
    %v188 = vld [vmem:[#allocation6 + $0x388] sm:$0xff]
    %v189 = vld [vmem:[#allocation6 + $0x390] sm:$0xff]
    %v190 = vld [vmem:[#allocation6 + $0x398] sm:$0xff]
    %v191 = vld [vmem:[#allocation6 + $0x3a0] sm:$0xff]
    %v192 = vld [vmem:[#allocation6 + $0x3a8] sm:$0xff]
    %v193 = vld [vmem:[#allocation6 + $0x3b0] sm:$0xff]
    %v194 = vld [vmem:[#allocation6 + $0x3b8] sm:$0xff]
    %v195 = vld [vmem:[#allocation6 + $0x3c0] sm:$0xff]
    %v196 = vld [vmem:[#allocation6 + $0x3c8] sm:$0xff]
    %v197 = vld [vmem:[#allocation6 + $0x3d0] sm:$0xff]
    %v198 = vld [vmem:[#allocation6 + $0x3d8] sm:$0xff]
    %v199 = vld [vmem:[#allocation6 + $0x3e0] sm:$0xff]
    %v200 = vld [vmem:[#allocation6 + $0x3e8] sm:$0xff]
    %v201 = vld [vmem:[#allocation6 + $0x3f0] sm:$0xff]
    %v202 = vld [vmem:[#allocation6 + $0x3f8] sm:$0xff]
    %v203 = vld [vmem:[#allocation6 + $0x400] sm:$0xff]
    %v204 = vld [vmem:[#allocation6 + $0x408] sm:$0xff]
    %v205 = vld [vmem:[#allocation6 + $0x410] sm:$0xff]
    %v206 = vld [vmem:[#allocation6 + $0x418] sm:$0xff]
    %v207 = vld [vmem:[#allocation6 + $0x420] sm:$0xff]
    %v208 = vld [vmem:[#allocation6 + $0x428] sm:$0xff]
    %v209 = vld [vmem:[#allocation6 + $0x430] sm:$0xff]
    %v210 = vld [vmem:[#allocation6 + $0x438] sm:$0xff]
    %v211 = vld [vmem:[#allocation6 + $0x440] sm:$0xff]
    %v212 = vld [vmem:[#allocation6 + $0x448] sm:$0xff]
    %v213 = vld [vmem:[#allocation6 + $0x450] sm:$0xff]
    %v214 = vld [vmem:[#allocation6 + $0x458] sm:$0xff]
    %v215 = vld [vmem:[#allocation6 + $0x460] sm:$0xff]
    %v216 = vld [vmem:[#allocation6 + $0x468] sm:$0xff]
    %v217 = vld [vmem:[#allocation6 + $0x470] sm:$0xff]
    %v218 = vld [vmem:[#allocation6 + $0x478] sm:$0xff]
    %v219 = vld [vmem:[#allocation6 + $0x480] sm:$0xff]
    %v220 = vld [vmem:[#allocation6 + $0x488] sm:$0xff]
    %v221 = vld [vmem:[#allocation6 + $0x490] sm:$0xff]
    %v222 = vld [vmem:[#allocation6 + $0x498] sm:$0xff]
    %v223 = vld [vmem:[#allocation6 + $0x4a0] sm:$0xff]
    %v224 = vld [vmem:[#allocation6 + $0x4a8] sm:$0xff]
    %v225 = vld [vmem:[#allocation6 + $0x4b0] sm:$0xff]
    %v226 = vld [vmem:[#allocation6 + $0x4b8] sm:$0xff]
    %v227 = vld [vmem:[#allocation6 + $0x4c0] sm:$0xff]
    %v228 = vld [vmem:[#allocation6 + $0x4c8] sm:$0xff]
    %v229 = vld [vmem:[#allocation6 + $0x4d0] sm:$0xff]
    %v230 = vld [vmem:[#allocation6 + $0x4d8] sm:$0xff]
    %v231 = vld [vmem:[#allocation6 + $0x4e0] sm:$0xff]
    %v232 = vld [vmem:[#allocation6 + $0x4e8] sm:$0xff]
    %v233 = vld [vmem:[#allocation6 + $0x4f0] sm:$0xff]
    %v234 = vld [vmem:[#allocation6 + $0x4f8] sm:$0xff]
    %v235 = vld [vmem:[#allocation6 + $0x500] sm:$0xff]
    %v236 = vld [vmem:[#allocation6 + $0x508] sm:$0xff]
    %v237 = vld [vmem:[#allocation6 + $0x510] sm:$0xff]
    %v238 = vld [vmem:[#allocation6 + $0x518] sm:$0xff]
    %v239 = vld [vmem:[#allocation6 + $0x520] sm:$0xff]
    %v240 = vld [vmem:[#allocation6 + $0x528] sm:$0xff]
    %v241 = vld [vmem:[#allocation6 + $0x530] sm:$0xff]
    %v242 = vld [vmem:[#allocation6 + $0x538] sm:$0xff]
    %v243 = vld [vmem:[#allocation6 + $0x540] sm:$0xff]
    %v244 = vld [vmem:[#allocation6 + $0x548] sm:$0xff]
    %v245 = vld [vmem:[#allocation6 + $0x550] sm:$0xff]
    %v246 = vld [vmem:[#allocation6 + $0x558] sm:$0xff]
    %v247 = vld [vmem:[#allocation6 + $0x560] sm:$0xff]
    %v248 = vld [vmem:[#allocation6 + $0x568] sm:$0xff]
    %v249 = vld [vmem:[#allocation6 + $0x570] sm:$0xff]
    %v250 = vld [vmem:[#allocation6 + $0x578] sm:$0xff]
    %v251 = vld [vmem:[#allocation6 + $0x580] sm:$0xff]
    %v252 = vld [vmem:[#allocation6 + $0x588] sm:$0xff]
    %v253 = vld [vmem:[#allocation6 + $0x590] sm:$0xff]
    %v254 = vld [vmem:[#allocation6 + $0x598] sm:$0xff]
    %v255 = vld [vmem:[#allocation6 + $0x5a0] sm:$0xff]
    %v256 = vld [vmem:[#allocation6 + $0x5a8] sm:$0xff]
    %v257 = vld [vmem:[#allocation6 + $0x5b0] sm:$0xff]
    %v258 = vld [vmem:[#allocation6 + $0x5b8] sm:$0xff]
    %v259 = vld [vmem:[#allocation6 + $0x5c0] sm:$0xff]
    %v260 = vld [vmem:[#allocation6 + $0x5c8] sm:$0xff]
    %v261 = vld [vmem:[#allocation6 + $0x5d0] sm:$0xff]
    %v262 = vld [vmem:[#allocation6 + $0x5d8] sm:$0xff]
    %v263 = vld [vmem:[#allocation6 + $0x5e0] sm:$0xff]
    %v264 = vld [vmem:[#allocation6 + $0x5e8] sm:$0xff]
    %v265 = vld [vmem:[#allocation6 + $0x5f0] sm:$0xff]
    %v266 = vld [vmem:[#allocation6 + $0x5f8] sm:$0xff]
    %v267 = vld [vmem:[#allocation6 + $0x600] sm:$0xff]
    %v268 = vld [vmem:[#allocation6 + $0x608] sm:$0xff]
    %v269 = vld [vmem:[#allocation6 + $0x610] sm:$0xff]
    %v270 = vld [vmem:[#allocation6 + $0x618] sm:$0xff]
    %v271 = vld [vmem:[#allocation6 + $0x620] sm:$0xff]
    %v272 = vld [vmem:[#allocation6 + $0x628] sm:$0xff]
    %v273 = vld [vmem:[#allocation6 + $0x630] sm:$0xff]
    %v274 = vld [vmem:[#allocation6 + $0x638] sm:$0xff]
    %v275 = vld [vmem:[#allocation6 + $0x640] sm:$0xff]
    %v276 = vld [vmem:[#allocation6 + $0x648] sm:$0xff]
    %v277 = vld [vmem:[#allocation6 + $0x650] sm:$0xff]
    %v278 = vld [vmem:[#allocation6 + $0x658] sm:$0xff]
    %v279 = vld [vmem:[#allocation6 + $0x660] sm:$0xff]
    %v280 = vld [vmem:[#allocation6 + $0x668] sm:$0xff]
    %v281 = vld [vmem:[#allocation6 + $0x670] sm:$0xff]
    %v282 = vld [vmem:[#allocation6 + $0x678] sm:$0xff]
    %v283 = vld [vmem:[#allocation6 + $0x680] sm:$0xff]
    %v284 = vld [vmem:[#allocation6 + $0x688] sm:$0xff]
    %v285 = vld [vmem:[#allocation6 + $0x690] sm:$0xff]
    %v286 = vld [vmem:[#allocation6 + $0x698] sm:$0xff]
    %v287 = vld [vmem:[#allocation6 + $0x6a0] sm:$0xff]
    %v288 = vld [vmem:[#allocation6 + $0x6a8] sm:$0xff]
    %v289 = vld [vmem:[#allocation6 + $0x6b0] sm:$0xff]
    %v290 = vld [vmem:[#allocation6 + $0x6b8] sm:$0xff]
    %v291 = vld [vmem:[#allocation6 + $0x6c0] sm:$0xff]
    %v292 = vld [vmem:[#allocation6 + $0x6c8] sm:$0xff]
    %v293 = vld [vmem:[#allocation6 + $0x6d0] sm:$0xff]
    %v294 = vld [vmem:[#allocation6 + $0x6d8] sm:$0xff]
    %v295 = vld [vmem:[#allocation6 + $0x6e0] sm:$0xff]
    %v296 = vld [vmem:[#allocation6 + $0x6e8] sm:$0xff]
    %v297 = vld [vmem:[#allocation6 + $0x6f0] sm:$0xff]
    %v298 = vld [vmem:[#allocation6 + $0x6f8] sm:$0xff]
    %v299 = vld [vmem:[#allocation6 + $0x700] sm:$0xff]
    %v300 = vld [vmem:[#allocation6 + $0x708] sm:$0xff]
    %v301 = vld [vmem:[#allocation6 + $0x710] sm:$0xff]
    %v302 = vld [vmem:[#allocation6 + $0x718] sm:$0xff]
    %v303 = vld [vmem:[#allocation6 + $0x720] sm:$0xff]
    %v304 = vld [vmem:[#allocation6 + $0x728] sm:$0xff]
    %v305 = vld [vmem:[#allocation6 + $0x730] sm:$0xff]
    %v306 = vld [vmem:[#allocation6 + $0x738] sm:$0xff]
    %v307 = vld [vmem:[#allocation6 + $0x740] sm:$0xff]
    %v308 = vld [vmem:[#allocation6 + $0x748] sm:$0xff]
    %v309 = vld [vmem:[#allocation6 + $0x750] sm:$0xff]
    %v310 = vld [vmem:[#allocation6 + $0x758] sm:$0xff]
    %v311 = vld [vmem:[#allocation6 + $0x760] sm:$0xff]
    %v312 = vld [vmem:[#allocation6 + $0x768] sm:$0xff]
    %v313 = vld [vmem:[#allocation6 + $0x770] sm:$0xff]
    %v314 = vld [vmem:[#allocation6 + $0x778] sm:$0xff]
    %v315 = vld [vmem:[#allocation6 + $0x780] sm:$0xff]
    %v316 = vld [vmem:[#allocation6 + $0x788] sm:$0xff]
    %v317 = vld [vmem:[#allocation6 + $0x790] sm:$0xff]
    %v318 = vld [vmem:[#allocation6 + $0x798] sm:$0xff]
    %v319 = vld [vmem:[#allocation6 + $0x7a0] sm:$0xff]
    %v320 = vld [vmem:[#allocation6 + $0x7a8] sm:$0xff]
    %v321 = vld [vmem:[#allocation6 + $0x7b0] sm:$0xff]
    %v322 = vld [vmem:[#allocation6 + $0x7b8] sm:$0xff]
    %v323 = vld [vmem:[#allocation6 + $0x7c0] sm:$0xff]
    %v324 = vld [vmem:[#allocation6 + $0x7c8] sm:$0xff]
    %v325 = vld [vmem:[#allocation6 + $0x7d0] sm:$0xff]
    %v326 = vld [vmem:[#allocation6 + $0x7d8] sm:$0xff]
    %v327 = vld [vmem:[#allocation6 + $0x7e0] sm:$0xff]
    %v328 = vld [vmem:[#allocation6 + $0x7e8] sm:$0xff]
    %v329 = vld [vmem:[#allocation6 + $0x7f0] sm:$0xff]
    %v330 = vld [vmem:[#allocation6 + $0x7f8] sm:$0xff]
    %v331 = vld [vmem:[#allocation6 + $0x800] sm:$0xff]
    %v332 = vld [vmem:[#allocation6 + $0x808] sm:$0xff]
    %v333 = vld [vmem:[#allocation6 + $0x810] sm:$0xff]
    %v334 = vld [vmem:[#allocation6 + $0x818] sm:$0xff]
    %v335 = vld [vmem:[#allocation6 + $0x820] sm:$0xff]
    %v336 = vld [vmem:[#allocation6 + $0x828] sm:$0xff]
    %v337 = vld [vmem:[#allocation6 + $0x830] sm:$0xff]
    %v338 = vld [vmem:[#allocation6 + $0x838] sm:$0xff]
    %v339 = vld [vmem:[#allocation6 + $0x840] sm:$0xff]
    %v340 = vld [vmem:[#allocation6 + $0x848] sm:$0xff]
    %v341 = vld [vmem:[#allocation6 + $0x850] sm:$0xff]
    %v342 = vld [vmem:[#allocation6 + $0x858] sm:$0xff]
    %v343 = vld [vmem:[#allocation6 + $0x860] sm:$0xff]
    %v344 = vld [vmem:[#allocation6 + $0x868] sm:$0xff]
    %v345 = vld [vmem:[#allocation6 + $0x870] sm:$0xff]
    %v346 = vld [vmem:[#allocation6 + $0x878] sm:$0xff]
    %v347 = vld [vmem:[#allocation6 + $0x880] sm:$0xff]
    %v348 = vld [vmem:[#allocation6 + $0x888] sm:$0xff]
    %v349 = vld [vmem:[#allocation6 + $0x890] sm:$0xff]
    %v350 = vld [vmem:[#allocation6 + $0x898] sm:$0xff]
    %v351 = vld [vmem:[#allocation6 + $0x8a0] sm:$0xff]
    %v352 = vld [vmem:[#allocation6 + $0x8a8] sm:$0xff]
    %v353 = vld [vmem:[#allocation6 + $0x8b0] sm:$0xff]
    %v354 = vld [vmem:[#allocation6 + $0x8b8] sm:$0xff]
    %v355 = vld [vmem:[#allocation6 + $0x8c0] sm:$0xff]
    %v356 = vld [vmem:[#allocation6 + $0x8c8] sm:$0xff]
    %v357 = vld [vmem:[#allocation6 + $0x8d0] sm:$0xff]
    %v358 = vld [vmem:[#allocation6 + $0x8d8] sm:$0xff]
    %v359 = vld [vmem:[#allocation6 + $0x8e0] sm:$0xff]
    %v360 = vld [vmem:[#allocation6 + $0x8e8] sm:$0xff]
    %v361 = vld [vmem:[#allocation6 + $0x8f0] sm:$0xff]
    %v362 = vld [vmem:[#allocation6 + $0x8f8] sm:$0xff]
    %v363 = vld [vmem:[#allocation6 + $0x900] sm:$0xff]
    %v364 = vld [vmem:[#allocation6 + $0x908] sm:$0xff]
    %v365 = vld [vmem:[#allocation6 + $0x910] sm:$0xff]
    %v366 = vld [vmem:[#allocation6 + $0x918] sm:$0xff]
    %v367 = vld [vmem:[#allocation6 + $0x920] sm:$0xff]
    %v368 = vld [vmem:[#allocation6 + $0x928] sm:$0xff]
    %v369 = vld [vmem:[#allocation6 + $0x930] sm:$0xff]
    %v370 = vld [vmem:[#allocation6 + $0x938] sm:$0xff]
    %v371 = vld [vmem:[#allocation6 + $0x940] sm:$0xff]
    %v372 = vld [vmem:[#allocation6 + $0x948] sm:$0xff]
    %v373 = vld [vmem:[#allocation6 + $0x950] sm:$0xff]
    %v374 = vld [vmem:[#allocation6 + $0x958] sm:$0xff]
    %v375 = vld [vmem:[#allocation6 + $0x960] sm:$0xff]
    %v376 = vld [vmem:[#allocation6 + $0x968] sm:$0xff]
    %v377 = vld [vmem:[#allocation6 + $0x970] sm:$0xff]
    %v378 = vld [vmem:[#allocation6 + $0x978] sm:$0xff]
    %v379 = vld [vmem:[#allocation6 + $0x980] sm:$0xff]
    %v380 = vld [vmem:[#allocation6 + $0x988] sm:$0xff]
    %v381 = vld [vmem:[#allocation6 + $0x990] sm:$0xff]
    %v382 = vld [vmem:[#allocation6 + $0x998] sm:$0xff]
    %v383 = vld [vmem:[#allocation6 + $0x9a0] sm:$0xff]
    %v384 = vld [vmem:[#allocation6 + $0x9a8] sm:$0xff]
    %v385 = vld [vmem:[#allocation6 + $0x9b0] sm:$0xff]
    %v386 = vld [vmem:[#allocation6 + $0x9b8] sm:$0xff]
    %v387 = vld [vmem:[#allocation6 + $0x9c0] sm:$0xff]
    %v388 = vld [vmem:[#allocation6 + $0x9c8] sm:$0xff]
    %v389 = vld [vmem:[#allocation6 + $0x9d0] sm:$0xff]
    %v390 = vld [vmem:[#allocation6 + $0x9d8] sm:$0xff]
    %v391 = vld [vmem:[#allocation6 + $0x9e0] sm:$0xff]
    %v392 = vld [vmem:[#allocation6 + $0x9e8] sm:$0xff]
    %v393 = vld [vmem:[#allocation6 + $0x9f0] sm:$0xff]
    %v394 = vld [vmem:[#allocation6 + $0x9f8] sm:$0xff]
    %v395 = vld [vmem:[#allocation6 + $0xa00] sm:$0xff]
    %v396 = vld [vmem:[#allocation6 + $0xa08] sm:$0xff]
    %v397 = vld [vmem:[#allocation6 + $0xa10] sm:$0xff]
    %v398 = vld [vmem:[#allocation6 + $0xa18] sm:$0xff]
    %v399 = vld [vmem:[#allocation6 + $0xa20] sm:$0xff]
    %v400 = vld [vmem:[#allocation6 + $0xa28] sm:$0xff]
    %v401 = vld [vmem:[#allocation6 + $0xa30] sm:$0xff]
    %v402 = vld [vmem:[#allocation6 + $0xa38] sm:$0xff]
    %v403 = vld [vmem:[#allocation6 + $0xa40] sm:$0xff]
    %v404 = vld [vmem:[#allocation6 + $0xa48] sm:$0xff]
    %v405 = vld [vmem:[#allocation6 + $0xa50] sm:$0xff]
    %v406 = vld [vmem:[#allocation6 + $0xa58] sm:$0xff]
    %v407 = vld [vmem:[#allocation6 + $0xa60] sm:$0xff]
    %v408 = vld [vmem:[#allocation6 + $0xa68] sm:$0xff]
    %v409 = vld [vmem:[#allocation6 + $0xa70] sm:$0xff]
    %v410 = vld [vmem:[#allocation6 + $0xa78] sm:$0xff]
    %v411 = vld [vmem:[#allocation6 + $0xa80] sm:$0xff]
    %v412 = vld [vmem:[#allocation6 + $0xa88] sm:$0xff]
    %v413 = vld [vmem:[#allocation6 + $0xa90] sm:$0xff]
    %v414 = vld [vmem:[#allocation6 + $0xa98] sm:$0xff]
    %v415 = vld [vmem:[#allocation6 + $0xaa0] sm:$0xff]
    %v416 = vld [vmem:[#allocation6 + $0xaa8] sm:$0xff]
    %v417 = vld [vmem:[#allocation6 + $0xab0] sm:$0xff]
    %v418 = vld [vmem:[#allocation6 + $0xab8] sm:$0xff]
    %v419 = vld [vmem:[#allocation6 + $0xac0] sm:$0xff]
    %v420 = vld [vmem:[#allocation6 + $0xac8] sm:$0xff]
    %v421 = vld [vmem:[#allocation6 + $0xad0] sm:$0xff]
    %v422 = vld [vmem:[#allocation6 + $0xad8] sm:$0xff]
    %v423 = vld [vmem:[#allocation6 + $0xae0] sm:$0xff]
    %v424 = vld [vmem:[#allocation6 + $0xae8] sm:$0xff]
    %v425 = vld [vmem:[#allocation6 + $0xaf0] sm:$0xff]
    %v426 = vld [vmem:[#allocation6 + $0xaf8] sm:$0xff]
    %v427 = vld [vmem:[#allocation6 + $0xb00] sm:$0xff]
    %v428 = vld [vmem:[#allocation6 + $0xb08] sm:$0xff]
    %v429 = vld [vmem:[#allocation6 + $0xb10] sm:$0xff]
    %v430 = vld [vmem:[#allocation6 + $0xb18] sm:$0xff]
    %v431 = vld [vmem:[#allocation6 + $0xb20] sm:$0xff]
    %v432 = vld [vmem:[#allocation6 + $0xb28] sm:$0xff]
    %v433 = vld [vmem:[#allocation6 + $0xb30] sm:$0xff]
    %v434 = vld [vmem:[#allocation6 + $0xb38] sm:$0xff]
    %v435 = vld [vmem:[#allocation6 + $0xb40] sm:$0xff]
    %v436 = vld [vmem:[#allocation6 + $0xb48] sm:$0xff]
    %v437 = vld [vmem:[#allocation6 + $0xb50] sm:$0xff]
    %v438 = vld [vmem:[#allocation6 + $0xb58] sm:$0xff]
    %v439 = vld [vmem:[#allocation6 + $0xb60] sm:$0xff]
    %v440 = vld [vmem:[#allocation6 + $0xb68] sm:$0xff]
    %v441 = vld [vmem:[#allocation6 + $0xb70] sm:$0xff]
    %v442 = vld [vmem:[#allocation6 + $0xb78] sm:$0xff]
    %v443 = vld [vmem:[#allocation6 + $0xb80] sm:$0xff]
    %v444 = vld [vmem:[#allocation6 + $0xb88] sm:$0xff]
    %v445 = vld [vmem:[#allocation6 + $0xb90] sm:$0xff]
    %v446 = vld [vmem:[#allocation6 + $0xb98] sm:$0xff]
    %v447 = vld [vmem:[#allocation6 + $0xba0] sm:$0xff]
    %v448 = vld [vmem:[#allocation6 + $0xba8] sm:$0xff]
    %v449 = vld [vmem:[#allocation6 + $0xbb0] sm:$0xff]
    %v450 = vld [vmem:[#allocation6 + $0xbb8] sm:$0xff]
    %v451 = vld [vmem:[#allocation6 + $0xbc0] sm:$0xff]
    %v452 = vld [vmem:[#allocation6 + $0xbc8] sm:$0xff]
    %v453 = vld [vmem:[#allocation6 + $0xbd0] sm:$0xff]
    %v454 = vld [vmem:[#allocation6 + $0xbd8] sm:$0xff]
    %v455 = vld [vmem:[#allocation6 + $0xbe0] sm:$0xff]
    %v456 = vld [vmem:[#allocation6 + $0xbe8] sm:$0xff]
    %v457 = vld [vmem:[#allocation6 + $0xbf0] sm:$0xff]
    %v458 = vld [vmem:[#allocation6 + $0xbf8] sm:$0xff]
    %v459 = vld [vmem:[#allocation6 + $0xc00] sm:$0xff]
    %v460 = vld [vmem:[#allocation6 + $0xc08] sm:$0xff]
    %v461 = vld [vmem:[#allocation6 + $0xc10] sm:$0xff]
    %v462 = vld [vmem:[#allocation6 + $0xc18] sm:$0xff]
    %v463 = vld [vmem:[#allocation6 + $0xc20] sm:$0xff]
    %v464 = vld [vmem:[#allocation6 + $0xc28] sm:$0xff]
    %v465 = vld [vmem:[#allocation6 + $0xc30] sm:$0xff]
    %v466 = vld [vmem:[#allocation6 + $0xc38] sm:$0xff]
    %v467 = vld [vmem:[#allocation6 + $0xc40] sm:$0xff]
    %v468 = vld [vmem:[#allocation6 + $0xc48] sm:$0xff]
    %v469 = vld [vmem:[#allocation6 + $0xc50] sm:$0xff]
    %v470 = vld [vmem:[#allocation6 + $0xc58] sm:$0xff]
    %v471 = vld [vmem:[#allocation6 + $0xc60] sm:$0xff]
    %v472 = vld [vmem:[#allocation6 + $0xc68] sm:$0xff]
    %v473 = vld [vmem:[#allocation6 + $0xc70] sm:$0xff]
    %v474 = vld [vmem:[#allocation6 + $0xc78] sm:$0xff]
    %v475 = vld [vmem:[#allocation6 + $0xc80] sm:$0xff]
    %v476 = vld [vmem:[#allocation6 + $0xc88] sm:$0xff]
    %v477 = vld [vmem:[#allocation6 + $0xc90] sm:$0xff]
    %v478 = vld [vmem:[#allocation6 + $0xc98] sm:$0xff]
    %v479 = vld [vmem:[#allocation6 + $0xca0] sm:$0xff]
    %v480 = vld [vmem:[#allocation6 + $0xca8] sm:$0xff]
    %v481 = vld [vmem:[#allocation6 + $0xcb0] sm:$0xff]
    %v482 = vld [vmem:[#allocation6 + $0xcb8] sm:$0xff]
    %v483 = vld [vmem:[#allocation6 + $0xcc0] sm:$0xff]
    %v484 = vld [vmem:[#allocation6 + $0xcc8] sm:$0xff]
    %v485 = vld [vmem:[#allocation6 + $0xcd0] sm:$0xff]
    %v486 = vld [vmem:[#allocation6 + $0xcd8] sm:$0xff]
    %v487 = vld [vmem:[#allocation6 + $0xce0] sm:$0xff]
    %v488 = vld [vmem:[#allocation6 + $0xce8] sm:$0xff]
    %v489 = vld [vmem:[#allocation6 + $0xcf0] sm:$0xff]
    %v490 = vld [vmem:[#allocation6 + $0xcf8] sm:$0xff]
    %v491 = vld [vmem:[#allocation6 + $0xd00] sm:$0xff]
    %v492 = vld [vmem:[#allocation6 + $0xd08] sm:$0xff]
    %v493 = vld [vmem:[#allocation6 + $0xd10] sm:$0xff]
    %v494 = vld [vmem:[#allocation6 + $0xd18] sm:$0xff]
    %v495 = vld [vmem:[#allocation6 + $0xd20] sm:$0xff]
    %v496 = vld [vmem:[#allocation6 + $0xd28] sm:$0xff]
    %v497 = vld [vmem:[#allocation6 + $0xd30] sm:$0xff]
    %v498 = vld [vmem:[#allocation6 + $0xd38] sm:$0xff]
    %v499 = vld [vmem:[#allocation6 + $0xd40] sm:$0xff]
    %v500 = vld [vmem:[#allocation6 + $0xd48] sm:$0xff]
    %v501 = vld [vmem:[#allocation6 + $0xd50] sm:$0xff]
    %v502 = vld [vmem:[#allocation6 + $0xd58] sm:$0xff]
    %v503 = vld [vmem:[#allocation6 + $0xd60] sm:$0xff]
    %v504 = vld [vmem:[#allocation6 + $0xd68] sm:$0xff]
    %v505 = vld [vmem:[#allocation6 + $0xd70] sm:$0xff]
    %v506 = vld [vmem:[#allocation6 + $0xd78] sm:$0xff]
    %v507 = vld [vmem:[#allocation6 + $0xd80] sm:$0xff]
    %v508 = vld [vmem:[#allocation6 + $0xd88] sm:$0xff]
    %v509 = vld [vmem:[#allocation6 + $0xd90] sm:$0xff]
    %v510 = vld [vmem:[#allocation6 + $0xd98] sm:$0xff]
    %v511 = vld [vmem:[#allocation6 + $0xda0] sm:$0xff]
    %v512 = vld [vmem:[#allocation6 + $0xda8] sm:$0xff]
    %v513 = vld [vmem:[#allocation6 + $0xdb0] sm:$0xff]
    %v514 = vld [vmem:[#allocation6 + $0xdb8] sm:$0xff]
    %v515 = vld [vmem:[#allocation6 + $0xdc0] sm:$0xff]
    %v516 = vld [vmem:[#allocation6 + $0xdc8] sm:$0xff]
    %v517 = vld [vmem:[#allocation6 + $0xdd0] sm:$0xff]
    %v518 = vld [vmem:[#allocation6 + $0xdd8] sm:$0xff]
    %v519 = vld [vmem:[#allocation6 + $0xde0] sm:$0xff]
    %v520 = vld [vmem:[#allocation6 + $0xde8] sm:$0xff]
    %v521 = vld [vmem:[#allocation6 + $0xdf0] sm:$0xff]
    %v522 = vld [vmem:[#allocation6 + $0xdf8] sm:$0xff]
    %v523 = vld [vmem:[#allocation6 + $0xe00] sm:$0xff]
    %v524 = vld [vmem:[#allocation6 + $0xe08] sm:$0xff]
    %v525 = vld [vmem:[#allocation6 + $0xe10] sm:$0xff]
    %v526 = vld [vmem:[#allocation6 + $0xe18] sm:$0xff]
    %v527 = vld [vmem:[#allocation6 + $0xe20] sm:$0xff]
    %v528 = vld [vmem:[#allocation6 + $0xe28] sm:$0xff]
    %v529 = vld [vmem:[#allocation6 + $0xe30] sm:$0xff]
    %v530 = vld [vmem:[#allocation6 + $0xe38] sm:$0xff]
    %v531 = vld [vmem:[#allocation6 + $0xe40] sm:$0xff]
    %v532 = vld [vmem:[#allocation6 + $0xe48] sm:$0xff]
    %v533 = vld [vmem:[#allocation6 + $0xe50] sm:$0xff]
    %v534 = vld [vmem:[#allocation6 + $0xe58] sm:$0xff]
    %v535 = vld [vmem:[#allocation6 + $0xe60] sm:$0xff]
    %v536 = vld [vmem:[#allocation6 + $0xe68] sm:$0xff]
    %v537 = vld [vmem:[#allocation6 + $0xe70] sm:$0xff]
    %v538 = vld [vmem:[#allocation6 + $0xe78] sm:$0xff]
    %v539 = vld [vmem:[#allocation6 + $0xe80] sm:$0xff]
    %v540 = vld [vmem:[#allocation6 + $0xe88] sm:$0xff]
    %v541 = vld [vmem:[#allocation6 + $0xe90] sm:$0xff]
    %v542 = vld [vmem:[#allocation6 + $0xe98] sm:$0xff]
    %v543 = vld [vmem:[#allocation6 + $0xea0] sm:$0xff]
    %v544 = vld [vmem:[#allocation6 + $0xea8] sm:$0xff]
    %v545 = vld [vmem:[#allocation6 + $0xeb0] sm:$0xff]
    %v546 = vld [vmem:[#allocation6 + $0xeb8] sm:$0xff]
    %v547 = vld [vmem:[#allocation6 + $0xec0] sm:$0xff]
    %v548 = vld [vmem:[#allocation6 + $0xec8] sm:$0xff]
    %v549 = vld [vmem:[#allocation6 + $0xed0] sm:$0xff]
    %v550 = vld [vmem:[#allocation6 + $0xed8] sm:$0xff]
    %v551 = vld [vmem:[#allocation6 + $0xee0] sm:$0xff]
    %v552 = vld [vmem:[#allocation6 + $0xee8] sm:$0xff]
    %v553 = vld [vmem:[#allocation6 + $0xef0] sm:$0xff]
    %v554 = vld [vmem:[#allocation6 + $0xef8] sm:$0xff]
    %v555 = vld [vmem:[#allocation6 + $0xf00] sm:$0xff]
    %v556 = vld [vmem:[#allocation6 + $0xf08] sm:$0xff]
    %v557 = vld [vmem:[#allocation6 + $0xf10] sm:$0xff]
    %v558 = vld [vmem:[#allocation6 + $0xf18] sm:$0xff]
    %v559 = vld [vmem:[#allocation6 + $0xf20] sm:$0xff]
    %v560 = vld [vmem:[#allocation6 + $0xf28] sm:$0xff]
    %v561 = vld [vmem:[#allocation6 + $0xf30] sm:$0xff]
    %v562 = vld [vmem:[#allocation6 + $0xf38] sm:$0xff]
    %v563 = vld [vmem:[#allocation6 + $0xf40] sm:$0xff]
    %v564 = vld [vmem:[#allocation6 + $0xf48] sm:$0xff]
    %v565 = vld [vmem:[#allocation6 + $0xf50] sm:$0xff]
    %v566 = vld [vmem:[#allocation6 + $0xf58] sm:$0xff]
    %v567 = vld [vmem:[#allocation6 + $0xf60] sm:$0xff]
    %v568 = vld [vmem:[#allocation6 + $0xf68] sm:$0xff]
    %v569 = vld [vmem:[#allocation6 + $0xf70] sm:$0xff]
    %v570 = vld [vmem:[#allocation6 + $0xf78] sm:$0xff]
    %v571 = vld [vmem:[#allocation6 + $0xf80] sm:$0xff]
    %v572 = vld [vmem:[#allocation6 + $0xf88] sm:$0xff]
    %v573 = vld [vmem:[#allocation6 + $0xf90] sm:$0xff]
    %v574 = vld [vmem:[#allocation6 + $0xf98] sm:$0xff]
    %v575 = vld [vmem:[#allocation6 + $0xfa0] sm:$0xff]
    %v576 = vld [vmem:[#allocation6 + $0xfa8] sm:$0xff]
    %v577 = vld [vmem:[#allocation6 + $0xfb0] sm:$0xff]
    %v578 = vld [vmem:[#allocation6 + $0xfb8] sm:$0xff]
    %v579 = vld [vmem:[#allocation6 + $0xfc0] sm:$0xff]
    %v580 = vld [vmem:[#allocation6 + $0xfc8] sm:$0xff]
    %v581 = vld [vmem:[#allocation6 + $0xfd0] sm:$0xff]
    %v582 = vld [vmem:[#allocation6 + $0xfd8] sm:$0xff]
    %v583 = vld [vmem:[#allocation6 + $0xfe0] sm:$0xff]
    %v584 = vld [vmem:[#allocation6 + $0xfe8] sm:$0xff]
    %v585 = vld [vmem:[#allocation6 + $0xff0] sm:$0xff]
    %v586 = vld [vmem:[#allocation6 + $0xff8] sm:$0xff]
    %v589 = vcombine.high %v73, %v73
    %v591 = vunpack.c.l.s4 1966171168
    %v592 = vunpack.c.0.s8 %v591
    %v593 = vlaneseq
    %v594 = vshrl.u32 %v593, 7
    %v595 = vsub.s32 %v592, %v594
    %v596 = vrot.slane %v73, %v595
    %v598 = vunpack.c.l.s4 1966171168
    %v599 = vunpack.c.0.s8 %v598
    %v600 = vlaneseq
    %v601 = vshrl.u32 %v600, 7
    %v602 = vsub.s32 %v599, %v601
    %v603 = vrot.slane %v589, %v602
    %v604 = vcombine.high %v596, %v596
    %v605 = vcombine.high %v603, %v603
    %v607 = vunpack.c.l.s4 1966171168
    %v608 = vunpack.c.0.s8 %v607
    %v609 = vlaneseq
    %v610 = vshrl.u32 %v609, 7
    %v611 = vsub.s32 %v608, %v610
    %v612 = vrot.slane %v596, %v611
    %v614 = vunpack.c.l.s4 1966171168
    %v615 = vunpack.c.0.s8 %v614
    %v616 = vlaneseq
    %v617 = vshrl.u32 %v616, 7
    %v618 = vsub.s32 %v615, %v617
    %v619 = vrot.slane %v603, %v618
    %v621 = vunpack.c.l.s4 1966171168
    %v622 = vunpack.c.0.s8 %v621
    %v623 = vlaneseq
    %v624 = vshrl.u32 %v623, 7
    %v625 = vsub.s32 %v622, %v624
    %v626 = vrot.slane %v604, %v625
    %v628 = vunpack.c.l.s4 1966171168
    %v629 = vunpack.c.0.s8 %v628
    %v630 = vlaneseq
    %v631 = vshrl.u32 %v630, 7
    %v632 = vsub.s32 %v629, %v631
    %v633 = vrot.slane %v605, %v632
    %v634 = vcombine.high %v612, %v612
    %v635 = vcombine.high %v619, %v619
    %v636 = vcombine.high %v626, %v626
    %v637 = vcombine.high %v633, %v633
    %v638 = vcombine.high %v74, %v74
    %v640 = vunpack.c.l.s4 1966171168
    %v641 = vunpack.c.0.s8 %v640
    %v642 = vlaneseq
    %v643 = vshrl.u32 %v642, 7
    %v644 = vsub.s32 %v641, %v643
    %v645 = vrot.slane %v74, %v644
    %v647 = vunpack.c.l.s4 1966171168
    %v648 = vunpack.c.0.s8 %v647
    %v649 = vlaneseq
    %v650 = vshrl.u32 %v649, 7
    %v651 = vsub.s32 %v648, %v650
    %v652 = vrot.slane %v638, %v651
    %v653 = vcombine.high %v645, %v645
    %v654 = vcombine.high %v652, %v652
    %v656 = vunpack.c.l.s4 1966171168
    %v657 = vunpack.c.0.s8 %v656
    %v658 = vlaneseq
    %v659 = vshrl.u32 %v658, 7
    %v660 = vsub.s32 %v657, %v659
    %v661 = vrot.slane %v645, %v660
    %v663 = vunpack.c.l.s4 1966171168
    %v664 = vunpack.c.0.s8 %v663
    %v665 = vlaneseq
    %v666 = vshrl.u32 %v665, 7
    %v667 = vsub.s32 %v664, %v666
    %v668 = vrot.slane %v652, %v667
    %v670 = vunpack.c.l.s4 1966171168
    %v671 = vunpack.c.0.s8 %v670
    %v672 = vlaneseq
    %v673 = vshrl.u32 %v672, 7
    %v674 = vsub.s32 %v671, %v673
    %v675 = vrot.slane %v653, %v674
    %v677 = vunpack.c.l.s4 1966171168
    %v678 = vunpack.c.0.s8 %v677
    %v679 = vlaneseq
    %v680 = vshrl.u32 %v679, 7
    %v681 = vsub.s32 %v678, %v680
    %v682 = vrot.slane %v654, %v681
    %v683 = vcombine.high %v661, %v661
    %v684 = vcombine.high %v668, %v668
    %v685 = vcombine.high %v675, %v675
    %v686 = vcombine.high %v682, %v682
    %v1215 = vunpack.c.l.b16 %v75
    %v1216 = vunpack.c.h.b16 %v75
    %v1217 = vunpack.c.l.b16 %v76
    %v1218 = vunpack.c.h.b16 %v76
    %v1219 = vunpack.c.l.b16 %v77
    %v1220 = vunpack.c.h.b16 %v77
    %v1221 = vunpack.c.l.b16 %v78
    %v1222 = vunpack.c.h.b16 %v78
    %v1223 = vunpack.c.l.b16 %v79
    %v1224 = vunpack.c.h.b16 %v79
    %v1225 = vunpack.c.l.b16 %v80
    %v1226 = vunpack.c.h.b16 %v80
    %v1227 = vunpack.c.l.b16 %v81
    %v1228 = vunpack.c.h.b16 %v81
    %v1229 = vunpack.c.l.b16 %v82
    %v1230 = vunpack.c.h.b16 %v82
    %v1231 = vunpack.c.l.b16 %v83
    %v1232 = vunpack.c.h.b16 %v83
    %v1233 = vunpack.c.l.b16 %v84
    %v1234 = vunpack.c.h.b16 %v84
    %v1235 = vunpack.c.l.b16 %v85
    %v1236 = vunpack.c.h.b16 %v85
    %v1237 = vunpack.c.l.b16 %v86
    %v1238 = vunpack.c.h.b16 %v86
    %v1239 = vunpack.c.l.b16 %v87
    %v1240 = vunpack.c.h.b16 %v87
    %v1241 = vunpack.c.l.b16 %v88
    %v1242 = vunpack.c.h.b16 %v88
    %v1243 = vunpack.c.l.b16 %v89
    %v1244 = vunpack.c.h.b16 %v89
    %v1245 = vunpack.c.l.b16 %v90
    %v1246 = vunpack.c.h.b16 %v90
    %v1247 = vunpack.c.l.b16 %v91
    %v1248 = vunpack.c.h.b16 %v91
    %v1249 = vunpack.c.l.b16 %v92
    %v1250 = vunpack.c.h.b16 %v92
    %v1251 = vunpack.c.l.b16 %v93
    %v1252 = vunpack.c.h.b16 %v93
    %v1253 = vunpack.c.l.b16 %v94
    %v1254 = vunpack.c.h.b16 %v94
    %v1255 = vunpack.c.l.b16 %v95
    %v1256 = vunpack.c.h.b16 %v95
    %v1257 = vunpack.c.l.b16 %v96
    %v1258 = vunpack.c.h.b16 %v96
    %v1259 = vunpack.c.l.b16 %v97
    %v1260 = vunpack.c.h.b16 %v97
    %v1261 = vunpack.c.l.b16 %v98
    %v1262 = vunpack.c.h.b16 %v98
    %v1263 = vunpack.c.l.b16 %v99
    %v1264 = vunpack.c.h.b16 %v99
    %v1265 = vunpack.c.l.b16 %v100
    %v1266 = vunpack.c.h.b16 %v100
    %v1267 = vunpack.c.l.b16 %v101
    %v1268 = vunpack.c.h.b16 %v101
    %v1269 = vunpack.c.l.b16 %v102
    %v1270 = vunpack.c.h.b16 %v102
    %v1271 = vunpack.c.l.b16 %v103
    %v1272 = vunpack.c.h.b16 %v103
    %v1273 = vunpack.c.l.b16 %v104
    %v1274 = vunpack.c.h.b16 %v104
    %v1275 = vunpack.c.l.b16 %v105
    %v1276 = vunpack.c.h.b16 %v105
    %v1277 = vunpack.c.l.b16 %v106
    %v1278 = vunpack.c.h.b16 %v106
    %v1279 = vunpack.c.l.b16 %v107
    %v1280 = vunpack.c.h.b16 %v107
    %v1281 = vunpack.c.l.b16 %v108
    %v1282 = vunpack.c.h.b16 %v108
    %v1283 = vunpack.c.l.b16 %v109
    %v1284 = vunpack.c.h.b16 %v109
    %v1285 = vunpack.c.l.b16 %v110
    %v1286 = vunpack.c.h.b16 %v110
    %v1287 = vunpack.c.l.b16 %v111
    %v1288 = vunpack.c.h.b16 %v111
    %v1289 = vunpack.c.l.b16 %v112
    %v1290 = vunpack.c.h.b16 %v112
    %v1291 = vunpack.c.l.b16 %v113
    %v1292 = vunpack.c.h.b16 %v113
    %v1293 = vunpack.c.l.b16 %v114
    %v1294 = vunpack.c.h.b16 %v114
    %v1295 = vunpack.c.l.b16 %v115
    %v1296 = vunpack.c.h.b16 %v115
    %v1297 = vunpack.c.l.b16 %v116
    %v1298 = vunpack.c.h.b16 %v116
    %v1299 = vunpack.c.l.b16 %v117
    %v1300 = vunpack.c.h.b16 %v117
    %v1301 = vunpack.c.l.b16 %v118
    %v1302 = vunpack.c.h.b16 %v118
    %v1303 = vunpack.c.l.b16 %v119
    %v1304 = vunpack.c.h.b16 %v119
    %v1305 = vunpack.c.l.b16 %v120
    %v1306 = vunpack.c.h.b16 %v120
    %v1307 = vunpack.c.l.b16 %v121
    %v1308 = vunpack.c.h.b16 %v121
    %v1309 = vunpack.c.l.b16 %v122
    %v1310 = vunpack.c.h.b16 %v122
    %v1311 = vunpack.c.l.b16 %v123
    %v1312 = vunpack.c.h.b16 %v123
    %v1313 = vunpack.c.l.b16 %v124
    %v1314 = vunpack.c.h.b16 %v124
    %v1315 = vunpack.c.l.b16 %v125
    %v1316 = vunpack.c.h.b16 %v125
    %v1317 = vunpack.c.l.b16 %v126
    %v1318 = vunpack.c.h.b16 %v126
    %v1319 = vunpack.c.l.b16 %v127
    %v1320 = vunpack.c.h.b16 %v127
    %v1321 = vunpack.c.l.b16 %v128
    %v1322 = vunpack.c.h.b16 %v128
    %v1323 = vunpack.c.l.b16 %v129
    %v1324 = vunpack.c.h.b16 %v129
    %v1325 = vunpack.c.l.b16 %v130
    %v1326 = vunpack.c.h.b16 %v130
    %v1327 = vunpack.c.l.b16 %v131
    %v1328 = vunpack.c.h.b16 %v131
    %v1329 = vunpack.c.l.b16 %v132
    %v1330 = vunpack.c.h.b16 %v132
    %v1331 = vunpack.c.l.b16 %v133
    %v1332 = vunpack.c.h.b16 %v133
    %v1333 = vunpack.c.l.b16 %v134
    %v1334 = vunpack.c.h.b16 %v134
    %v1335 = vunpack.c.l.b16 %v135
    %v1336 = vunpack.c.h.b16 %v135
    %v1337 = vunpack.c.l.b16 %v136
    %v1338 = vunpack.c.h.b16 %v136
    %v1339 = vunpack.c.l.b16 %v137
    %v1340 = vunpack.c.h.b16 %v137
    %v1341 = vunpack.c.l.b16 %v138
    %v1342 = vunpack.c.h.b16 %v138
    %v1343 = vunpack.c.l.b16 %v139
    %v1344 = vunpack.c.h.b16 %v139
    %v1345 = vunpack.c.l.b16 %v140
    %v1346 = vunpack.c.h.b16 %v140
    %v1347 = vunpack.c.l.b16 %v141
    %v1348 = vunpack.c.h.b16 %v141
    %v1349 = vunpack.c.l.b16 %v142
    %v1350 = vunpack.c.h.b16 %v142
    %v1351 = vunpack.c.l.b16 %v143
    %v1352 = vunpack.c.h.b16 %v143
    %v1353 = vunpack.c.l.b16 %v144
    %v1354 = vunpack.c.h.b16 %v144
    %v1355 = vunpack.c.l.b16 %v145
    %v1356 = vunpack.c.h.b16 %v145
    %v1357 = vunpack.c.l.b16 %v146
    %v1358 = vunpack.c.h.b16 %v146
    %v1359 = vunpack.c.l.b16 %v147
    %v1360 = vunpack.c.h.b16 %v147
    %v1361 = vunpack.c.l.b16 %v148
    %v1362 = vunpack.c.h.b16 %v148
    %v1363 = vunpack.c.l.b16 %v149
    %v1364 = vunpack.c.h.b16 %v149
    %v1365 = vunpack.c.l.b16 %v150
    %v1366 = vunpack.c.h.b16 %v150
    %v1367 = vunpack.c.l.b16 %v151
    %v1368 = vunpack.c.h.b16 %v151
    %v1369 = vunpack.c.l.b16 %v152
    %v1370 = vunpack.c.h.b16 %v152
    %v1371 = vunpack.c.l.b16 %v153
    %v1372 = vunpack.c.h.b16 %v153
    %v1373 = vunpack.c.l.b16 %v154
    %v1374 = vunpack.c.h.b16 %v154
    %v1375 = vunpack.c.l.b16 %v155
    %v1376 = vunpack.c.h.b16 %v155
    %v1377 = vunpack.c.l.b16 %v156
    %v1378 = vunpack.c.h.b16 %v156
    %v1379 = vunpack.c.l.b16 %v157
    %v1380 = vunpack.c.h.b16 %v157
    %v1381 = vunpack.c.l.b16 %v158
    %v1382 = vunpack.c.h.b16 %v158
    %v1383 = vunpack.c.l.b16 %v159
    %v1384 = vunpack.c.h.b16 %v159
    %v1385 = vunpack.c.l.b16 %v160
    %v1386 = vunpack.c.h.b16 %v160
    %v1387 = vunpack.c.l.b16 %v161
    %v1388 = vunpack.c.h.b16 %v161
    %v1389 = vunpack.c.l.b16 %v162
    %v1390 = vunpack.c.h.b16 %v162
    %v1391 = vunpack.c.l.b16 %v163
    %v1392 = vunpack.c.h.b16 %v163
    %v1393 = vunpack.c.l.b16 %v164
    %v1394 = vunpack.c.h.b16 %v164
    %v1395 = vunpack.c.l.b16 %v165
    %v1396 = vunpack.c.h.b16 %v165
    %v1397 = vunpack.c.l.b16 %v166
    %v1398 = vunpack.c.h.b16 %v166
    %v1399 = vunpack.c.l.b16 %v167
    %v1400 = vunpack.c.h.b16 %v167
    %v1401 = vunpack.c.l.b16 %v168
    %v1402 = vunpack.c.h.b16 %v168
    %v1403 = vunpack.c.l.b16 %v169
    %v1404 = vunpack.c.h.b16 %v169
    %v1405 = vunpack.c.l.b16 %v170
    %v1406 = vunpack.c.h.b16 %v170
    %v1407 = vunpack.c.l.b16 %v171
    %v1408 = vunpack.c.h.b16 %v171
    %v1409 = vunpack.c.l.b16 %v172
    %v1410 = vunpack.c.h.b16 %v172
    %v1411 = vunpack.c.l.b16 %v173
    %v1412 = vunpack.c.h.b16 %v173
    %v1413 = vunpack.c.l.b16 %v174
    %v1414 = vunpack.c.h.b16 %v174
    %v1415 = vunpack.c.l.b16 %v175
    %v1416 = vunpack.c.h.b16 %v175
    %v1417 = vunpack.c.l.b16 %v176
    %v1418 = vunpack.c.h.b16 %v176
    %v1419 = vunpack.c.l.b16 %v177
    %v1420 = vunpack.c.h.b16 %v177
    %v1421 = vunpack.c.l.b16 %v178
    %v1422 = vunpack.c.h.b16 %v178
    %v1423 = vunpack.c.l.b16 %v179
    %v1424 = vunpack.c.h.b16 %v179
    %v1425 = vunpack.c.l.b16 %v180
    %v1426 = vunpack.c.h.b16 %v180
    %v1427 = vunpack.c.l.b16 %v181
    %v1428 = vunpack.c.h.b16 %v181
    %v1429 = vunpack.c.l.b16 %v182
    %v1430 = vunpack.c.h.b16 %v182
    %v1431 = vunpack.c.l.b16 %v183
    %v1432 = vunpack.c.h.b16 %v183
    %v1433 = vunpack.c.l.b16 %v184
    %v1434 = vunpack.c.h.b16 %v184
    %v1435 = vunpack.c.l.b16 %v185
    %v1436 = vunpack.c.h.b16 %v185
    %v1437 = vunpack.c.l.b16 %v186
    %v1438 = vunpack.c.h.b16 %v186
    %v1439 = vunpack.c.l.b16 %v187
    %v1440 = vunpack.c.h.b16 %v187
    %v1441 = vunpack.c.l.b16 %v188
    %v1442 = vunpack.c.h.b16 %v188
    %v1443 = vunpack.c.l.b16 %v189
    %v1444 = vunpack.c.h.b16 %v189
    %v1445 = vunpack.c.l.b16 %v190
    %v1446 = vunpack.c.h.b16 %v190
    %v1447 = vunpack.c.l.b16 %v191
    %v1448 = vunpack.c.h.b16 %v191
    %v1449 = vunpack.c.l.b16 %v192
    %v1450 = vunpack.c.h.b16 %v192
    %v1451 = vunpack.c.l.b16 %v193
    %v1452 = vunpack.c.h.b16 %v193
    %v1453 = vunpack.c.l.b16 %v194
    %v1454 = vunpack.c.h.b16 %v194
    %v1455 = vunpack.c.l.b16 %v195
    %v1456 = vunpack.c.h.b16 %v195
    %v1457 = vunpack.c.l.b16 %v196
    %v1458 = vunpack.c.h.b16 %v196
    %v1459 = vunpack.c.l.b16 %v197
    %v1460 = vunpack.c.h.b16 %v197
    %v1461 = vunpack.c.l.b16 %v198
    %v1462 = vunpack.c.h.b16 %v198
    %v1463 = vunpack.c.l.b16 %v199
    %v1464 = vunpack.c.h.b16 %v199
    %v1465 = vunpack.c.l.b16 %v200
    %v1466 = vunpack.c.h.b16 %v200
    %v1467 = vunpack.c.l.b16 %v201
    %v1468 = vunpack.c.h.b16 %v201
    %v1469 = vunpack.c.l.b16 %v202
    %v1470 = vunpack.c.h.b16 %v202
    %v1471 = vunpack.c.l.b16 %v203
    %v1472 = vunpack.c.h.b16 %v203
    %v1473 = vunpack.c.l.b16 %v204
    %v1474 = vunpack.c.h.b16 %v204
    %v1475 = vunpack.c.l.b16 %v205
    %v1476 = vunpack.c.h.b16 %v205
    %v1477 = vunpack.c.l.b16 %v206
    %v1478 = vunpack.c.h.b16 %v206
    %v1479 = vunpack.c.l.b16 %v207
    %v1480 = vunpack.c.h.b16 %v207
    %v1481 = vunpack.c.l.b16 %v208
    %v1482 = vunpack.c.h.b16 %v208
    %v1483 = vunpack.c.l.b16 %v209
    %v1484 = vunpack.c.h.b16 %v209
    %v1485 = vunpack.c.l.b16 %v210
    %v1486 = vunpack.c.h.b16 %v210
    %v1487 = vunpack.c.l.b16 %v211
    %v1488 = vunpack.c.h.b16 %v211
    %v1489 = vunpack.c.l.b16 %v212
    %v1490 = vunpack.c.h.b16 %v212
    %v1491 = vunpack.c.l.b16 %v213
    %v1492 = vunpack.c.h.b16 %v213
    %v1493 = vunpack.c.l.b16 %v214
    %v1494 = vunpack.c.h.b16 %v214
    %v1495 = vunpack.c.l.b16 %v215
    %v1496 = vunpack.c.h.b16 %v215
    %v1497 = vunpack.c.l.b16 %v216
    %v1498 = vunpack.c.h.b16 %v216
    %v1499 = vunpack.c.l.b16 %v217
    %v1500 = vunpack.c.h.b16 %v217
    %v1501 = vunpack.c.l.b16 %v218
    %v1502 = vunpack.c.h.b16 %v218
    %v1503 = vunpack.c.l.b16 %v219
    %v1504 = vunpack.c.h.b16 %v219
    %v1505 = vunpack.c.l.b16 %v220
    %v1506 = vunpack.c.h.b16 %v220
    %v1507 = vunpack.c.l.b16 %v221
    %v1508 = vunpack.c.h.b16 %v221
    %v1509 = vunpack.c.l.b16 %v222
    %v1510 = vunpack.c.h.b16 %v222
    %v1511 = vunpack.c.l.b16 %v223
    %v1512 = vunpack.c.h.b16 %v223
    %v1513 = vunpack.c.l.b16 %v224
    %v1514 = vunpack.c.h.b16 %v224
    %v1515 = vunpack.c.l.b16 %v225
    %v1516 = vunpack.c.h.b16 %v225
    %v1517 = vunpack.c.l.b16 %v226
    %v1518 = vunpack.c.h.b16 %v226
    %v1519 = vunpack.c.l.b16 %v227
    %v1520 = vunpack.c.h.b16 %v227
    %v1521 = vunpack.c.l.b16 %v228
    %v1522 = vunpack.c.h.b16 %v228
    %v1523 = vunpack.c.l.b16 %v229
    %v1524 = vunpack.c.h.b16 %v229
    %v1525 = vunpack.c.l.b16 %v230
    %v1526 = vunpack.c.h.b16 %v230
    %v1527 = vunpack.c.l.b16 %v231
    %v1528 = vunpack.c.h.b16 %v231
    %v1529 = vunpack.c.l.b16 %v232
    %v1530 = vunpack.c.h.b16 %v232
    %v1531 = vunpack.c.l.b16 %v233
    %v1532 = vunpack.c.h.b16 %v233
    %v1533 = vunpack.c.l.b16 %v234
    %v1534 = vunpack.c.h.b16 %v234
    %v1535 = vunpack.c.l.b16 %v235
    %v1536 = vunpack.c.h.b16 %v235
    %v1537 = vunpack.c.l.b16 %v236
    %v1538 = vunpack.c.h.b16 %v236
    %v1539 = vunpack.c.l.b16 %v237
    %v1540 = vunpack.c.h.b16 %v237
    %v1541 = vunpack.c.l.b16 %v238
    %v1542 = vunpack.c.h.b16 %v238
    %v1543 = vunpack.c.l.b16 %v239
    %v1544 = vunpack.c.h.b16 %v239
    %v1545 = vunpack.c.l.b16 %v240
    %v1546 = vunpack.c.h.b16 %v240
    %v1547 = vunpack.c.l.b16 %v241
    %v1548 = vunpack.c.h.b16 %v241
    %v1549 = vunpack.c.l.b16 %v242
    %v1550 = vunpack.c.h.b16 %v242
    %v1551 = vunpack.c.l.b16 %v243
    %v1552 = vunpack.c.h.b16 %v243
    %v1553 = vunpack.c.l.b16 %v244
    %v1554 = vunpack.c.h.b16 %v244
    %v1555 = vunpack.c.l.b16 %v245
    %v1556 = vunpack.c.h.b16 %v245
    %v1557 = vunpack.c.l.b16 %v246
    %v1558 = vunpack.c.h.b16 %v246
    %v1559 = vunpack.c.l.b16 %v247
    %v1560 = vunpack.c.h.b16 %v247
    %v1561 = vunpack.c.l.b16 %v248
    %v1562 = vunpack.c.h.b16 %v248
    %v1563 = vunpack.c.l.b16 %v249
    %v1564 = vunpack.c.h.b16 %v249
    %v1565 = vunpack.c.l.b16 %v250
    %v1566 = vunpack.c.h.b16 %v250
    %v1567 = vunpack.c.l.b16 %v251
    %v1568 = vunpack.c.h.b16 %v251
    %v1569 = vunpack.c.l.b16 %v252
    %v1570 = vunpack.c.h.b16 %v252
    %v1571 = vunpack.c.l.b16 %v253
    %v1572 = vunpack.c.h.b16 %v253
    %v1573 = vunpack.c.l.b16 %v254
    %v1574 = vunpack.c.h.b16 %v254
    %v1575 = vunpack.c.l.b16 %v255
    %v1576 = vunpack.c.h.b16 %v255
    %v1577 = vunpack.c.l.b16 %v256
    %v1578 = vunpack.c.h.b16 %v256
    %v1579 = vunpack.c.l.b16 %v257
    %v1580 = vunpack.c.h.b16 %v257
    %v1581 = vunpack.c.l.b16 %v258
    %v1582 = vunpack.c.h.b16 %v258
    %v1583 = vunpack.c.l.b16 %v259
    %v1584 = vunpack.c.h.b16 %v259
    %v1585 = vunpack.c.l.b16 %v260
    %v1586 = vunpack.c.h.b16 %v260
    %v1587 = vunpack.c.l.b16 %v261
    %v1588 = vunpack.c.h.b16 %v261
    %v1589 = vunpack.c.l.b16 %v262
    %v1590 = vunpack.c.h.b16 %v262
    %v1591 = vunpack.c.l.b16 %v263
    %v1592 = vunpack.c.h.b16 %v263
    %v1593 = vunpack.c.l.b16 %v264
    %v1594 = vunpack.c.h.b16 %v264
    %v1595 = vunpack.c.l.b16 %v265
    %v1596 = vunpack.c.h.b16 %v265
    %v1597 = vunpack.c.l.b16 %v266
    %v1598 = vunpack.c.h.b16 %v266
    %v1599 = vunpack.c.l.b16 %v267
    %v1600 = vunpack.c.h.b16 %v267
    %v1601 = vunpack.c.l.b16 %v268
    %v1602 = vunpack.c.h.b16 %v268
    %v1603 = vunpack.c.l.b16 %v269
    %v1604 = vunpack.c.h.b16 %v269
    %v1605 = vunpack.c.l.b16 %v270
    %v1606 = vunpack.c.h.b16 %v270
    %v1607 = vunpack.c.l.b16 %v271
    %v1608 = vunpack.c.h.b16 %v271
    %v1609 = vunpack.c.l.b16 %v272
    %v1610 = vunpack.c.h.b16 %v272
    %v1611 = vunpack.c.l.b16 %v273
    %v1612 = vunpack.c.h.b16 %v273
    %v1613 = vunpack.c.l.b16 %v274
    %v1614 = vunpack.c.h.b16 %v274
    %v1615 = vunpack.c.l.b16 %v275
    %v1616 = vunpack.c.h.b16 %v275
    %v1617 = vunpack.c.l.b16 %v276
    %v1618 = vunpack.c.h.b16 %v276
    %v1619 = vunpack.c.l.b16 %v277
    %v1620 = vunpack.c.h.b16 %v277
    %v1621 = vunpack.c.l.b16 %v278
    %v1622 = vunpack.c.h.b16 %v278
    %v1623 = vunpack.c.l.b16 %v279
    %v1624 = vunpack.c.h.b16 %v279
    %v1625 = vunpack.c.l.b16 %v280
    %v1626 = vunpack.c.h.b16 %v280
    %v1627 = vunpack.c.l.b16 %v281
    %v1628 = vunpack.c.h.b16 %v281
    %v1629 = vunpack.c.l.b16 %v282
    %v1630 = vunpack.c.h.b16 %v282
    %v1631 = vunpack.c.l.b16 %v283
    %v1632 = vunpack.c.h.b16 %v283
    %v1633 = vunpack.c.l.b16 %v284
    %v1634 = vunpack.c.h.b16 %v284
    %v1635 = vunpack.c.l.b16 %v285
    %v1636 = vunpack.c.h.b16 %v285
    %v1637 = vunpack.c.l.b16 %v286
    %v1638 = vunpack.c.h.b16 %v286
    %v1639 = vunpack.c.l.b16 %v287
    %v1640 = vunpack.c.h.b16 %v287
    %v1641 = vunpack.c.l.b16 %v288
    %v1642 = vunpack.c.h.b16 %v288
    %v1643 = vunpack.c.l.b16 %v289
    %v1644 = vunpack.c.h.b16 %v289
    %v1645 = vunpack.c.l.b16 %v290
    %v1646 = vunpack.c.h.b16 %v290
    %v1647 = vunpack.c.l.b16 %v291
    %v1648 = vunpack.c.h.b16 %v291
    %v1649 = vunpack.c.l.b16 %v292
    %v1650 = vunpack.c.h.b16 %v292
    %v1651 = vunpack.c.l.b16 %v293
    %v1652 = vunpack.c.h.b16 %v293
    %v1653 = vunpack.c.l.b16 %v294
    %v1654 = vunpack.c.h.b16 %v294
    %v1655 = vunpack.c.l.b16 %v295
    %v1656 = vunpack.c.h.b16 %v295
    %v1657 = vunpack.c.l.b16 %v296
    %v1658 = vunpack.c.h.b16 %v296
    %v1659 = vunpack.c.l.b16 %v297
    %v1660 = vunpack.c.h.b16 %v297
    %v1661 = vunpack.c.l.b16 %v298
    %v1662 = vunpack.c.h.b16 %v298
    %v1663 = vunpack.c.l.b16 %v299
    %v1664 = vunpack.c.h.b16 %v299
    %v1665 = vunpack.c.l.b16 %v300
    %v1666 = vunpack.c.h.b16 %v300
    %v1667 = vunpack.c.l.b16 %v301
    %v1668 = vunpack.c.h.b16 %v301
    %v1669 = vunpack.c.l.b16 %v302
    %v1670 = vunpack.c.h.b16 %v302
    %v1671 = vunpack.c.l.b16 %v303
    %v1672 = vunpack.c.h.b16 %v303
    %v1673 = vunpack.c.l.b16 %v304
    %v1674 = vunpack.c.h.b16 %v304
    %v1675 = vunpack.c.l.b16 %v305
    %v1676 = vunpack.c.h.b16 %v305
    %v1677 = vunpack.c.l.b16 %v306
    %v1678 = vunpack.c.h.b16 %v306
    %v1679 = vunpack.c.l.b16 %v307
    %v1680 = vunpack.c.h.b16 %v307
    %v1681 = vunpack.c.l.b16 %v308
    %v1682 = vunpack.c.h.b16 %v308
    %v1683 = vunpack.c.l.b16 %v309
    %v1684 = vunpack.c.h.b16 %v309
    %v1685 = vunpack.c.l.b16 %v310
    %v1686 = vunpack.c.h.b16 %v310
    %v1687 = vunpack.c.l.b16 %v311
    %v1688 = vunpack.c.h.b16 %v311
    %v1689 = vunpack.c.l.b16 %v312
    %v1690 = vunpack.c.h.b16 %v312
    %v1691 = vunpack.c.l.b16 %v313
    %v1692 = vunpack.c.h.b16 %v313
    %v1693 = vunpack.c.l.b16 %v314
    %v1694 = vunpack.c.h.b16 %v314
    %v1695 = vunpack.c.l.b16 %v315
    %v1696 = vunpack.c.h.b16 %v315
    %v1697 = vunpack.c.l.b16 %v316
    %v1698 = vunpack.c.h.b16 %v316
    %v1699 = vunpack.c.l.b16 %v317
    %v1700 = vunpack.c.h.b16 %v317
    %v1701 = vunpack.c.l.b16 %v318
    %v1702 = vunpack.c.h.b16 %v318
    %v1703 = vunpack.c.l.b16 %v319
    %v1704 = vunpack.c.h.b16 %v319
    %v1705 = vunpack.c.l.b16 %v320
    %v1706 = vunpack.c.h.b16 %v320
    %v1707 = vunpack.c.l.b16 %v321
    %v1708 = vunpack.c.h.b16 %v321
    %v1709 = vunpack.c.l.b16 %v322
    %v1710 = vunpack.c.h.b16 %v322
    %v1711 = vunpack.c.l.b16 %v323
    %v1712 = vunpack.c.h.b16 %v323
    %v1713 = vunpack.c.l.b16 %v324
    %v1714 = vunpack.c.h.b16 %v324
    %v1715 = vunpack.c.l.b16 %v325
    %v1716 = vunpack.c.h.b16 %v325
    %v1717 = vunpack.c.l.b16 %v326
    %v1718 = vunpack.c.h.b16 %v326
    %v1719 = vunpack.c.l.b16 %v327
    %v1720 = vunpack.c.h.b16 %v327
    %v1721 = vunpack.c.l.b16 %v328
    %v1722 = vunpack.c.h.b16 %v328
    %v1723 = vunpack.c.l.b16 %v329
    %v1724 = vunpack.c.h.b16 %v329
    %v1725 = vunpack.c.l.b16 %v330
    %v1726 = vunpack.c.h.b16 %v330
    %v1727 = vunpack.c.l.b16 %v331
    %v1728 = vunpack.c.h.b16 %v331
    %v1729 = vunpack.c.l.b16 %v332
    %v1730 = vunpack.c.h.b16 %v332
    %v1731 = vunpack.c.l.b16 %v333
    %v1732 = vunpack.c.h.b16 %v333
    %v1733 = vunpack.c.l.b16 %v334
    %v1734 = vunpack.c.h.b16 %v334
    %v1735 = vunpack.c.l.b16 %v335
    %v1736 = vunpack.c.h.b16 %v335
    %v1737 = vunpack.c.l.b16 %v336
    %v1738 = vunpack.c.h.b16 %v336
    %v1739 = vunpack.c.l.b16 %v337
    %v1740 = vunpack.c.h.b16 %v337
    %v1741 = vunpack.c.l.b16 %v338
    %v1742 = vunpack.c.h.b16 %v338
    %v1743 = vunpack.c.l.b16 %v339
    %v1744 = vunpack.c.h.b16 %v339
    %v1745 = vunpack.c.l.b16 %v340
    %v1746 = vunpack.c.h.b16 %v340
    %v1747 = vunpack.c.l.b16 %v341
    %v1748 = vunpack.c.h.b16 %v341
    %v1749 = vunpack.c.l.b16 %v342
    %v1750 = vunpack.c.h.b16 %v342
    %v1751 = vunpack.c.l.b16 %v343
    %v1752 = vunpack.c.h.b16 %v343
    %v1753 = vunpack.c.l.b16 %v344
    %v1754 = vunpack.c.h.b16 %v344
    %v1755 = vunpack.c.l.b16 %v345
    %v1756 = vunpack.c.h.b16 %v345
    %v1757 = vunpack.c.l.b16 %v346
    %v1758 = vunpack.c.h.b16 %v346
    %v1759 = vunpack.c.l.b16 %v347
    %v1760 = vunpack.c.h.b16 %v347
    %v1761 = vunpack.c.l.b16 %v348
    %v1762 = vunpack.c.h.b16 %v348
    %v1763 = vunpack.c.l.b16 %v349
    %v1764 = vunpack.c.h.b16 %v349
    %v1765 = vunpack.c.l.b16 %v350
    %v1766 = vunpack.c.h.b16 %v350
    %v1767 = vunpack.c.l.b16 %v351
    %v1768 = vunpack.c.h.b16 %v351
    %v1769 = vunpack.c.l.b16 %v352
    %v1770 = vunpack.c.h.b16 %v352
    %v1771 = vunpack.c.l.b16 %v353
    %v1772 = vunpack.c.h.b16 %v353
    %v1773 = vunpack.c.l.b16 %v354
    %v1774 = vunpack.c.h.b16 %v354
    %v1775 = vunpack.c.l.b16 %v355
    %v1776 = vunpack.c.h.b16 %v355
    %v1777 = vunpack.c.l.b16 %v356
    %v1778 = vunpack.c.h.b16 %v356
    %v1779 = vunpack.c.l.b16 %v357
    %v1780 = vunpack.c.h.b16 %v357
    %v1781 = vunpack.c.l.b16 %v358
    %v1782 = vunpack.c.h.b16 %v358
    %v1783 = vunpack.c.l.b16 %v359
    %v1784 = vunpack.c.h.b16 %v359
    %v1785 = vunpack.c.l.b16 %v360
    %v1786 = vunpack.c.h.b16 %v360
    %v1787 = vunpack.c.l.b16 %v361
    %v1788 = vunpack.c.h.b16 %v361
    %v1789 = vunpack.c.l.b16 %v362
    %v1790 = vunpack.c.h.b16 %v362
    %v1791 = vunpack.c.l.b16 %v363
    %v1792 = vunpack.c.h.b16 %v363
    %v1793 = vunpack.c.l.b16 %v364
    %v1794 = vunpack.c.h.b16 %v364
    %v1795 = vunpack.c.l.b16 %v365
    %v1796 = vunpack.c.h.b16 %v365
    %v1797 = vunpack.c.l.b16 %v366
    %v1798 = vunpack.c.h.b16 %v366
    %v1799 = vunpack.c.l.b16 %v367
    %v1800 = vunpack.c.h.b16 %v367
    %v1801 = vunpack.c.l.b16 %v368
    %v1802 = vunpack.c.h.b16 %v368
    %v1803 = vunpack.c.l.b16 %v369
    %v1804 = vunpack.c.h.b16 %v369
    %v1805 = vunpack.c.l.b16 %v370
    %v1806 = vunpack.c.h.b16 %v370
    %v1807 = vunpack.c.l.b16 %v371
    %v1808 = vunpack.c.h.b16 %v371
    %v1809 = vunpack.c.l.b16 %v372
    %v1810 = vunpack.c.h.b16 %v372
    %v1811 = vunpack.c.l.b16 %v373
    %v1812 = vunpack.c.h.b16 %v373
    %v1813 = vunpack.c.l.b16 %v374
    %v1814 = vunpack.c.h.b16 %v374
    %v1815 = vunpack.c.l.b16 %v375
    %v1816 = vunpack.c.h.b16 %v375
    %v1817 = vunpack.c.l.b16 %v376
    %v1818 = vunpack.c.h.b16 %v376
    %v1819 = vunpack.c.l.b16 %v377
    %v1820 = vunpack.c.h.b16 %v377
    %v1821 = vunpack.c.l.b16 %v378
    %v1822 = vunpack.c.h.b16 %v378
    %v1823 = vunpack.c.l.b16 %v379
    %v1824 = vunpack.c.h.b16 %v379
    %v1825 = vunpack.c.l.b16 %v380
    %v1826 = vunpack.c.h.b16 %v380
    %v1827 = vunpack.c.l.b16 %v381
    %v1828 = vunpack.c.h.b16 %v381
    %v1829 = vunpack.c.l.b16 %v382
    %v1830 = vunpack.c.h.b16 %v382
    %v1831 = vunpack.c.l.b16 %v383
    %v1832 = vunpack.c.h.b16 %v383
    %v1833 = vunpack.c.l.b16 %v384
    %v1834 = vunpack.c.h.b16 %v384
    %v1835 = vunpack.c.l.b16 %v385
    %v1836 = vunpack.c.h.b16 %v385
    %v1837 = vunpack.c.l.b16 %v386
    %v1838 = vunpack.c.h.b16 %v386
    %v1839 = vunpack.c.l.b16 %v387
    %v1840 = vunpack.c.h.b16 %v387
    %v1841 = vunpack.c.l.b16 %v388
    %v1842 = vunpack.c.h.b16 %v388
    %v1843 = vunpack.c.l.b16 %v389
    %v1844 = vunpack.c.h.b16 %v389
    %v1845 = vunpack.c.l.b16 %v390
    %v1846 = vunpack.c.h.b16 %v390
    %v1847 = vunpack.c.l.b16 %v391
    %v1848 = vunpack.c.h.b16 %v391
    %v1849 = vunpack.c.l.b16 %v392
    %v1850 = vunpack.c.h.b16 %v392
    %v1851 = vunpack.c.l.b16 %v393
    %v1852 = vunpack.c.h.b16 %v393
    %v1853 = vunpack.c.l.b16 %v394
    %v1854 = vunpack.c.h.b16 %v394
    %v1855 = vunpack.c.l.b16 %v395
    %v1856 = vunpack.c.h.b16 %v395
    %v1857 = vunpack.c.l.b16 %v396
    %v1858 = vunpack.c.h.b16 %v396
    %v1859 = vunpack.c.l.b16 %v397
    %v1860 = vunpack.c.h.b16 %v397
    %v1861 = vunpack.c.l.b16 %v398
    %v1862 = vunpack.c.h.b16 %v398
    %v1863 = vunpack.c.l.b16 %v399
    %v1864 = vunpack.c.h.b16 %v399
    %v1865 = vunpack.c.l.b16 %v400
    %v1866 = vunpack.c.h.b16 %v400
    %v1867 = vunpack.c.l.b16 %v401
    %v1868 = vunpack.c.h.b16 %v401
    %v1869 = vunpack.c.l.b16 %v402
    %v1870 = vunpack.c.h.b16 %v402
    %v1871 = vunpack.c.l.b16 %v403
    %v1872 = vunpack.c.h.b16 %v403
    %v1873 = vunpack.c.l.b16 %v404
    %v1874 = vunpack.c.h.b16 %v404
    %v1875 = vunpack.c.l.b16 %v405
    %v1876 = vunpack.c.h.b16 %v405
    %v1877 = vunpack.c.l.b16 %v406
    %v1878 = vunpack.c.h.b16 %v406
    %v1879 = vunpack.c.l.b16 %v407
    %v1880 = vunpack.c.h.b16 %v407
    %v1881 = vunpack.c.l.b16 %v408
    %v1882 = vunpack.c.h.b16 %v408
    %v1883 = vunpack.c.l.b16 %v409
    %v1884 = vunpack.c.h.b16 %v409
    %v1885 = vunpack.c.l.b16 %v410
    %v1886 = vunpack.c.h.b16 %v410
    %v1887 = vunpack.c.l.b16 %v411
    %v1888 = vunpack.c.h.b16 %v411
    %v1889 = vunpack.c.l.b16 %v412
    %v1890 = vunpack.c.h.b16 %v412
    %v1891 = vunpack.c.l.b16 %v413
    %v1892 = vunpack.c.h.b16 %v413
    %v1893 = vunpack.c.l.b16 %v414
    %v1894 = vunpack.c.h.b16 %v414
    %v1895 = vunpack.c.l.b16 %v415
    %v1896 = vunpack.c.h.b16 %v415
    %v1897 = vunpack.c.l.b16 %v416
    %v1898 = vunpack.c.h.b16 %v416
    %v1899 = vunpack.c.l.b16 %v417
    %v1900 = vunpack.c.h.b16 %v417
    %v1901 = vunpack.c.l.b16 %v418
    %v1902 = vunpack.c.h.b16 %v418
    %v1903 = vunpack.c.l.b16 %v419
    %v1904 = vunpack.c.h.b16 %v419
    %v1905 = vunpack.c.l.b16 %v420
    %v1906 = vunpack.c.h.b16 %v420
    %v1907 = vunpack.c.l.b16 %v421
    %v1908 = vunpack.c.h.b16 %v421
    %v1909 = vunpack.c.l.b16 %v422
    %v1910 = vunpack.c.h.b16 %v422
    %v1911 = vunpack.c.l.b16 %v423
    %v1912 = vunpack.c.h.b16 %v423
    %v1913 = vunpack.c.l.b16 %v424
    %v1914 = vunpack.c.h.b16 %v424
    %v1915 = vunpack.c.l.b16 %v425
    %v1916 = vunpack.c.h.b16 %v425
    %v1917 = vunpack.c.l.b16 %v426
    %v1918 = vunpack.c.h.b16 %v426
    %v1919 = vunpack.c.l.b16 %v427
    %v1920 = vunpack.c.h.b16 %v427
    %v1921 = vunpack.c.l.b16 %v428
    %v1922 = vunpack.c.h.b16 %v428
    %v1923 = vunpack.c.l.b16 %v429
    %v1924 = vunpack.c.h.b16 %v429
    %v1925 = vunpack.c.l.b16 %v430
    %v1926 = vunpack.c.h.b16 %v430
    %v1927 = vunpack.c.l.b16 %v431
    %v1928 = vunpack.c.h.b16 %v431
    %v1929 = vunpack.c.l.b16 %v432
    %v1930 = vunpack.c.h.b16 %v432
    %v1931 = vunpack.c.l.b16 %v433
    %v1932 = vunpack.c.h.b16 %v433
    %v1933 = vunpack.c.l.b16 %v434
    %v1934 = vunpack.c.h.b16 %v434
    %v1935 = vunpack.c.l.b16 %v435
    %v1936 = vunpack.c.h.b16 %v435
    %v1937 = vunpack.c.l.b16 %v436
    %v1938 = vunpack.c.h.b16 %v436
    %v1939 = vunpack.c.l.b16 %v437
    %v1940 = vunpack.c.h.b16 %v437
    %v1941 = vunpack.c.l.b16 %v438
    %v1942 = vunpack.c.h.b16 %v438
    %v1943 = vunpack.c.l.b16 %v439
    %v1944 = vunpack.c.h.b16 %v439
    %v1945 = vunpack.c.l.b16 %v440
    %v1946 = vunpack.c.h.b16 %v440
    %v1947 = vunpack.c.l.b16 %v441
    %v1948 = vunpack.c.h.b16 %v441
    %v1949 = vunpack.c.l.b16 %v442
    %v1950 = vunpack.c.h.b16 %v442
    %v1951 = vunpack.c.l.b16 %v443
    %v1952 = vunpack.c.h.b16 %v443
    %v1953 = vunpack.c.l.b16 %v444
    %v1954 = vunpack.c.h.b16 %v444
    %v1955 = vunpack.c.l.b16 %v445
    %v1956 = vunpack.c.h.b16 %v445
    %v1957 = vunpack.c.l.b16 %v446
    %v1958 = vunpack.c.h.b16 %v446
    %v1959 = vunpack.c.l.b16 %v447
    %v1960 = vunpack.c.h.b16 %v447
    %v1961 = vunpack.c.l.b16 %v448
    %v1962 = vunpack.c.h.b16 %v448
    %v1963 = vunpack.c.l.b16 %v449
    %v1964 = vunpack.c.h.b16 %v449
    %v1965 = vunpack.c.l.b16 %v450
    %v1966 = vunpack.c.h.b16 %v450
    %v1967 = vunpack.c.l.b16 %v451
    %v1968 = vunpack.c.h.b16 %v451
    %v1969 = vunpack.c.l.b16 %v452
    %v1970 = vunpack.c.h.b16 %v452
    %v1971 = vunpack.c.l.b16 %v453
    %v1972 = vunpack.c.h.b16 %v453
    %v1973 = vunpack.c.l.b16 %v454
    %v1974 = vunpack.c.h.b16 %v454
    %v1975 = vunpack.c.l.b16 %v455
    %v1976 = vunpack.c.h.b16 %v455
    %v1977 = vunpack.c.l.b16 %v456
    %v1978 = vunpack.c.h.b16 %v456
    %v1979 = vunpack.c.l.b16 %v457
    %v1980 = vunpack.c.h.b16 %v457
    %v1981 = vunpack.c.l.b16 %v458
    %v1982 = vunpack.c.h.b16 %v458
    %v1983 = vunpack.c.l.b16 %v459
    %v1984 = vunpack.c.h.b16 %v459
    %v1985 = vunpack.c.l.b16 %v460
    %v1986 = vunpack.c.h.b16 %v460
    %v1987 = vunpack.c.l.b16 %v461
    %v1988 = vunpack.c.h.b16 %v461
    %v1989 = vunpack.c.l.b16 %v462
    %v1990 = vunpack.c.h.b16 %v462
    %v1991 = vunpack.c.l.b16 %v463
    %v1992 = vunpack.c.h.b16 %v463
    %v1993 = vunpack.c.l.b16 %v464
    %v1994 = vunpack.c.h.b16 %v464
    %v1995 = vunpack.c.l.b16 %v465
    %v1996 = vunpack.c.h.b16 %v465
    %v1997 = vunpack.c.l.b16 %v466
    %v1998 = vunpack.c.h.b16 %v466
    %v1999 = vunpack.c.l.b16 %v467
    %v2000 = vunpack.c.h.b16 %v467
    %v2001 = vunpack.c.l.b16 %v468
    %v2002 = vunpack.c.h.b16 %v468
    %v2003 = vunpack.c.l.b16 %v469
    %v2004 = vunpack.c.h.b16 %v469
    %v2005 = vunpack.c.l.b16 %v470
    %v2006 = vunpack.c.h.b16 %v470
    %v2007 = vunpack.c.l.b16 %v471
    %v2008 = vunpack.c.h.b16 %v471
    %v2009 = vunpack.c.l.b16 %v472
    %v2010 = vunpack.c.h.b16 %v472
    %v2011 = vunpack.c.l.b16 %v473
    %v2012 = vunpack.c.h.b16 %v473
    %v2013 = vunpack.c.l.b16 %v474
    %v2014 = vunpack.c.h.b16 %v474
    %v2015 = vunpack.c.l.b16 %v475
    %v2016 = vunpack.c.h.b16 %v475
    %v2017 = vunpack.c.l.b16 %v476
    %v2018 = vunpack.c.h.b16 %v476
    %v2019 = vunpack.c.l.b16 %v477
    %v2020 = vunpack.c.h.b16 %v477
    %v2021 = vunpack.c.l.b16 %v478
    %v2022 = vunpack.c.h.b16 %v478
    %v2023 = vunpack.c.l.b16 %v479
    %v2024 = vunpack.c.h.b16 %v479
    %v2025 = vunpack.c.l.b16 %v480
    %v2026 = vunpack.c.h.b16 %v480
    %v2027 = vunpack.c.l.b16 %v481
    %v2028 = vunpack.c.h.b16 %v481
    %v2029 = vunpack.c.l.b16 %v482
    %v2030 = vunpack.c.h.b16 %v482
    %v2031 = vunpack.c.l.b16 %v483
    %v2032 = vunpack.c.h.b16 %v483
    %v2033 = vunpack.c.l.b16 %v484
    %v2034 = vunpack.c.h.b16 %v484
    %v2035 = vunpack.c.l.b16 %v485
    %v2036 = vunpack.c.h.b16 %v485
    %v2037 = vunpack.c.l.b16 %v486
    %v2038 = vunpack.c.h.b16 %v486
    %v2039 = vunpack.c.l.b16 %v487
    %v2040 = vunpack.c.h.b16 %v487
    %v2041 = vunpack.c.l.b16 %v488
    %v2042 = vunpack.c.h.b16 %v488
    %v2043 = vunpack.c.l.b16 %v489
    %v2044 = vunpack.c.h.b16 %v489
    %v2045 = vunpack.c.l.b16 %v490
    %v2046 = vunpack.c.h.b16 %v490
    %v2047 = vunpack.c.l.b16 %v491
    %v2048 = vunpack.c.h.b16 %v491
    %v2049 = vunpack.c.l.b16 %v492
    %v2050 = vunpack.c.h.b16 %v492
    %v2051 = vunpack.c.l.b16 %v493
    %v2052 = vunpack.c.h.b16 %v493
    %v2053 = vunpack.c.l.b16 %v494
    %v2054 = vunpack.c.h.b16 %v494
    %v2055 = vunpack.c.l.b16 %v495
    %v2056 = vunpack.c.h.b16 %v495
    %v2057 = vunpack.c.l.b16 %v496
    %v2058 = vunpack.c.h.b16 %v496
    %v2059 = vunpack.c.l.b16 %v497
    %v2060 = vunpack.c.h.b16 %v497
    %v2061 = vunpack.c.l.b16 %v498
    %v2062 = vunpack.c.h.b16 %v498
    %v2063 = vunpack.c.l.b16 %v499
    %v2064 = vunpack.c.h.b16 %v499
    %v2065 = vunpack.c.l.b16 %v500
    %v2066 = vunpack.c.h.b16 %v500
    %v2067 = vunpack.c.l.b16 %v501
    %v2068 = vunpack.c.h.b16 %v501
    %v2069 = vunpack.c.l.b16 %v502
    %v2070 = vunpack.c.h.b16 %v502
    %v2071 = vunpack.c.l.b16 %v503
    %v2072 = vunpack.c.h.b16 %v503
    %v2073 = vunpack.c.l.b16 %v504
    %v2074 = vunpack.c.h.b16 %v504
    %v2075 = vunpack.c.l.b16 %v505
    %v2076 = vunpack.c.h.b16 %v505
    %v2077 = vunpack.c.l.b16 %v506
    %v2078 = vunpack.c.h.b16 %v506
    %v2079 = vunpack.c.l.b16 %v507
    %v2080 = vunpack.c.h.b16 %v507
    %v2081 = vunpack.c.l.b16 %v508
    %v2082 = vunpack.c.h.b16 %v508
    %v2083 = vunpack.c.l.b16 %v509
    %v2084 = vunpack.c.h.b16 %v509
    %v2085 = vunpack.c.l.b16 %v510
    %v2086 = vunpack.c.h.b16 %v510
    %v2087 = vunpack.c.l.b16 %v511
    %v2088 = vunpack.c.h.b16 %v511
    %v2089 = vunpack.c.l.b16 %v512
    %v2090 = vunpack.c.h.b16 %v512
    %v2091 = vunpack.c.l.b16 %v513
    %v2092 = vunpack.c.h.b16 %v513
    %v2093 = vunpack.c.l.b16 %v514
    %v2094 = vunpack.c.h.b16 %v514
    %v2095 = vunpack.c.l.b16 %v515
    %v2096 = vunpack.c.h.b16 %v515
    %v2097 = vunpack.c.l.b16 %v516
    %v2098 = vunpack.c.h.b16 %v516
    %v2099 = vunpack.c.l.b16 %v517
    %v2100 = vunpack.c.h.b16 %v517
    %v2101 = vunpack.c.l.b16 %v518
    %v2102 = vunpack.c.h.b16 %v518
    %v2103 = vunpack.c.l.b16 %v519
    %v2104 = vunpack.c.h.b16 %v519
    %v2105 = vunpack.c.l.b16 %v520
    %v2106 = vunpack.c.h.b16 %v520
    %v2107 = vunpack.c.l.b16 %v521
    %v2108 = vunpack.c.h.b16 %v521
    %v2109 = vunpack.c.l.b16 %v522
    %v2110 = vunpack.c.h.b16 %v522
    %v2111 = vunpack.c.l.b16 %v523
    %v2112 = vunpack.c.h.b16 %v523
    %v2113 = vunpack.c.l.b16 %v524
    %v2114 = vunpack.c.h.b16 %v524
    %v2115 = vunpack.c.l.b16 %v525
    %v2116 = vunpack.c.h.b16 %v525
    %v2117 = vunpack.c.l.b16 %v526
    %v2118 = vunpack.c.h.b16 %v526
    %v2119 = vunpack.c.l.b16 %v527
    %v2120 = vunpack.c.h.b16 %v527
    %v2121 = vunpack.c.l.b16 %v528
    %v2122 = vunpack.c.h.b16 %v528
    %v2123 = vunpack.c.l.b16 %v529
    %v2124 = vunpack.c.h.b16 %v529
    %v2125 = vunpack.c.l.b16 %v530
    %v2126 = vunpack.c.h.b16 %v530
    %v2127 = vunpack.c.l.b16 %v531
    %v2128 = vunpack.c.h.b16 %v531
    %v2129 = vunpack.c.l.b16 %v532
    %v2130 = vunpack.c.h.b16 %v532
    %v2131 = vunpack.c.l.b16 %v533
    %v2132 = vunpack.c.h.b16 %v533
    %v2133 = vunpack.c.l.b16 %v534
    %v2134 = vunpack.c.h.b16 %v534
    %v2135 = vunpack.c.l.b16 %v535
    %v2136 = vunpack.c.h.b16 %v535
    %v2137 = vunpack.c.l.b16 %v536
    %v2138 = vunpack.c.h.b16 %v536
    %v2139 = vunpack.c.l.b16 %v537
    %v2140 = vunpack.c.h.b16 %v537
    %v2141 = vunpack.c.l.b16 %v538
    %v2142 = vunpack.c.h.b16 %v538
    %v2143 = vunpack.c.l.b16 %v539
    %v2144 = vunpack.c.h.b16 %v539
    %v2145 = vunpack.c.l.b16 %v540
    %v2146 = vunpack.c.h.b16 %v540
    %v2147 = vunpack.c.l.b16 %v541
    %v2148 = vunpack.c.h.b16 %v541
    %v2149 = vunpack.c.l.b16 %v542
    %v2150 = vunpack.c.h.b16 %v542
    %v2151 = vunpack.c.l.b16 %v543
    %v2152 = vunpack.c.h.b16 %v543
    %v2153 = vunpack.c.l.b16 %v544
    %v2154 = vunpack.c.h.b16 %v544
    %v2155 = vunpack.c.l.b16 %v545
    %v2156 = vunpack.c.h.b16 %v545
    %v2157 = vunpack.c.l.b16 %v546
    %v2158 = vunpack.c.h.b16 %v546
    %v2159 = vunpack.c.l.b16 %v547
    %v2160 = vunpack.c.h.b16 %v547
    %v2161 = vunpack.c.l.b16 %v548
    %v2162 = vunpack.c.h.b16 %v548
    %v2163 = vunpack.c.l.b16 %v549
    %v2164 = vunpack.c.h.b16 %v549
    %v2165 = vunpack.c.l.b16 %v550
    %v2166 = vunpack.c.h.b16 %v550
    %v2167 = vunpack.c.l.b16 %v551
    %v2168 = vunpack.c.h.b16 %v551
    %v2169 = vunpack.c.l.b16 %v552
    %v2170 = vunpack.c.h.b16 %v552
    %v2171 = vunpack.c.l.b16 %v553
    %v2172 = vunpack.c.h.b16 %v553
    %v2173 = vunpack.c.l.b16 %v554
    %v2174 = vunpack.c.h.b16 %v554
    %v2175 = vunpack.c.l.b16 %v555
    %v2176 = vunpack.c.h.b16 %v555
    %v2177 = vunpack.c.l.b16 %v556
    %v2178 = vunpack.c.h.b16 %v556
    %v2179 = vunpack.c.l.b16 %v557
    %v2180 = vunpack.c.h.b16 %v557
    %v2181 = vunpack.c.l.b16 %v558
    %v2182 = vunpack.c.h.b16 %v558
    %v2183 = vunpack.c.l.b16 %v559
    %v2184 = vunpack.c.h.b16 %v559
    %v2185 = vunpack.c.l.b16 %v560
    %v2186 = vunpack.c.h.b16 %v560
    %v2187 = vunpack.c.l.b16 %v561
    %v2188 = vunpack.c.h.b16 %v561
    %v2189 = vunpack.c.l.b16 %v562
    %v2190 = vunpack.c.h.b16 %v562
    %v2191 = vunpack.c.l.b16 %v563
    %v2192 = vunpack.c.h.b16 %v563
    %v2193 = vunpack.c.l.b16 %v564
    %v2194 = vunpack.c.h.b16 %v564
    %v2195 = vunpack.c.l.b16 %v565
    %v2196 = vunpack.c.h.b16 %v565
    %v2197 = vunpack.c.l.b16 %v566
    %v2198 = vunpack.c.h.b16 %v566
    %v2199 = vunpack.c.l.b16 %v567
    %v2200 = vunpack.c.h.b16 %v567
    %v2201 = vunpack.c.l.b16 %v568
    %v2202 = vunpack.c.h.b16 %v568
    %v2203 = vunpack.c.l.b16 %v569
    %v2204 = vunpack.c.h.b16 %v569
    %v2205 = vunpack.c.l.b16 %v570
    %v2206 = vunpack.c.h.b16 %v570
    %v2207 = vunpack.c.l.b16 %v571
    %v2208 = vunpack.c.h.b16 %v571
    %v2209 = vunpack.c.l.b16 %v572
    %v2210 = vunpack.c.h.b16 %v572
    %v2211 = vunpack.c.l.b16 %v573
    %v2212 = vunpack.c.h.b16 %v573
    %v2213 = vunpack.c.l.b16 %v574
    %v2214 = vunpack.c.h.b16 %v574
    %v2215 = vunpack.c.l.b16 %v575
    %v2216 = vunpack.c.h.b16 %v575
    %v2217 = vunpack.c.l.b16 %v576
    %v2218 = vunpack.c.h.b16 %v576
    %v2219 = vunpack.c.l.b16 %v577
    %v2220 = vunpack.c.h.b16 %v577
    %v2221 = vunpack.c.l.b16 %v578
    %v2222 = vunpack.c.h.b16 %v578
    %v2223 = vunpack.c.l.b16 %v579
    %v2224 = vunpack.c.h.b16 %v579
    %v2225 = vunpack.c.l.b16 %v580
    %v2226 = vunpack.c.h.b16 %v580
    %v2227 = vunpack.c.l.b16 %v581
    %v2228 = vunpack.c.h.b16 %v581
    %v2229 = vunpack.c.l.b16 %v582
    %v2230 = vunpack.c.h.b16 %v582
    %v2231 = vunpack.c.l.b16 %v583
    %v2232 = vunpack.c.h.b16 %v583
    %v2233 = vunpack.c.l.b16 %v584
    %v2234 = vunpack.c.h.b16 %v584
    %v2235 = vunpack.c.l.b16 %v585
    %v2236 = vunpack.c.h.b16 %v585
    %v2237 = vunpack.c.l.b16 %v586
    %v2238 = vunpack.c.h.b16 %v586
    %v2239 = vpack.c.b16 %v1219, %v1215
    %v2240 = vpack.c.b16 %v1220, %v1216
    %v2241 = vpack.c.b16 %v1221, %v1217
    %v2242 = vpack.c.b16 %v1222, %v1218
    %v2243 = vpack.c.b16 %v1227, %v1223
    %v2244 = vpack.c.b16 %v1228, %v1224
    %v2245 = vpack.c.b16 %v1229, %v1225
    %v2246 = vpack.c.b16 %v1230, %v1226
    %v2247 = vpack.c.b16 %v1235, %v1231
    %v2248 = vpack.c.b16 %v1236, %v1232
    %v2249 = vpack.c.b16 %v1237, %v1233
    %v2250 = vpack.c.b16 %v1238, %v1234
    %v2251 = vpack.c.b16 %v1243, %v1239
    %v2252 = vpack.c.b16 %v1244, %v1240
    %v2253 = vpack.c.b16 %v1245, %v1241
    %v2254 = vpack.c.b16 %v1246, %v1242
    %v2255 = vpack.c.b16 %v1251, %v1247
    %v2256 = vpack.c.b16 %v1252, %v1248
    %v2257 = vpack.c.b16 %v1253, %v1249
    %v2258 = vpack.c.b16 %v1254, %v1250
    %v2259 = vpack.c.b16 %v1259, %v1255
    %v2260 = vpack.c.b16 %v1260, %v1256
    %v2261 = vpack.c.b16 %v1261, %v1257
    %v2262 = vpack.c.b16 %v1262, %v1258
    %v2263 = vpack.c.b16 %v1267, %v1263
    %v2264 = vpack.c.b16 %v1268, %v1264
    %v2265 = vpack.c.b16 %v1269, %v1265
    %v2266 = vpack.c.b16 %v1270, %v1266
    %v2267 = vpack.c.b16 %v1275, %v1271
    %v2268 = vpack.c.b16 %v1276, %v1272
    %v2269 = vpack.c.b16 %v1277, %v1273
    %v2270 = vpack.c.b16 %v1278, %v1274
    %v2271 = vpack.c.b16 %v1283, %v1279
    %v2272 = vpack.c.b16 %v1284, %v1280
    %v2273 = vpack.c.b16 %v1285, %v1281
    %v2274 = vpack.c.b16 %v1286, %v1282
    %v2275 = vpack.c.b16 %v1291, %v1287
    %v2276 = vpack.c.b16 %v1292, %v1288
    %v2277 = vpack.c.b16 %v1293, %v1289
    %v2278 = vpack.c.b16 %v1294, %v1290
    %v2279 = vpack.c.b16 %v1299, %v1295
    %v2280 = vpack.c.b16 %v1300, %v1296
    %v2281 = vpack.c.b16 %v1301, %v1297
    %v2282 = vpack.c.b16 %v1302, %v1298
    %v2283 = vpack.c.b16 %v1307, %v1303
    %v2284 = vpack.c.b16 %v1308, %v1304
    %v2285 = vpack.c.b16 %v1309, %v1305
    %v2286 = vpack.c.b16 %v1310, %v1306
    %v2287 = vpack.c.b16 %v1315, %v1311
    %v2288 = vpack.c.b16 %v1316, %v1312
    %v2289 = vpack.c.b16 %v1317, %v1313
    %v2290 = vpack.c.b16 %v1318, %v1314
    %v2291 = vpack.c.b16 %v1323, %v1319
    %v2292 = vpack.c.b16 %v1324, %v1320
    %v2293 = vpack.c.b16 %v1325, %v1321
    %v2294 = vpack.c.b16 %v1326, %v1322
    %v2295 = vpack.c.b16 %v1331, %v1327
    %v2296 = vpack.c.b16 %v1332, %v1328
    %v2297 = vpack.c.b16 %v1333, %v1329
    %v2298 = vpack.c.b16 %v1334, %v1330
    %v2299 = vpack.c.b16 %v1339, %v1335
    %v2300 = vpack.c.b16 %v1340, %v1336
    %v2301 = vpack.c.b16 %v1341, %v1337
    %v2302 = vpack.c.b16 %v1342, %v1338
    %v2303 = vpack.c.b16 %v1347, %v1343
    %v2304 = vpack.c.b16 %v1348, %v1344
    %v2305 = vpack.c.b16 %v1349, %v1345
    %v2306 = vpack.c.b16 %v1350, %v1346
    %v2307 = vpack.c.b16 %v1355, %v1351
    %v2308 = vpack.c.b16 %v1356, %v1352
    %v2309 = vpack.c.b16 %v1357, %v1353
    %v2310 = vpack.c.b16 %v1358, %v1354
    %v2311 = vpack.c.b16 %v1363, %v1359
    %v2312 = vpack.c.b16 %v1364, %v1360
    %v2313 = vpack.c.b16 %v1365, %v1361
    %v2314 = vpack.c.b16 %v1366, %v1362
    %v2315 = vpack.c.b16 %v1371, %v1367
    %v2316 = vpack.c.b16 %v1372, %v1368
    %v2317 = vpack.c.b16 %v1373, %v1369
    %v2318 = vpack.c.b16 %v1374, %v1370
    %v2319 = vpack.c.b16 %v1379, %v1375
    %v2320 = vpack.c.b16 %v1380, %v1376
    %v2321 = vpack.c.b16 %v1381, %v1377
    %v2322 = vpack.c.b16 %v1382, %v1378
    %v2323 = vpack.c.b16 %v1387, %v1383
    %v2324 = vpack.c.b16 %v1388, %v1384
    %v2325 = vpack.c.b16 %v1389, %v1385
    %v2326 = vpack.c.b16 %v1390, %v1386
    %v2327 = vpack.c.b16 %v1395, %v1391
    %v2328 = vpack.c.b16 %v1396, %v1392
    %v2329 = vpack.c.b16 %v1397, %v1393
    %v2330 = vpack.c.b16 %v1398, %v1394
    %v2331 = vpack.c.b16 %v1403, %v1399
    %v2332 = vpack.c.b16 %v1404, %v1400
    %v2333 = vpack.c.b16 %v1405, %v1401
    %v2334 = vpack.c.b16 %v1406, %v1402
    %v2335 = vpack.c.b16 %v1411, %v1407
    %v2336 = vpack.c.b16 %v1412, %v1408
    %v2337 = vpack.c.b16 %v1413, %v1409
    %v2338 = vpack.c.b16 %v1414, %v1410
    %v2339 = vpack.c.b16 %v1419, %v1415
    %v2340 = vpack.c.b16 %v1420, %v1416
    %v2341 = vpack.c.b16 %v1421, %v1417
    %v2342 = vpack.c.b16 %v1422, %v1418
    %v2343 = vpack.c.b16 %v1427, %v1423
    %v2344 = vpack.c.b16 %v1428, %v1424
    %v2345 = vpack.c.b16 %v1429, %v1425
    %v2346 = vpack.c.b16 %v1430, %v1426
    %v2347 = vpack.c.b16 %v1435, %v1431
    %v2348 = vpack.c.b16 %v1436, %v1432
    %v2349 = vpack.c.b16 %v1437, %v1433
    %v2350 = vpack.c.b16 %v1438, %v1434
    %v2351 = vpack.c.b16 %v1443, %v1439
    %v2352 = vpack.c.b16 %v1444, %v1440
    %v2353 = vpack.c.b16 %v1445, %v1441
    %v2354 = vpack.c.b16 %v1446, %v1442
    %v2355 = vpack.c.b16 %v1451, %v1447
    %v2356 = vpack.c.b16 %v1452, %v1448
    %v2357 = vpack.c.b16 %v1453, %v1449
    %v2358 = vpack.c.b16 %v1454, %v1450
    %v2359 = vpack.c.b16 %v1459, %v1455
    %v2360 = vpack.c.b16 %v1460, %v1456
    %v2361 = vpack.c.b16 %v1461, %v1457
    %v2362 = vpack.c.b16 %v1462, %v1458
    %v2363 = vpack.c.b16 %v1467, %v1463
    %v2364 = vpack.c.b16 %v1468, %v1464
    %v2365 = vpack.c.b16 %v1469, %v1465
    %v2366 = vpack.c.b16 %v1470, %v1466
    %v2367 = vpack.c.b16 %v1475, %v1471
    %v2368 = vpack.c.b16 %v1476, %v1472
    %v2369 = vpack.c.b16 %v1477, %v1473
    %v2370 = vpack.c.b16 %v1478, %v1474
    %v2371 = vpack.c.b16 %v1483, %v1479
    %v2372 = vpack.c.b16 %v1484, %v1480
    %v2373 = vpack.c.b16 %v1485, %v1481
    %v2374 = vpack.c.b16 %v1486, %v1482
    %v2375 = vpack.c.b16 %v1491, %v1487
    %v2376 = vpack.c.b16 %v1492, %v1488
    %v2377 = vpack.c.b16 %v1493, %v1489
    %v2378 = vpack.c.b16 %v1494, %v1490
    %v2379 = vpack.c.b16 %v1499, %v1495
    %v2380 = vpack.c.b16 %v1500, %v1496
    %v2381 = vpack.c.b16 %v1501, %v1497
    %v2382 = vpack.c.b16 %v1502, %v1498
    %v2383 = vpack.c.b16 %v1507, %v1503
    %v2384 = vpack.c.b16 %v1508, %v1504
    %v2385 = vpack.c.b16 %v1509, %v1505
    %v2386 = vpack.c.b16 %v1510, %v1506
    %v2387 = vpack.c.b16 %v1515, %v1511
    %v2388 = vpack.c.b16 %v1516, %v1512
    %v2389 = vpack.c.b16 %v1517, %v1513
    %v2390 = vpack.c.b16 %v1518, %v1514
    %v2391 = vpack.c.b16 %v1523, %v1519
    %v2392 = vpack.c.b16 %v1524, %v1520
    %v2393 = vpack.c.b16 %v1525, %v1521
    %v2394 = vpack.c.b16 %v1526, %v1522
    %v2395 = vpack.c.b16 %v1531, %v1527
    %v2396 = vpack.c.b16 %v1532, %v1528
    %v2397 = vpack.c.b16 %v1533, %v1529
    %v2398 = vpack.c.b16 %v1534, %v1530
    %v2399 = vpack.c.b16 %v1539, %v1535
    %v2400 = vpack.c.b16 %v1540, %v1536
    %v2401 = vpack.c.b16 %v1541, %v1537
    %v2402 = vpack.c.b16 %v1542, %v1538
    %v2403 = vpack.c.b16 %v1547, %v1543
    %v2404 = vpack.c.b16 %v1548, %v1544
    %v2405 = vpack.c.b16 %v1549, %v1545
    %v2406 = vpack.c.b16 %v1550, %v1546
    %v2407 = vpack.c.b16 %v1555, %v1551
    %v2408 = vpack.c.b16 %v1556, %v1552
    %v2409 = vpack.c.b16 %v1557, %v1553
    %v2410 = vpack.c.b16 %v1558, %v1554
    %v2411 = vpack.c.b16 %v1563, %v1559
    %v2412 = vpack.c.b16 %v1564, %v1560
    %v2413 = vpack.c.b16 %v1565, %v1561
    %v2414 = vpack.c.b16 %v1566, %v1562
    %v2415 = vpack.c.b16 %v1571, %v1567
    %v2416 = vpack.c.b16 %v1572, %v1568
    %v2417 = vpack.c.b16 %v1573, %v1569
    %v2418 = vpack.c.b16 %v1574, %v1570
    %v2419 = vpack.c.b16 %v1579, %v1575
    %v2420 = vpack.c.b16 %v1580, %v1576
    %v2421 = vpack.c.b16 %v1581, %v1577
    %v2422 = vpack.c.b16 %v1582, %v1578
    %v2423 = vpack.c.b16 %v1587, %v1583
    %v2424 = vpack.c.b16 %v1588, %v1584
    %v2425 = vpack.c.b16 %v1589, %v1585
    %v2426 = vpack.c.b16 %v1590, %v1586
    %v2427 = vpack.c.b16 %v1595, %v1591
    %v2428 = vpack.c.b16 %v1596, %v1592
    %v2429 = vpack.c.b16 %v1597, %v1593
    %v2430 = vpack.c.b16 %v1598, %v1594
    %v2431 = vpack.c.b16 %v1603, %v1599
    %v2432 = vpack.c.b16 %v1604, %v1600
    %v2433 = vpack.c.b16 %v1605, %v1601
    %v2434 = vpack.c.b16 %v1606, %v1602
    %v2435 = vpack.c.b16 %v1611, %v1607
    %v2436 = vpack.c.b16 %v1612, %v1608
    %v2437 = vpack.c.b16 %v1613, %v1609
    %v2438 = vpack.c.b16 %v1614, %v1610
    %v2439 = vpack.c.b16 %v1619, %v1615
    %v2440 = vpack.c.b16 %v1620, %v1616
    %v2441 = vpack.c.b16 %v1621, %v1617
    %v2442 = vpack.c.b16 %v1622, %v1618
    %v2443 = vpack.c.b16 %v1627, %v1623
    %v2444 = vpack.c.b16 %v1628, %v1624
    %v2445 = vpack.c.b16 %v1629, %v1625
    %v2446 = vpack.c.b16 %v1630, %v1626
    %v2447 = vpack.c.b16 %v1635, %v1631
    %v2448 = vpack.c.b16 %v1636, %v1632
    %v2449 = vpack.c.b16 %v1637, %v1633
    %v2450 = vpack.c.b16 %v1638, %v1634
    %v2451 = vpack.c.b16 %v1643, %v1639
    %v2452 = vpack.c.b16 %v1644, %v1640
    %v2453 = vpack.c.b16 %v1645, %v1641
    %v2454 = vpack.c.b16 %v1646, %v1642
    %v2455 = vpack.c.b16 %v1651, %v1647
    %v2456 = vpack.c.b16 %v1652, %v1648
    %v2457 = vpack.c.b16 %v1653, %v1649
    %v2458 = vpack.c.b16 %v1654, %v1650
    %v2459 = vpack.c.b16 %v1659, %v1655
    %v2460 = vpack.c.b16 %v1660, %v1656
    %v2461 = vpack.c.b16 %v1661, %v1657
    %v2462 = vpack.c.b16 %v1662, %v1658
    %v2463 = vpack.c.b16 %v1667, %v1663
    %v2464 = vpack.c.b16 %v1668, %v1664
    %v2465 = vpack.c.b16 %v1669, %v1665
    %v2466 = vpack.c.b16 %v1670, %v1666
    %v2467 = vpack.c.b16 %v1675, %v1671
    %v2468 = vpack.c.b16 %v1676, %v1672
    %v2469 = vpack.c.b16 %v1677, %v1673
    %v2470 = vpack.c.b16 %v1678, %v1674
    %v2471 = vpack.c.b16 %v1683, %v1679
    %v2472 = vpack.c.b16 %v1684, %v1680
    %v2473 = vpack.c.b16 %v1685, %v1681
    %v2474 = vpack.c.b16 %v1686, %v1682
    %v2475 = vpack.c.b16 %v1691, %v1687
    %v2476 = vpack.c.b16 %v1692, %v1688
    %v2477 = vpack.c.b16 %v1693, %v1689
    %v2478 = vpack.c.b16 %v1694, %v1690
    %v2479 = vpack.c.b16 %v1699, %v1695
    %v2480 = vpack.c.b16 %v1700, %v1696
    %v2481 = vpack.c.b16 %v1701, %v1697
    %v2482 = vpack.c.b16 %v1702, %v1698
    %v2483 = vpack.c.b16 %v1707, %v1703
    %v2484 = vpack.c.b16 %v1708, %v1704
    %v2485 = vpack.c.b16 %v1709, %v1705
    %v2486 = vpack.c.b16 %v1710, %v1706
    %v2487 = vpack.c.b16 %v1715, %v1711
    %v2488 = vpack.c.b16 %v1716, %v1712
    %v2489 = vpack.c.b16 %v1717, %v1713
    %v2490 = vpack.c.b16 %v1718, %v1714
    %v2491 = vpack.c.b16 %v1723, %v1719
    %v2492 = vpack.c.b16 %v1724, %v1720
    %v2493 = vpack.c.b16 %v1725, %v1721
    %v2494 = vpack.c.b16 %v1726, %v1722
    %v2495 = vpack.c.b16 %v1731, %v1727
    %v2496 = vpack.c.b16 %v1732, %v1728
    %v2497 = vpack.c.b16 %v1733, %v1729
    %v2498 = vpack.c.b16 %v1734, %v1730
    %v2499 = vpack.c.b16 %v1739, %v1735
    %v2500 = vpack.c.b16 %v1740, %v1736
    %v2501 = vpack.c.b16 %v1741, %v1737
    %v2502 = vpack.c.b16 %v1742, %v1738
    %v2503 = vpack.c.b16 %v1747, %v1743
    %v2504 = vpack.c.b16 %v1748, %v1744
    %v2505 = vpack.c.b16 %v1749, %v1745
    %v2506 = vpack.c.b16 %v1750, %v1746
    %v2507 = vpack.c.b16 %v1755, %v1751
    %v2508 = vpack.c.b16 %v1756, %v1752
    %v2509 = vpack.c.b16 %v1757, %v1753
    %v2510 = vpack.c.b16 %v1758, %v1754
    %v2511 = vpack.c.b16 %v1763, %v1759
    %v2512 = vpack.c.b16 %v1764, %v1760
    %v2513 = vpack.c.b16 %v1765, %v1761
    %v2514 = vpack.c.b16 %v1766, %v1762
    %v2515 = vpack.c.b16 %v1771, %v1767
    %v2516 = vpack.c.b16 %v1772, %v1768
    %v2517 = vpack.c.b16 %v1773, %v1769
    %v2518 = vpack.c.b16 %v1774, %v1770
    %v2519 = vpack.c.b16 %v1779, %v1775
    %v2520 = vpack.c.b16 %v1780, %v1776
    %v2521 = vpack.c.b16 %v1781, %v1777
    %v2522 = vpack.c.b16 %v1782, %v1778
    %v2523 = vpack.c.b16 %v1787, %v1783
    %v2524 = vpack.c.b16 %v1788, %v1784
    %v2525 = vpack.c.b16 %v1789, %v1785
    %v2526 = vpack.c.b16 %v1790, %v1786
    %v2527 = vpack.c.b16 %v1795, %v1791
    %v2528 = vpack.c.b16 %v1796, %v1792
    %v2529 = vpack.c.b16 %v1797, %v1793
    %v2530 = vpack.c.b16 %v1798, %v1794
    %v2531 = vpack.c.b16 %v1803, %v1799
    %v2532 = vpack.c.b16 %v1804, %v1800
    %v2533 = vpack.c.b16 %v1805, %v1801
    %v2534 = vpack.c.b16 %v1806, %v1802
    %v2535 = vpack.c.b16 %v1811, %v1807
    %v2536 = vpack.c.b16 %v1812, %v1808
    %v2537 = vpack.c.b16 %v1813, %v1809
    %v2538 = vpack.c.b16 %v1814, %v1810
    %v2539 = vpack.c.b16 %v1819, %v1815
    %v2540 = vpack.c.b16 %v1820, %v1816
    %v2541 = vpack.c.b16 %v1821, %v1817
    %v2542 = vpack.c.b16 %v1822, %v1818
    %v2543 = vpack.c.b16 %v1827, %v1823
    %v2544 = vpack.c.b16 %v1828, %v1824
    %v2545 = vpack.c.b16 %v1829, %v1825
    %v2546 = vpack.c.b16 %v1830, %v1826
    %v2547 = vpack.c.b16 %v1835, %v1831
    %v2548 = vpack.c.b16 %v1836, %v1832
    %v2549 = vpack.c.b16 %v1837, %v1833
    %v2550 = vpack.c.b16 %v1838, %v1834
    %v2551 = vpack.c.b16 %v1843, %v1839
    %v2552 = vpack.c.b16 %v1844, %v1840
    %v2553 = vpack.c.b16 %v1845, %v1841
    %v2554 = vpack.c.b16 %v1846, %v1842
    %v2555 = vpack.c.b16 %v1851, %v1847
    %v2556 = vpack.c.b16 %v1852, %v1848
    %v2557 = vpack.c.b16 %v1853, %v1849
    %v2558 = vpack.c.b16 %v1854, %v1850
    %v2559 = vpack.c.b16 %v1859, %v1855
    %v2560 = vpack.c.b16 %v1860, %v1856
    %v2561 = vpack.c.b16 %v1861, %v1857
    %v2562 = vpack.c.b16 %v1862, %v1858
    %v2563 = vpack.c.b16 %v1867, %v1863
    %v2564 = vpack.c.b16 %v1868, %v1864
    %v2565 = vpack.c.b16 %v1869, %v1865
    %v2566 = vpack.c.b16 %v1870, %v1866
    %v2567 = vpack.c.b16 %v1875, %v1871
    %v2568 = vpack.c.b16 %v1876, %v1872
    %v2569 = vpack.c.b16 %v1877, %v1873
    %v2570 = vpack.c.b16 %v1878, %v1874
    %v2571 = vpack.c.b16 %v1883, %v1879
    %v2572 = vpack.c.b16 %v1884, %v1880
    %v2573 = vpack.c.b16 %v1885, %v1881
    %v2574 = vpack.c.b16 %v1886, %v1882
    %v2575 = vpack.c.b16 %v1891, %v1887
    %v2576 = vpack.c.b16 %v1892, %v1888
    %v2577 = vpack.c.b16 %v1893, %v1889
    %v2578 = vpack.c.b16 %v1894, %v1890
    %v2579 = vpack.c.b16 %v1899, %v1895
    %v2580 = vpack.c.b16 %v1900, %v1896
    %v2581 = vpack.c.b16 %v1901, %v1897
    %v2582 = vpack.c.b16 %v1902, %v1898
    %v2583 = vpack.c.b16 %v1907, %v1903
    %v2584 = vpack.c.b16 %v1908, %v1904
    %v2585 = vpack.c.b16 %v1909, %v1905
    %v2586 = vpack.c.b16 %v1910, %v1906
    %v2587 = vpack.c.b16 %v1915, %v1911
    %v2588 = vpack.c.b16 %v1916, %v1912
    %v2589 = vpack.c.b16 %v1917, %v1913
    %v2590 = vpack.c.b16 %v1918, %v1914
    %v2591 = vpack.c.b16 %v1923, %v1919
    %v2592 = vpack.c.b16 %v1924, %v1920
    %v2593 = vpack.c.b16 %v1925, %v1921
    %v2594 = vpack.c.b16 %v1926, %v1922
    %v2595 = vpack.c.b16 %v1931, %v1927
    %v2596 = vpack.c.b16 %v1932, %v1928
    %v2597 = vpack.c.b16 %v1933, %v1929
    %v2598 = vpack.c.b16 %v1934, %v1930
    %v2599 = vpack.c.b16 %v1939, %v1935
    %v2600 = vpack.c.b16 %v1940, %v1936
    %v2601 = vpack.c.b16 %v1941, %v1937
    %v2602 = vpack.c.b16 %v1942, %v1938
    %v2603 = vpack.c.b16 %v1947, %v1943
    %v2604 = vpack.c.b16 %v1948, %v1944
    %v2605 = vpack.c.b16 %v1949, %v1945
    %v2606 = vpack.c.b16 %v1950, %v1946
    %v2607 = vpack.c.b16 %v1955, %v1951
    %v2608 = vpack.c.b16 %v1956, %v1952
    %v2609 = vpack.c.b16 %v1957, %v1953
    %v2610 = vpack.c.b16 %v1958, %v1954
    %v2611 = vpack.c.b16 %v1963, %v1959
    %v2612 = vpack.c.b16 %v1964, %v1960
    %v2613 = vpack.c.b16 %v1965, %v1961
    %v2614 = vpack.c.b16 %v1966, %v1962
    %v2615 = vpack.c.b16 %v1971, %v1967
    %v2616 = vpack.c.b16 %v1972, %v1968
    %v2617 = vpack.c.b16 %v1973, %v1969
    %v2618 = vpack.c.b16 %v1974, %v1970
    %v2619 = vpack.c.b16 %v1979, %v1975
    %v2620 = vpack.c.b16 %v1980, %v1976
    %v2621 = vpack.c.b16 %v1981, %v1977
    %v2622 = vpack.c.b16 %v1982, %v1978
    %v2623 = vpack.c.b16 %v1987, %v1983
    %v2624 = vpack.c.b16 %v1988, %v1984
    %v2625 = vpack.c.b16 %v1989, %v1985
    %v2626 = vpack.c.b16 %v1990, %v1986
    %v2627 = vpack.c.b16 %v1995, %v1991
    %v2628 = vpack.c.b16 %v1996, %v1992
    %v2629 = vpack.c.b16 %v1997, %v1993
    %v2630 = vpack.c.b16 %v1998, %v1994
    %v2631 = vpack.c.b16 %v2003, %v1999
    %v2632 = vpack.c.b16 %v2004, %v2000
    %v2633 = vpack.c.b16 %v2005, %v2001
    %v2634 = vpack.c.b16 %v2006, %v2002
    %v2635 = vpack.c.b16 %v2011, %v2007
    %v2636 = vpack.c.b16 %v2012, %v2008
    %v2637 = vpack.c.b16 %v2013, %v2009
    %v2638 = vpack.c.b16 %v2014, %v2010
    %v2639 = vpack.c.b16 %v2019, %v2015
    %v2640 = vpack.c.b16 %v2020, %v2016
    %v2641 = vpack.c.b16 %v2021, %v2017
    %v2642 = vpack.c.b16 %v2022, %v2018
    %v2643 = vpack.c.b16 %v2027, %v2023
    %v2644 = vpack.c.b16 %v2028, %v2024
    %v2645 = vpack.c.b16 %v2029, %v2025
    %v2646 = vpack.c.b16 %v2030, %v2026
    %v2647 = vpack.c.b16 %v2035, %v2031
    %v2648 = vpack.c.b16 %v2036, %v2032
    %v2649 = vpack.c.b16 %v2037, %v2033
    %v2650 = vpack.c.b16 %v2038, %v2034
    %v2651 = vpack.c.b16 %v2043, %v2039
    %v2652 = vpack.c.b16 %v2044, %v2040
    %v2653 = vpack.c.b16 %v2045, %v2041
    %v2654 = vpack.c.b16 %v2046, %v2042
    %v2655 = vpack.c.b16 %v2051, %v2047
    %v2656 = vpack.c.b16 %v2052, %v2048
    %v2657 = vpack.c.b16 %v2053, %v2049
    %v2658 = vpack.c.b16 %v2054, %v2050
    %v2659 = vpack.c.b16 %v2059, %v2055
    %v2660 = vpack.c.b16 %v2060, %v2056
    %v2661 = vpack.c.b16 %v2061, %v2057
    %v2662 = vpack.c.b16 %v2062, %v2058
    %v2663 = vpack.c.b16 %v2067, %v2063
    %v2664 = vpack.c.b16 %v2068, %v2064
    %v2665 = vpack.c.b16 %v2069, %v2065
    %v2666 = vpack.c.b16 %v2070, %v2066
    %v2667 = vpack.c.b16 %v2075, %v2071
    %v2668 = vpack.c.b16 %v2076, %v2072
    %v2669 = vpack.c.b16 %v2077, %v2073
    %v2670 = vpack.c.b16 %v2078, %v2074
    %v2671 = vpack.c.b16 %v2083, %v2079
    %v2672 = vpack.c.b16 %v2084, %v2080
    %v2673 = vpack.c.b16 %v2085, %v2081
    %v2674 = vpack.c.b16 %v2086, %v2082
    %v2675 = vpack.c.b16 %v2091, %v2087
    %v2676 = vpack.c.b16 %v2092, %v2088
    %v2677 = vpack.c.b16 %v2093, %v2089
    %v2678 = vpack.c.b16 %v2094, %v2090
    %v2679 = vpack.c.b16 %v2099, %v2095
    %v2680 = vpack.c.b16 %v2100, %v2096
    %v2681 = vpack.c.b16 %v2101, %v2097
    %v2682 = vpack.c.b16 %v2102, %v2098
    %v2683 = vpack.c.b16 %v2107, %v2103
    %v2684 = vpack.c.b16 %v2108, %v2104
    %v2685 = vpack.c.b16 %v2109, %v2105
    %v2686 = vpack.c.b16 %v2110, %v2106
    %v2687 = vpack.c.b16 %v2115, %v2111
    %v2688 = vpack.c.b16 %v2116, %v2112
    %v2689 = vpack.c.b16 %v2117, %v2113
    %v2690 = vpack.c.b16 %v2118, %v2114
    %v2691 = vpack.c.b16 %v2123, %v2119
    %v2692 = vpack.c.b16 %v2124, %v2120
    %v2693 = vpack.c.b16 %v2125, %v2121
    %v2694 = vpack.c.b16 %v2126, %v2122
    %v2695 = vpack.c.b16 %v2131, %v2127
    %v2696 = vpack.c.b16 %v2132, %v2128
    %v2697 = vpack.c.b16 %v2133, %v2129
    %v2698 = vpack.c.b16 %v2134, %v2130
    %v2699 = vpack.c.b16 %v2139, %v2135
    %v2700 = vpack.c.b16 %v2140, %v2136
    %v2701 = vpack.c.b16 %v2141, %v2137
    %v2702 = vpack.c.b16 %v2142, %v2138
    %v2703 = vpack.c.b16 %v2147, %v2143
    %v2704 = vpack.c.b16 %v2148, %v2144
    %v2705 = vpack.c.b16 %v2149, %v2145
    %v2706 = vpack.c.b16 %v2150, %v2146
    %v2707 = vpack.c.b16 %v2155, %v2151
    %v2708 = vpack.c.b16 %v2156, %v2152
    %v2709 = vpack.c.b16 %v2157, %v2153
    %v2710 = vpack.c.b16 %v2158, %v2154
    %v2711 = vpack.c.b16 %v2163, %v2159
    %v2712 = vpack.c.b16 %v2164, %v2160
    %v2713 = vpack.c.b16 %v2165, %v2161
    %v2714 = vpack.c.b16 %v2166, %v2162
    %v2715 = vpack.c.b16 %v2171, %v2167
    %v2716 = vpack.c.b16 %v2172, %v2168
    %v2717 = vpack.c.b16 %v2173, %v2169
    %v2718 = vpack.c.b16 %v2174, %v2170
    %v2719 = vpack.c.b16 %v2179, %v2175
    %v2720 = vpack.c.b16 %v2180, %v2176
    %v2721 = vpack.c.b16 %v2181, %v2177
    %v2722 = vpack.c.b16 %v2182, %v2178
    %v2723 = vpack.c.b16 %v2187, %v2183
    %v2724 = vpack.c.b16 %v2188, %v2184
    %v2725 = vpack.c.b16 %v2189, %v2185
    %v2726 = vpack.c.b16 %v2190, %v2186
    %v2727 = vpack.c.b16 %v2195, %v2191
    %v2728 = vpack.c.b16 %v2196, %v2192
    %v2729 = vpack.c.b16 %v2197, %v2193
    %v2730 = vpack.c.b16 %v2198, %v2194
    %v2731 = vpack.c.b16 %v2203, %v2199
    %v2732 = vpack.c.b16 %v2204, %v2200
    %v2733 = vpack.c.b16 %v2205, %v2201
    %v2734 = vpack.c.b16 %v2206, %v2202
    %v2735 = vpack.c.b16 %v2211, %v2207
    %v2736 = vpack.c.b16 %v2212, %v2208
    %v2737 = vpack.c.b16 %v2213, %v2209
    %v2738 = vpack.c.b16 %v2214, %v2210
    %v2739 = vpack.c.b16 %v2219, %v2215
    %v2740 = vpack.c.b16 %v2220, %v2216
    %v2741 = vpack.c.b16 %v2221, %v2217
    %v2742 = vpack.c.b16 %v2222, %v2218
    %v2743 = vpack.c.b16 %v2227, %v2223
    %v2744 = vpack.c.b16 %v2228, %v2224
    %v2745 = vpack.c.b16 %v2229, %v2225
    %v2746 = vpack.c.b16 %v2230, %v2226
    %v2747 = vpack.c.b16 %v2235, %v2231
    %v2748 = vpack.c.b16 %v2236, %v2232
    %v2749 = vpack.c.b16 %v2237, %v2233
    %v2750 = vpack.c.b16 %v2238, %v2234
    %3263 = vmatprep.subr.bf16.mxu0 %v2268
    %3264 = vmatpush1.bf16.msra.mxu0 %v2267
    %3265 = vmatprep.subr.bf16.mxu0 %v2264
    %3266 = vmatpush1.bf16.msra.mxu0 %v2263
    %3267 = vmatprep.subr.bf16.mxu0 %v2260
    %3268 = vmatpush1.bf16.msra.mxu0 %v2259
    %3269 = vmatprep.subr.bf16.mxu0 %v2256
    %3270 = vmatpush1.bf16.msra.mxu0 %v2255
    %3271 = vmatprep.subr.bf16.mxu0 %v2252
    %3272 = vmatpush1.bf16.msra.mxu0 %v2251
    %3273 = vmatprep.subr.bf16.mxu0 %v2248
    %3274 = vmatpush1.bf16.msra.mxu0 %v2247
    %3275 = vmatprep.subr.bf16.mxu0 %v2244
    %3276 = vmatpush1.bf16.msra.mxu0 %v2243
    %3277 = vmatprep.subr.bf16.mxu0 %v2240
    %3278 = vmatpush1.bf16.msra.mxu0 %v2239
    %3279 = vmatprep.subr.bf16.mxu0 %v2300
    %3280 = vmatpush2.bf16.msra.mxu0 %v2299
    %3281 = vmatprep.subr.bf16.mxu0 %v2296
    %3282 = vmatpush2.bf16.msra.mxu0 %v2295
    %3283 = vmatprep.subr.bf16.mxu0 %v2292
    %3284 = vmatpush2.bf16.msra.mxu0 %v2291
    %3285 = vmatprep.subr.bf16.mxu0 %v2288
    %3286 = vmatpush2.bf16.msra.mxu0 %v2287
    %3287 = vmatprep.subr.bf16.mxu0 %v2284
    %3288 = vmatpush2.bf16.msra.mxu0 %v2283
    %3289 = vmatprep.subr.bf16.mxu0 %v2280
    %3290 = vmatpush2.bf16.msra.mxu0 %v2279
    %3291 = vmatprep.subr.bf16.mxu0 %v2276
    %3292 = vmatpush2.bf16.msra.mxu0 %v2275
    %3293 = vmatprep.subr.bf16.mxu0 %v2272
    %3294 = vmatpush2.bf16.msra.mxu0 %v2271
    %3295 = vmatprep.mubr.bf16.mxu0 %v626
    %3296 = vmatmul.mubr.bf16.gmra.mxu0 %v612
    %v3297 = vpop.f32.mrf.mxu0
    %v3298 = vadd.f32 0.0, %v3297
    %v3299 = vpop.f32.mrf.mxu0
    %v3300 = vadd.f32 0.0, %v3299
    %v3301 = vpop.f32.mrf.mxu0
    %v3302 = vpop.f32.mrf.mxu0
    %3303 = vdwg.mxu0
    %3304 = vmatprep.subr.bf16.mxu0 %v2332
    %3305 = vmatpush1.bf16.msra.mxu0 %v2331
    %3306 = vmatprep.subr.bf16.mxu0 %v2328
    %3307 = vmatpush1.bf16.msra.mxu0 %v2327
    %3308 = vmatprep.subr.bf16.mxu0 %v2324
    %3309 = vmatpush1.bf16.msra.mxu0 %v2323
    %3310 = vmatprep.subr.bf16.mxu0 %v2320
    %3311 = vmatpush1.bf16.msra.mxu0 %v2319
    %3312 = vmatprep.subr.bf16.mxu0 %v2316
    %3313 = vmatpush1.bf16.msra.mxu0 %v2315
    %3314 = vmatprep.subr.bf16.mxu0 %v2312
    %3315 = vmatpush1.bf16.msra.mxu0 %v2311
    %3316 = vmatprep.subr.bf16.mxu0 %v2308
    %3317 = vmatpush1.bf16.msra.mxu0 %v2307
    %3318 = vmatprep.subr.bf16.mxu0 %v2304
    %3319 = vmatpush1.bf16.msra.mxu0 %v2303
    %3320 = vmatprep.subr.bf16.mxu0 %v2364
    %3321 = vmatpush2.bf16.msra.mxu0 %v2363
    %3322 = vmatprep.subr.bf16.mxu0 %v2360
    %3323 = vmatpush2.bf16.msra.mxu0 %v2359
    %3324 = vmatprep.subr.bf16.mxu0 %v2356
    %3325 = vmatpush2.bf16.msra.mxu0 %v2355
    %3326 = vmatprep.subr.bf16.mxu0 %v2352
    %3327 = vmatpush2.bf16.msra.mxu0 %v2351
    %3328 = vmatprep.subr.bf16.mxu0 %v2348
    %3329 = vmatpush2.bf16.msra.mxu0 %v2347
    %3330 = vmatprep.subr.bf16.mxu0 %v2344
    %3331 = vmatpush2.bf16.msra.mxu0 %v2343
    %3332 = vmatprep.subr.bf16.mxu0 %v2340
    %3333 = vmatpush2.bf16.msra.mxu0 %v2339
    %3334 = vmatprep.subr.bf16.mxu0 %v2336
    %3335 = vmatpush2.bf16.msra.mxu0 %v2335
    %3336 = vmatprep.mubr.bf16.mxu0 %v636
    %3337 = vmatmul.mubr.bf16.gmra.mxu0 %v634
    %v3338 = vpop.f32.mrf.mxu0
    %v3339 = vadd.f32 %v3298, %v3338
    %v3340 = vpop.f32.mrf.mxu0
    %v3341 = vadd.f32 %v3300, %v3340
    %v3342 = vpop.f32.mrf.mxu0
    %v3343 = vpop.f32.mrf.mxu0
    %3344 = vdwg.mxu0
    %3345 = vmatprep.subr.bf16.mxu0 %v2396
    %3346 = vmatpush1.bf16.msra.mxu0 %v2395
    %3347 = vmatprep.subr.bf16.mxu0 %v2392
    %3348 = vmatpush1.bf16.msra.mxu0 %v2391
    %3349 = vmatprep.subr.bf16.mxu0 %v2388
    %3350 = vmatpush1.bf16.msra.mxu0 %v2387
    %3351 = vmatprep.subr.bf16.mxu0 %v2384
    %3352 = vmatpush1.bf16.msra.mxu0 %v2383
    %3353 = vmatprep.subr.bf16.mxu0 %v2380
    %3354 = vmatpush1.bf16.msra.mxu0 %v2379
    %3355 = vmatprep.subr.bf16.mxu0 %v2376
    %3356 = vmatpush1.bf16.msra.mxu0 %v2375
    %3357 = vmatprep.subr.bf16.mxu0 %v2372
    %3358 = vmatpush1.bf16.msra.mxu0 %v2371
    %3359 = vmatprep.subr.bf16.mxu0 %v2368
    %3360 = vmatpush1.bf16.msra.mxu0 %v2367
    %3361 = vmatprep.subr.bf16.mxu0 %v2428
    %3362 = vmatpush2.bf16.msra.mxu0 %v2427
    %3363 = vmatprep.subr.bf16.mxu0 %v2424
    %3364 = vmatpush2.bf16.msra.mxu0 %v2423
    %3365 = vmatprep.subr.bf16.mxu0 %v2420
    %3366 = vmatpush2.bf16.msra.mxu0 %v2419
    %3367 = vmatprep.subr.bf16.mxu0 %v2416
    %3368 = vmatpush2.bf16.msra.mxu0 %v2415
    %3369 = vmatprep.subr.bf16.mxu0 %v2412
    %3370 = vmatpush2.bf16.msra.mxu0 %v2411
    %3371 = vmatprep.subr.bf16.mxu0 %v2408
    %3372 = vmatpush2.bf16.msra.mxu0 %v2407
    %3373 = vmatprep.subr.bf16.mxu0 %v2404
    %3374 = vmatpush2.bf16.msra.mxu0 %v2403
    %3375 = vmatprep.subr.bf16.mxu0 %v2400
    %3376 = vmatpush2.bf16.msra.mxu0 %v2399
    %3377 = vmatprep.mubr.bf16.mxu0 %v633
    %3378 = vmatmul.mubr.bf16.gmra.mxu0 %v619
    %v3379 = vpop.f32.mrf.mxu0
    %v3380 = vadd.f32 %v3339, %v3379
    %v3381 = vpop.f32.mrf.mxu0
    %v3382 = vadd.f32 %v3341, %v3381
    %v3383 = vpop.f32.mrf.mxu0
    %v3384 = vpop.f32.mrf.mxu0
    %3385 = vdwg.mxu0
    %3386 = vmatprep.subr.bf16.mxu0 %v2460
    %3387 = vmatpush1.bf16.msra.mxu0 %v2459
    %3388 = vmatprep.subr.bf16.mxu0 %v2456
    %3389 = vmatpush1.bf16.msra.mxu0 %v2455
    %3390 = vmatprep.subr.bf16.mxu0 %v2452
    %3391 = vmatpush1.bf16.msra.mxu0 %v2451
    %3392 = vmatprep.subr.bf16.mxu0 %v2448
    %3393 = vmatpush1.bf16.msra.mxu0 %v2447
    %3394 = vmatprep.subr.bf16.mxu0 %v2444
    %3395 = vmatpush1.bf16.msra.mxu0 %v2443
    %3396 = vmatprep.subr.bf16.mxu0 %v2440
    %3397 = vmatpush1.bf16.msra.mxu0 %v2439
    %3398 = vmatprep.subr.bf16.mxu0 %v2436
    %3399 = vmatpush1.bf16.msra.mxu0 %v2435
    %3400 = vmatprep.subr.bf16.mxu0 %v2432
    %3401 = vmatpush1.bf16.msra.mxu0 %v2431
    %3402 = vmatprep.subr.bf16.mxu0 %v2492
    %3403 = vmatpush2.bf16.msra.mxu0 %v2491
    %3404 = vmatprep.subr.bf16.mxu0 %v2488
    %3405 = vmatpush2.bf16.msra.mxu0 %v2487
    %3406 = vmatprep.subr.bf16.mxu0 %v2484
    %3407 = vmatpush2.bf16.msra.mxu0 %v2483
    %3408 = vmatprep.subr.bf16.mxu0 %v2480
    %3409 = vmatpush2.bf16.msra.mxu0 %v2479
    %3410 = vmatprep.subr.bf16.mxu0 %v2476
    %3411 = vmatpush2.bf16.msra.mxu0 %v2475
    %3412 = vmatprep.subr.bf16.mxu0 %v2472
    %3413 = vmatpush2.bf16.msra.mxu0 %v2471
    %3414 = vmatprep.subr.bf16.mxu0 %v2468
    %3415 = vmatpush2.bf16.msra.mxu0 %v2467
    %3416 = vmatprep.subr.bf16.mxu0 %v2464
    %3417 = vmatpush2.bf16.msra.mxu0 %v2463
    %3418 = vmatprep.mubr.bf16.mxu0 %v637
    %3419 = vmatmul.mubr.bf16.gmra.mxu0 %v635
    %v3420 = vpop.f32.mrf.mxu0
    %v3421 = vadd.f32 %v3380, %v3420
    %v3422 = vpop.f32.mrf.mxu0
    %v3423 = vadd.f32 %v3382, %v3422
    %v3424 = vpop.f32.mrf.mxu0
    %v3425 = vpop.f32.mrf.mxu0
    %3426 = vdwg.mxu0
    %3427 = vmatprep.subr.bf16.mxu0 %v2524
    %3428 = vmatpush1.bf16.msra.mxu0 %v2523
    %3429 = vmatprep.subr.bf16.mxu0 %v2520
    %3430 = vmatpush1.bf16.msra.mxu0 %v2519
    %3431 = vmatprep.subr.bf16.mxu0 %v2516
    %3432 = vmatpush1.bf16.msra.mxu0 %v2515
    %3433 = vmatprep.subr.bf16.mxu0 %v2512
    %3434 = vmatpush1.bf16.msra.mxu0 %v2511
    %3435 = vmatprep.subr.bf16.mxu0 %v2508
    %3436 = vmatpush1.bf16.msra.mxu0 %v2507
    %3437 = vmatprep.subr.bf16.mxu0 %v2504
    %3438 = vmatpush1.bf16.msra.mxu0 %v2503
    %3439 = vmatprep.subr.bf16.mxu0 %v2500
    %3440 = vmatpush1.bf16.msra.mxu0 %v2499
    %3441 = vmatprep.subr.bf16.mxu0 %v2496
    %3442 = vmatpush1.bf16.msra.mxu0 %v2495
    %3443 = vmatprep.subr.bf16.mxu0 %v2556
    %3444 = vmatpush2.bf16.msra.mxu0 %v2555
    %3445 = vmatprep.subr.bf16.mxu0 %v2552
    %3446 = vmatpush2.bf16.msra.mxu0 %v2551
    %3447 = vmatprep.subr.bf16.mxu0 %v2548
    %3448 = vmatpush2.bf16.msra.mxu0 %v2547
    %3449 = vmatprep.subr.bf16.mxu0 %v2544
    %3450 = vmatpush2.bf16.msra.mxu0 %v2543
    %3451 = vmatprep.subr.bf16.mxu0 %v2540
    %3452 = vmatpush2.bf16.msra.mxu0 %v2539
    %3453 = vmatprep.subr.bf16.mxu0 %v2536
    %3454 = vmatpush2.bf16.msra.mxu0 %v2535
    %3455 = vmatprep.subr.bf16.mxu0 %v2532
    %3456 = vmatpush2.bf16.msra.mxu0 %v2531
    %3457 = vmatprep.subr.bf16.mxu0 %v2528
    %3458 = vmatpush2.bf16.msra.mxu0 %v2527
    %3459 = vmatprep.mubr.bf16.mxu0 %v675
    %3460 = vmatmul.mubr.bf16.gmra.mxu0 %v661
    %v3461 = vpop.f32.mrf.mxu0
    %v3462 = vadd.f32 %v3421, %v3461
    %v3463 = vpop.f32.mrf.mxu0
    %v3464 = vadd.f32 %v3423, %v3463
    %v3465 = vpop.f32.mrf.mxu0
    %v3466 = vpop.f32.mrf.mxu0
    %3467 = vdwg.mxu0
    %3468 = vmatprep.subr.bf16.mxu0 %v2588
    %3469 = vmatpush1.bf16.msra.mxu0 %v2587
    %3470 = vmatprep.subr.bf16.mxu0 %v2584
    %3471 = vmatpush1.bf16.msra.mxu0 %v2583
    %3472 = vmatprep.subr.bf16.mxu0 %v2580
    %3473 = vmatpush1.bf16.msra.mxu0 %v2579
    %3474 = vmatprep.subr.bf16.mxu0 %v2576
    %3475 = vmatpush1.bf16.msra.mxu0 %v2575
    %3476 = vmatprep.subr.bf16.mxu0 %v2572
    %3477 = vmatpush1.bf16.msra.mxu0 %v2571
    %3478 = vmatprep.subr.bf16.mxu0 %v2568
    %3479 = vmatpush1.bf16.msra.mxu0 %v2567
    %3480 = vmatprep.subr.bf16.mxu0 %v2564
    %3481 = vmatpush1.bf16.msra.mxu0 %v2563
    %3482 = vmatprep.subr.bf16.mxu0 %v2560
    %3483 = vmatpush1.bf16.msra.mxu0 %v2559
    %3484 = vmatprep.subr.bf16.mxu0 %v2620
    %3485 = vmatpush2.bf16.msra.mxu0 %v2619
    %3486 = vmatprep.subr.bf16.mxu0 %v2616
    %3487 = vmatpush2.bf16.msra.mxu0 %v2615
    %3488 = vmatprep.subr.bf16.mxu0 %v2612
    %3489 = vmatpush2.bf16.msra.mxu0 %v2611
    %3490 = vmatprep.subr.bf16.mxu0 %v2608
    %3491 = vmatpush2.bf16.msra.mxu0 %v2607
    %3492 = vmatprep.subr.bf16.mxu0 %v2604
    %3493 = vmatpush2.bf16.msra.mxu0 %v2603
    %3494 = vmatprep.subr.bf16.mxu0 %v2600
    %3495 = vmatpush2.bf16.msra.mxu0 %v2599
    %3496 = vmatprep.subr.bf16.mxu0 %v2596
    %3497 = vmatpush2.bf16.msra.mxu0 %v2595
    %3498 = vmatprep.subr.bf16.mxu0 %v2592
    %3499 = vmatpush2.bf16.msra.mxu0 %v2591
    %3500 = vmatprep.mubr.bf16.mxu0 %v685
    %3501 = vmatmul.mubr.bf16.gmra.mxu0 %v683
    %v3502 = vpop.f32.mrf.mxu0
    %v3503 = vadd.f32 %v3462, %v3502
    %v3504 = vpop.f32.mrf.mxu0
    %v3505 = vadd.f32 %v3464, %v3504
    %v3506 = vpop.f32.mrf.mxu0
    %v3507 = vpop.f32.mrf.mxu0
    %3508 = vdwg.mxu0
    %3509 = vmatprep.subr.bf16.mxu0 %v2652
    %3510 = vmatpush1.bf16.msra.mxu0 %v2651
    %3511 = vmatprep.subr.bf16.mxu0 %v2648
    %3512 = vmatpush1.bf16.msra.mxu0 %v2647
    %3513 = vmatprep.subr.bf16.mxu0 %v2644
    %3514 = vmatpush1.bf16.msra.mxu0 %v2643
    %3515 = vmatprep.subr.bf16.mxu0 %v2640
    %3516 = vmatpush1.bf16.msra.mxu0 %v2639
    %3517 = vmatprep.subr.bf16.mxu0 %v2636
    %3518 = vmatpush1.bf16.msra.mxu0 %v2635
    %3519 = vmatprep.subr.bf16.mxu0 %v2632
    %3520 = vmatpush1.bf16.msra.mxu0 %v2631
    %3521 = vmatprep.subr.bf16.mxu0 %v2628
    %3522 = vmatpush1.bf16.msra.mxu0 %v2627
    %3523 = vmatprep.subr.bf16.mxu0 %v2624
    %3524 = vmatpush1.bf16.msra.mxu0 %v2623
    %3525 = vmatprep.subr.bf16.mxu0 %v2684
    %3526 = vmatpush2.bf16.msra.mxu0 %v2683
    %3527 = vmatprep.subr.bf16.mxu0 %v2680
    %3528 = vmatpush2.bf16.msra.mxu0 %v2679
    %3529 = vmatprep.subr.bf16.mxu0 %v2676
    %3530 = vmatpush2.bf16.msra.mxu0 %v2675
    %3531 = vmatprep.subr.bf16.mxu0 %v2672
    %3532 = vmatpush2.bf16.msra.mxu0 %v2671
    %3533 = vmatprep.subr.bf16.mxu0 %v2668
    %3534 = vmatpush2.bf16.msra.mxu0 %v2667
    %3535 = vmatprep.subr.bf16.mxu0 %v2664
    %3536 = vmatpush2.bf16.msra.mxu0 %v2663
    %3537 = vmatprep.subr.bf16.mxu0 %v2660
    %3538 = vmatpush2.bf16.msra.mxu0 %v2659
    %3539 = vmatprep.subr.bf16.mxu0 %v2656
    %3540 = vmatpush2.bf16.msra.mxu0 %v2655
    %3541 = vmatprep.mubr.bf16.mxu0 %v682
    %3542 = vmatmul.mubr.bf16.gmra.mxu0 %v668
    %v3543 = vpop.f32.mrf.mxu0
    %v3544 = vadd.f32 %v3503, %v3543
    %v3545 = vpop.f32.mrf.mxu0
    %v3546 = vadd.f32 %v3505, %v3545
    %v3547 = vpop.f32.mrf.mxu0
    %v3548 = vpop.f32.mrf.mxu0
    %3549 = vdwg.mxu0
    %3550 = vmatprep.subr.bf16.mxu0 %v2716
    %3551 = vmatpush1.bf16.msra.mxu0 %v2715
    %3552 = vmatprep.subr.bf16.mxu0 %v2712
    %3553 = vmatpush1.bf16.msra.mxu0 %v2711
    %3554 = vmatprep.subr.bf16.mxu0 %v2708
    %3555 = vmatpush1.bf16.msra.mxu0 %v2707
    %3556 = vmatprep.subr.bf16.mxu0 %v2704
    %3557 = vmatpush1.bf16.msra.mxu0 %v2703
    %3558 = vmatprep.subr.bf16.mxu0 %v2700
    %3559 = vmatpush1.bf16.msra.mxu0 %v2699
    %3560 = vmatprep.subr.bf16.mxu0 %v2696
    %3561 = vmatpush1.bf16.msra.mxu0 %v2695
    %3562 = vmatprep.subr.bf16.mxu0 %v2692
    %3563 = vmatpush1.bf16.msra.mxu0 %v2691
    %3564 = vmatprep.subr.bf16.mxu0 %v2688
    %3565 = vmatpush1.bf16.msra.mxu0 %v2687
    %3566 = vmatprep.subr.bf16.mxu0 %v2748
    %3567 = vmatpush2.bf16.msra.mxu0 %v2747
    %3568 = vmatprep.subr.bf16.mxu0 %v2744
    %3569 = vmatpush2.bf16.msra.mxu0 %v2743
    %3570 = vmatprep.subr.bf16.mxu0 %v2740
    %3571 = vmatpush2.bf16.msra.mxu0 %v2739
    %3572 = vmatprep.subr.bf16.mxu0 %v2736
    %3573 = vmatpush2.bf16.msra.mxu0 %v2735
    %3574 = vmatprep.subr.bf16.mxu0 %v2732
    %3575 = vmatpush2.bf16.msra.mxu0 %v2731
    %3576 = vmatprep.subr.bf16.mxu0 %v2728
    %3577 = vmatpush2.bf16.msra.mxu0 %v2727
    %3578 = vmatprep.subr.bf16.mxu0 %v2724
    %3579 = vmatpush2.bf16.msra.mxu0 %v2723
    %3580 = vmatprep.subr.bf16.mxu0 %v2720
    %3581 = vmatpush2.bf16.msra.mxu0 %v2719
    %3582 = vmatprep.mubr.bf16.mxu0 %v686
    %3583 = vmatmul.mubr.bf16.gmra.mxu0 %v684
    %v3584 = vpop.f32.mrf.mxu0
    %v3585 = vadd.f32 %v3544, %v3584
    %v3586 = vpop.f32.mrf.mxu0
    %v3587 = vadd.f32 %v3546, %v3586
    %v3588 = vpop.f32.mrf.mxu0
    %v3589 = vpop.f32.mrf.mxu0
    %3590 = vdwg.mxu0
    %3591 = vmatprep.subr.bf16.mxu0 %v2270
    %3592 = vmatpush1.bf16.msra.mxu0 %v2269
    %3593 = vmatprep.subr.bf16.mxu0 %v2266
    %3594 = vmatpush1.bf16.msra.mxu0 %v2265
    %3595 = vmatprep.subr.bf16.mxu0 %v2262
    %3596 = vmatpush1.bf16.msra.mxu0 %v2261
    %3597 = vmatprep.subr.bf16.mxu0 %v2258
    %3598 = vmatpush1.bf16.msra.mxu0 %v2257
    %3599 = vmatprep.subr.bf16.mxu0 %v2254
    %3600 = vmatpush1.bf16.msra.mxu0 %v2253
    %3601 = vmatprep.subr.bf16.mxu0 %v2250
    %3602 = vmatpush1.bf16.msra.mxu0 %v2249
    %3603 = vmatprep.subr.bf16.mxu0 %v2246
    %3604 = vmatpush1.bf16.msra.mxu0 %v2245
    %3605 = vmatprep.subr.bf16.mxu0 %v2242
    %3606 = vmatpush1.bf16.msra.mxu0 %v2241
    %3607 = vmatprep.subr.bf16.mxu0 %v2302
    %3608 = vmatpush2.bf16.msra.mxu0 %v2301
    %3609 = vmatprep.subr.bf16.mxu0 %v2298
    %3610 = vmatpush2.bf16.msra.mxu0 %v2297
    %3611 = vmatprep.subr.bf16.mxu0 %v2294
    %3612 = vmatpush2.bf16.msra.mxu0 %v2293
    %3613 = vmatprep.subr.bf16.mxu0 %v2290
    %3614 = vmatpush2.bf16.msra.mxu0 %v2289
    %3615 = vmatprep.subr.bf16.mxu0 %v2286
    %3616 = vmatpush2.bf16.msra.mxu0 %v2285
    %3617 = vmatprep.subr.bf16.mxu0 %v2282
    %3618 = vmatpush2.bf16.msra.mxu0 %v2281
    %3619 = vmatprep.subr.bf16.mxu0 %v2278
    %3620 = vmatpush2.bf16.msra.mxu0 %v2277
    %3621 = vmatprep.subr.bf16.mxu0 %v2274
    %3622 = vmatpush2.bf16.msra.mxu0 %v2273
    %3623 = vmatprep.mubr.bf16.mxu0 %v626
    %3624 = vmatmul.mubr.bf16.gmra.mxu0 %v612
    %v3625 = vpop.f32.mrf.mxu0
    %v3626 = vadd.f32 0.0, %v3625
    %v3627 = vpop.f32.mrf.mxu0
    %v3628 = vadd.f32 0.0, %v3627
    %v3629 = vpop.f32.mrf.mxu0
    %v3630 = vpop.f32.mrf.mxu0
    %3631 = vdwg.mxu0
    %3632 = vmatprep.subr.bf16.mxu0 %v2334
    %3633 = vmatpush1.bf16.msra.mxu0 %v2333
    %3634 = vmatprep.subr.bf16.mxu0 %v2330
    %3635 = vmatpush1.bf16.msra.mxu0 %v2329
    %3636 = vmatprep.subr.bf16.mxu0 %v2326
    %3637 = vmatpush1.bf16.msra.mxu0 %v2325
    %3638 = vmatprep.subr.bf16.mxu0 %v2322
    %3639 = vmatpush1.bf16.msra.mxu0 %v2321
    %3640 = vmatprep.subr.bf16.mxu0 %v2318
    %3641 = vmatpush1.bf16.msra.mxu0 %v2317
    %3642 = vmatprep.subr.bf16.mxu0 %v2314
    %3643 = vmatpush1.bf16.msra.mxu0 %v2313
    %3644 = vmatprep.subr.bf16.mxu0 %v2310
    %3645 = vmatpush1.bf16.msra.mxu0 %v2309
    %3646 = vmatprep.subr.bf16.mxu0 %v2306
    %3647 = vmatpush1.bf16.msra.mxu0 %v2305
    %3648 = vmatprep.subr.bf16.mxu0 %v2366
    %3649 = vmatpush2.bf16.msra.mxu0 %v2365
    %3650 = vmatprep.subr.bf16.mxu0 %v2362
    %3651 = vmatpush2.bf16.msra.mxu0 %v2361
    %3652 = vmatprep.subr.bf16.mxu0 %v2358
    %3653 = vmatpush2.bf16.msra.mxu0 %v2357
    %3654 = vmatprep.subr.bf16.mxu0 %v2354
    %3655 = vmatpush2.bf16.msra.mxu0 %v2353
    %3656 = vmatprep.subr.bf16.mxu0 %v2350
    %3657 = vmatpush2.bf16.msra.mxu0 %v2349
    %3658 = vmatprep.subr.bf16.mxu0 %v2346
    %3659 = vmatpush2.bf16.msra.mxu0 %v2345
    %3660 = vmatprep.subr.bf16.mxu0 %v2342
    %3661 = vmatpush2.bf16.msra.mxu0 %v2341
    %3662 = vmatprep.subr.bf16.mxu0 %v2338
    %3663 = vmatpush2.bf16.msra.mxu0 %v2337
    %3664 = vmatprep.mubr.bf16.mxu0 %v636
    %3665 = vmatmul.mubr.bf16.gmra.mxu0 %v634
    %v3666 = vpop.f32.mrf.mxu0
    %v3667 = vadd.f32 %v3626, %v3666
    %v3668 = vpop.f32.mrf.mxu0
    %v3669 = vadd.f32 %v3628, %v3668
    %v3670 = vpop.f32.mrf.mxu0
    %v3671 = vpop.f32.mrf.mxu0
    %3672 = vdwg.mxu0
    %3673 = vmatprep.subr.bf16.mxu0 %v2398
    %3674 = vmatpush1.bf16.msra.mxu0 %v2397
    %3675 = vmatprep.subr.bf16.mxu0 %v2394
    %3676 = vmatpush1.bf16.msra.mxu0 %v2393
    %3677 = vmatprep.subr.bf16.mxu0 %v2390
    %3678 = vmatpush1.bf16.msra.mxu0 %v2389
    %3679 = vmatprep.subr.bf16.mxu0 %v2386
    %3680 = vmatpush1.bf16.msra.mxu0 %v2385
    %3681 = vmatprep.subr.bf16.mxu0 %v2382
    %3682 = vmatpush1.bf16.msra.mxu0 %v2381
    %3683 = vmatprep.subr.bf16.mxu0 %v2378
    %3684 = vmatpush1.bf16.msra.mxu0 %v2377
    %3685 = vmatprep.subr.bf16.mxu0 %v2374
    %3686 = vmatpush1.bf16.msra.mxu0 %v2373
    %3687 = vmatprep.subr.bf16.mxu0 %v2370
    %3688 = vmatpush1.bf16.msra.mxu0 %v2369
    %3689 = vmatprep.subr.bf16.mxu0 %v2430
    %3690 = vmatpush2.bf16.msra.mxu0 %v2429
    %3691 = vmatprep.subr.bf16.mxu0 %v2426
    %3692 = vmatpush2.bf16.msra.mxu0 %v2425
    %3693 = vmatprep.subr.bf16.mxu0 %v2422
    %3694 = vmatpush2.bf16.msra.mxu0 %v2421
    %3695 = vmatprep.subr.bf16.mxu0 %v2418
    %3696 = vmatpush2.bf16.msra.mxu0 %v2417
    %3697 = vmatprep.subr.bf16.mxu0 %v2414
    %3698 = vmatpush2.bf16.msra.mxu0 %v2413
    %3699 = vmatprep.subr.bf16.mxu0 %v2410
    %3700 = vmatpush2.bf16.msra.mxu0 %v2409
    %3701 = vmatprep.subr.bf16.mxu0 %v2406
    %3702 = vmatpush2.bf16.msra.mxu0 %v2405
    %3703 = vmatprep.subr.bf16.mxu0 %v2402
    %3704 = vmatpush2.bf16.msra.mxu0 %v2401
    %3705 = vmatprep.mubr.bf16.mxu0 %v633
    %3706 = vmatmul.mubr.bf16.gmra.mxu0 %v619
    %v3707 = vpop.f32.mrf.mxu0
    %v3708 = vadd.f32 %v3667, %v3707
    %v3709 = vpop.f32.mrf.mxu0
    %v3710 = vadd.f32 %v3669, %v3709
    %v3711 = vpop.f32.mrf.mxu0
    %v3712 = vpop.f32.mrf.mxu0
    %3713 = vdwg.mxu0
    %3714 = vmatprep.subr.bf16.mxu0 %v2462
    %3715 = vmatpush1.bf16.msra.mxu0 %v2461
    %3716 = vmatprep.subr.bf16.mxu0 %v2458
    %3717 = vmatpush1.bf16.msra.mxu0 %v2457
    %3718 = vmatprep.subr.bf16.mxu0 %v2454
    %3719 = vmatpush1.bf16.msra.mxu0 %v2453
    %3720 = vmatprep.subr.bf16.mxu0 %v2450
    %3721 = vmatpush1.bf16.msra.mxu0 %v2449
    %3722 = vmatprep.subr.bf16.mxu0 %v2446
    %3723 = vmatpush1.bf16.msra.mxu0 %v2445
    %3724 = vmatprep.subr.bf16.mxu0 %v2442
    %3725 = vmatpush1.bf16.msra.mxu0 %v2441
    %3726 = vmatprep.subr.bf16.mxu0 %v2438
    %3727 = vmatpush1.bf16.msra.mxu0 %v2437
    %3728 = vmatprep.subr.bf16.mxu0 %v2434
    %3729 = vmatpush1.bf16.msra.mxu0 %v2433
    %3730 = vmatprep.subr.bf16.mxu0 %v2494
    %3731 = vmatpush2.bf16.msra.mxu0 %v2493
    %3732 = vmatprep.subr.bf16.mxu0 %v2490
    %3733 = vmatpush2.bf16.msra.mxu0 %v2489
    %3734 = vmatprep.subr.bf16.mxu0 %v2486
    %3735 = vmatpush2.bf16.msra.mxu0 %v2485
    %3736 = vmatprep.subr.bf16.mxu0 %v2482
    %3737 = vmatpush2.bf16.msra.mxu0 %v2481
    %3738 = vmatprep.subr.bf16.mxu0 %v2478
    %3739 = vmatpush2.bf16.msra.mxu0 %v2477
    %3740 = vmatprep.subr.bf16.mxu0 %v2474
    %3741 = vmatpush2.bf16.msra.mxu0 %v2473
    %3742 = vmatprep.subr.bf16.mxu0 %v2470
    %3743 = vmatpush2.bf16.msra.mxu0 %v2469
    %3744 = vmatprep.subr.bf16.mxu0 %v2466
    %3745 = vmatpush2.bf16.msra.mxu0 %v2465
    %3746 = vmatprep.mubr.bf16.mxu0 %v637
    %3747 = vmatmul.mubr.bf16.gmra.mxu0 %v635
    %v3748 = vpop.f32.mrf.mxu0
    %v3749 = vadd.f32 %v3708, %v3748
    %v3750 = vpop.f32.mrf.mxu0
    %v3751 = vadd.f32 %v3710, %v3750
    %v3752 = vpop.f32.mrf.mxu0
    %v3753 = vpop.f32.mrf.mxu0
    %3754 = vdwg.mxu0
    %3755 = vmatprep.subr.bf16.mxu0 %v2526
    %3756 = vmatpush1.bf16.msra.mxu0 %v2525
    %3757 = vmatprep.subr.bf16.mxu0 %v2522
    %3758 = vmatpush1.bf16.msra.mxu0 %v2521
    %3759 = vmatprep.subr.bf16.mxu0 %v2518
    %3760 = vmatpush1.bf16.msra.mxu0 %v2517
    %3761 = vmatprep.subr.bf16.mxu0 %v2514
    %3762 = vmatpush1.bf16.msra.mxu0 %v2513
    %3763 = vmatprep.subr.bf16.mxu0 %v2510
    %3764 = vmatpush1.bf16.msra.mxu0 %v2509
    %3765 = vmatprep.subr.bf16.mxu0 %v2506
    %3766 = vmatpush1.bf16.msra.mxu0 %v2505
    %3767 = vmatprep.subr.bf16.mxu0 %v2502
    %3768 = vmatpush1.bf16.msra.mxu0 %v2501
    %3769 = vmatprep.subr.bf16.mxu0 %v2498
    %3770 = vmatpush1.bf16.msra.mxu0 %v2497
    %3771 = vmatprep.subr.bf16.mxu0 %v2558
    %3772 = vmatpush2.bf16.msra.mxu0 %v2557
    %3773 = vmatprep.subr.bf16.mxu0 %v2554
    %3774 = vmatpush2.bf16.msra.mxu0 %v2553
    %3775 = vmatprep.subr.bf16.mxu0 %v2550
    %3776 = vmatpush2.bf16.msra.mxu0 %v2549
    %3777 = vmatprep.subr.bf16.mxu0 %v2546
    %3778 = vmatpush2.bf16.msra.mxu0 %v2545
    %3779 = vmatprep.subr.bf16.mxu0 %v2542
    %3780 = vmatpush2.bf16.msra.mxu0 %v2541
    %3781 = vmatprep.subr.bf16.mxu0 %v2538
    %3782 = vmatpush2.bf16.msra.mxu0 %v2537
    %3783 = vmatprep.subr.bf16.mxu0 %v2534
    %3784 = vmatpush2.bf16.msra.mxu0 %v2533
    %3785 = vmatprep.subr.bf16.mxu0 %v2530
    %3786 = vmatpush2.bf16.msra.mxu0 %v2529
    %3787 = vmatprep.mubr.bf16.mxu0 %v675
    %3788 = vmatmul.mubr.bf16.gmra.mxu0 %v661
    %v3789 = vpop.f32.mrf.mxu0
    %v3790 = vadd.f32 %v3749, %v3789
    %v3791 = vpop.f32.mrf.mxu0
    %v3792 = vadd.f32 %v3751, %v3791
    %v3793 = vpop.f32.mrf.mxu0
    %v3794 = vpop.f32.mrf.mxu0
    %3795 = vdwg.mxu0
    %3796 = vmatprep.subr.bf16.mxu0 %v2590
    %3797 = vmatpush1.bf16.msra.mxu0 %v2589
    %3798 = vmatprep.subr.bf16.mxu0 %v2586
    %3799 = vmatpush1.bf16.msra.mxu0 %v2585
    %3800 = vmatprep.subr.bf16.mxu0 %v2582
    %3801 = vmatpush1.bf16.msra.mxu0 %v2581
    %3802 = vmatprep.subr.bf16.mxu0 %v2578
    %3803 = vmatpush1.bf16.msra.mxu0 %v2577
    %3804 = vmatprep.subr.bf16.mxu0 %v2574
    %3805 = vmatpush1.bf16.msra.mxu0 %v2573
    %3806 = vmatprep.subr.bf16.mxu0 %v2570
    %3807 = vmatpush1.bf16.msra.mxu0 %v2569
    %3808 = vmatprep.subr.bf16.mxu0 %v2566
    %3809 = vmatpush1.bf16.msra.mxu0 %v2565
    %3810 = vmatprep.subr.bf16.mxu0 %v2562
    %3811 = vmatpush1.bf16.msra.mxu0 %v2561
    %3812 = vmatprep.subr.bf16.mxu0 %v2622
    %3813 = vmatpush2.bf16.msra.mxu0 %v2621
    %3814 = vmatprep.subr.bf16.mxu0 %v2618
    %3815 = vmatpush2.bf16.msra.mxu0 %v2617
    %3816 = vmatprep.subr.bf16.mxu0 %v2614
    %3817 = vmatpush2.bf16.msra.mxu0 %v2613
    %3818 = vmatprep.subr.bf16.mxu0 %v2610
    %3819 = vmatpush2.bf16.msra.mxu0 %v2609
    %3820 = vmatprep.subr.bf16.mxu0 %v2606
    %3821 = vmatpush2.bf16.msra.mxu0 %v2605
    %3822 = vmatprep.subr.bf16.mxu0 %v2602
    %3823 = vmatpush2.bf16.msra.mxu0 %v2601
    %3824 = vmatprep.subr.bf16.mxu0 %v2598
    %3825 = vmatpush2.bf16.msra.mxu0 %v2597
    %3826 = vmatprep.subr.bf16.mxu0 %v2594
    %3827 = vmatpush2.bf16.msra.mxu0 %v2593
    %3828 = vmatprep.mubr.bf16.mxu0 %v685
    %3829 = vmatmul.mubr.bf16.gmra.mxu0 %v683
    %v3830 = vpop.f32.mrf.mxu0
    %v3831 = vadd.f32 %v3790, %v3830
    %v3832 = vpop.f32.mrf.mxu0
    %v3833 = vadd.f32 %v3792, %v3832
    %v3834 = vpop.f32.mrf.mxu0
    %v3835 = vpop.f32.mrf.mxu0
    %3836 = vdwg.mxu0
    %3837 = vmatprep.subr.bf16.mxu0 %v2654
    %3838 = vmatpush1.bf16.msra.mxu0 %v2653
    %3839 = vmatprep.subr.bf16.mxu0 %v2650
    %3840 = vmatpush1.bf16.msra.mxu0 %v2649
    %3841 = vmatprep.subr.bf16.mxu0 %v2646
    %3842 = vmatpush1.bf16.msra.mxu0 %v2645
    %3843 = vmatprep.subr.bf16.mxu0 %v2642
    %3844 = vmatpush1.bf16.msra.mxu0 %v2641
    %3845 = vmatprep.subr.bf16.mxu0 %v2638
    %3846 = vmatpush1.bf16.msra.mxu0 %v2637
    %3847 = vmatprep.subr.bf16.mxu0 %v2634
    %3848 = vmatpush1.bf16.msra.mxu0 %v2633
    %3849 = vmatprep.subr.bf16.mxu0 %v2630
    %3850 = vmatpush1.bf16.msra.mxu0 %v2629
    %3851 = vmatprep.subr.bf16.mxu0 %v2626
    %3852 = vmatpush1.bf16.msra.mxu0 %v2625
    %3853 = vmatprep.subr.bf16.mxu0 %v2686
    %3854 = vmatpush2.bf16.msra.mxu0 %v2685
    %3855 = vmatprep.subr.bf16.mxu0 %v2682
    %3856 = vmatpush2.bf16.msra.mxu0 %v2681
    %3857 = vmatprep.subr.bf16.mxu0 %v2678
    %3858 = vmatpush2.bf16.msra.mxu0 %v2677
    %3859 = vmatprep.subr.bf16.mxu0 %v2674
    %3860 = vmatpush2.bf16.msra.mxu0 %v2673
    %3861 = vmatprep.subr.bf16.mxu0 %v2670
    %3862 = vmatpush2.bf16.msra.mxu0 %v2669
    %3863 = vmatprep.subr.bf16.mxu0 %v2666
    %3864 = vmatpush2.bf16.msra.mxu0 %v2665
    %3865 = vmatprep.subr.bf16.mxu0 %v2662
    %3866 = vmatpush2.bf16.msra.mxu0 %v2661
    %3867 = vmatprep.subr.bf16.mxu0 %v2658
    %3868 = vmatpush2.bf16.msra.mxu0 %v2657
    %3869 = vmatprep.mubr.bf16.mxu0 %v682
    %3870 = vmatmul.mubr.bf16.gmra.mxu0 %v668
    %v3871 = vpop.f32.mrf.mxu0
    %v3872 = vadd.f32 %v3831, %v3871
    %v3873 = vpop.f32.mrf.mxu0
    %v3874 = vadd.f32 %v3833, %v3873
    %v3875 = vpop.f32.mrf.mxu0
    %v3876 = vpop.f32.mrf.mxu0
    %3877 = vdwg.mxu0
    %3878 = vmatprep.subr.bf16.mxu0 %v2718
    %3879 = vmatpush1.bf16.msra.mxu0 %v2717
    %3880 = vmatprep.subr.bf16.mxu0 %v2714
    %3881 = vmatpush1.bf16.msra.mxu0 %v2713
    %3882 = vmatprep.subr.bf16.mxu0 %v2710
    %3883 = vmatpush1.bf16.msra.mxu0 %v2709
    %3884 = vmatprep.subr.bf16.mxu0 %v2706
    %3885 = vmatpush1.bf16.msra.mxu0 %v2705
    %3886 = vmatprep.subr.bf16.mxu0 %v2702
    %3887 = vmatpush1.bf16.msra.mxu0 %v2701
    %3888 = vmatprep.subr.bf16.mxu0 %v2698
    %3889 = vmatpush1.bf16.msra.mxu0 %v2697
    %3890 = vmatprep.subr.bf16.mxu0 %v2694
    %3891 = vmatpush1.bf16.msra.mxu0 %v2693
    %3892 = vmatprep.subr.bf16.mxu0 %v2690
    %3893 = vmatpush1.bf16.msra.mxu0 %v2689
    %3894 = vmatprep.subr.bf16.mxu0 %v2750
    %3895 = vmatpush2.bf16.msra.mxu0 %v2749
    %3896 = vmatprep.subr.bf16.mxu0 %v2746
    %3897 = vmatpush2.bf16.msra.mxu0 %v2745
    %3898 = vmatprep.subr.bf16.mxu0 %v2742
    %3899 = vmatpush2.bf16.msra.mxu0 %v2741
    %3900 = vmatprep.subr.bf16.mxu0 %v2738
    %3901 = vmatpush2.bf16.msra.mxu0 %v2737
    %3902 = vmatprep.subr.bf16.mxu0 %v2734
    %3903 = vmatpush2.bf16.msra.mxu0 %v2733
    %3904 = vmatprep.subr.bf16.mxu0 %v2730
    %3905 = vmatpush2.bf16.msra.mxu0 %v2729
    %3906 = vmatprep.subr.bf16.mxu0 %v2726
    %3907 = vmatpush2.bf16.msra.mxu0 %v2725
    %3908 = vmatprep.subr.bf16.mxu0 %v2722
    %3909 = vmatpush2.bf16.msra.mxu0 %v2721
    %3910 = vmatprep.mubr.bf16.mxu0 %v686
    %3911 = vmatmul.mubr.bf16.gmra.mxu0 %v684
    %v3912 = vpop.f32.mrf.mxu0
    %v3913 = vadd.f32 %v3872, %v3912
    %v3914 = vpop.f32.mrf.mxu0
    %v3915 = vadd.f32 %v3874, %v3914
    %v3916 = vpop.f32.mrf.mxu0
    %v3917 = vpop.f32.mrf.mxu0
    %3918 = vdwg.mxu0
    %v3923 = vcombine.low %v3585, %v3587
    %v3924 = vcombine.low %v3913, %v3915
    %v3926 = vunpack.c.l.s4 1983009808
    %v3927 = vunpack.c.0.s8 %v3926
    %v3928 = vlaneseq
    %v3929 = vshrl.u32 %v3928, 7
    %v3930 = vsub.s32 %v3927, %v3929
    %v3931 = vrot.slane %v3923, %v3930
    %v3933 = vunpack.c.l.s4 1983009808
    %v3934 = vunpack.c.0.s8 %v3933
    %v3935 = vlaneseq
    %v3936 = vshrl.u32 %v3935, 7
    %v3937 = vsub.s32 %v3934, %v3936
    %v3938 = vrot.slane %v3924, %v3937
    %v3939 = vcombine.low %v3931, %v3938
    %v3941 = vadd.f32 %v72, %v3939
    %3942 = vst [vmem:[#allocation2] sm:$0xff] %v3941
    // Predicated region
    $region38: #{tpu_custom_call.1} parent=1 // pred_check
      %p3943 = pneg %p67
    $region39: #{tpu_custom_call.1} parent=1 // pred_check_branch
      %3945 = sbr.rel (%p3943) target = $region41
    $region40: #{tpu_custom_call.1} parent=1 // pred_region
      %v3946 = vld [vmem:[#allocation2] sm:$0xff]
      %v3947 = vld [vmem:[#allocation8] sm:$0xf]
      %v3949 = vlaneseq
      %v3950 = vshrl.u32 %v3949, 7
      %v3951 = vsub.s32 0, %v3950
      %v3952 = vrot.slane %v3947, %v3951
      %v3953 = vlaneseq
      %v3954 = vshrl.u32 %v3953, 7
      %v3955 = vsub.s32 1, %v3954
      %v3956 = vrot.slane %v3947, %v3955
      %v3957 = vlaneseq
      %v3958 = vshrl.u32 %v3957, 7
      %v3959 = vsub.s32 2, %v3958
      %v3960 = vrot.slane %v3947, %v3959
      %v3961 = vlaneseq
      %v3962 = vshrl.u32 %v3961, 7
      %v3963 = vsub.s32 3, %v3962
      %v3964 = vrot.slane %v3947, %v3963
      %v3965 = vcombine.low %v3952, %v3956
      %v3966 = vcombine.low %v3960, %v3964
      %v3968 = vunpack.c.l.s4 1983009808
      %v3969 = vunpack.c.0.s8 %v3968
      %v3970 = vlaneseq
      %v3971 = vshrl.u32 %v3970, 7
      %v3972 = vsub.s32 %v3969, %v3971
      %v3973 = vrot.slane %v3965, %v3972
      %v3975 = vunpack.c.l.s4 1983009808
      %v3976 = vunpack.c.0.s8 %v3975
      %v3977 = vlaneseq
      %v3978 = vshrl.u32 %v3977, 7
      %v3979 = vsub.s32 %v3976, %v3978
      %v3980 = vrot.slane %v3966, %v3979
      %v3981 = vcombine.low %v3973, %v3980
      %v3983 = vmul.f32 %v3946, %v3981
      %v3984 = vld [vmem:[#allocation9] sm:$0xf]
      %v3986 = vlaneseq
      %v3987 = vshrl.u32 %v3986, 7
      %v3988 = vsub.s32 0, %v3987
      %v3989 = vrot.slane %v3984, %v3988
      %v3990 = vlaneseq
      %v3991 = vshrl.u32 %v3990, 7
      %v3992 = vsub.s32 1, %v3991
      %v3993 = vrot.slane %v3984, %v3992
      %v3994 = vlaneseq
      %v3995 = vshrl.u32 %v3994, 7
      %v3996 = vsub.s32 2, %v3995
      %v3997 = vrot.slane %v3984, %v3996
      %v3998 = vlaneseq
      %v3999 = vshrl.u32 %v3998, 7
      %v4000 = vsub.s32 3, %v3999
      %v4001 = vrot.slane %v3984, %v4000
      %v4002 = vcombine.low %v3989, %v3993
      %v4003 = vcombine.low %v3997, %v4001
      %v4005 = vunpack.c.l.s4 1983009808
      %v4006 = vunpack.c.0.s8 %v4005
      %v4007 = vlaneseq
      %v4008 = vshrl.u32 %v4007, 7
      %v4009 = vsub.s32 %v4006, %v4008
      %v4010 = vrot.slane %v4002, %v4009
      %v4012 = vunpack.c.l.s4 1983009808
      %v4013 = vunpack.c.0.s8 %v4012
      %v4014 = vlaneseq
      %v4015 = vshrl.u32 %v4014, 7
      %v4016 = vsub.s32 %v4013, %v4015
      %v4017 = vrot.slane %v4003, %v4016
      %v4018 = vcombine.low %v4010, %v4017
      %v4020 = vadd.f32 %v3983, %v4018
      %4021 = vst [vmem:[#allocation11] sm:$0xff] %v4020
    $region41: #{tpu_custom_call.1} parent=1 // pred_fallthru
      _
    // Predicated region
    $region42: #{tpu_custom_call.1} parent=1 // pred_check
      _
    $region43: #{tpu_custom_call.1} parent=1 // pred_check_branch
      %4023 = sbr.rel (0) target = $region45
    $region44: #{tpu_custom_call.1} parent=1 // pred_region
      %s4025 = ssub.s32 128, 128
      %4026 = vsyncadd [#allocation5], %s4025
      %s4028 = sshll.u32 [#allocation11], 4
      %s4029 = int_to_ptr.vmem [resolvable:$true] %s4028
      %4031 = dma.vmem_to_hbm [thread:$0]  %s4029, 128, %s4, [#allocation5]
    $region45: #{tpu_custom_call.1} parent=1 // pred_fallthru
      _
    // Predicated region
    $region46: #{tpu_custom_call.1} parent=1 // pred_check
      _
    $region47: #{tpu_custom_call.1} parent=1 // pred_check_branch
      %4033 = sbr.rel (0) target = $region49
    $region48: #{tpu_custom_call.1} parent=1 // pred_region
      %4034 = dma.done [#allocation5], 128
    $region49: #{tpu_custom_call.1} parent=1 // pred_fallthru
      _
    %4035 = vsyncpa [#allocation4], 1
    %4036 = vsyncpa [#allocation7], 1
    %4037 = vsyncpa [#allocation10], 1
    %4038 = vsyncpa [#allocation5], 1

</llo_original>
